<compile_context>
chip_gen: v7x
topology: tpu7x:2x2x1
jax: 0.10.0
libtpu: 0.0.40
codegen_flags: <defaults>
</compile_context>

<pallas_src>
import functools

import numpy as np
import jax
import jax.numpy as jnp
from jax.experimental import pallas as pl
from jax.experimental.pallas import tpu as pltpu


# ----------------------------- in-kernel helpers -----------------------------

def _layernorm(x, g, b, eps=1e-5):
    """x: (L, D) f32, g/b: (1, D) f32.  Matches nn.LayerNorm(d_model)."""
    mu = jnp.mean(x, axis=-1, keepdims=True)
    var = jnp.mean((x - mu) ** 2, axis=-1, keepdims=True)
    return (x - mu) * jax.lax.rsqrt(var + eps) * g + b


def _linear(x, w, b):
    """x: (L, Din) f32, w: (Din, Dout) bf16 (pre-transposed), b: (1, Dout) f32."""
    y = jnp.dot(x.astype(w.dtype), w, preferred_element_type=jnp.float32)
    return y + b


def _split_heads(x, nhead, dh):
    """(L, H*dh) -> (H, L, dh) with static lane slices (robust Mosaic lowering)."""
    return jnp.stack([x[:, h * dh:(h + 1) * dh] for h in range(nhead)], axis=0)


def _merge_heads(o):
    """(H, L, dh) -> (L, H*dh)."""
    H = o.shape[0]
    return jnp.concatenate([o[h] for h in range(H)], axis=-1)


def _attention(q, k, v, wo, bo, nhead):
    """Scaled-dot-product MHA core + output projection.

    q: (Lq, D) f32, k/v: (Lk, D) f32 (projections with biases already applied).
    wo: (D, D) bf16 (pre-transposed), bo: (1, D) f32.
    Heads are split only here (score / P@V batched matmuls); the output
    projection is a single full-width (Lq, D) x (D, D) matmul.
    """
    D = q.shape[-1]
    dh = D // nhead
    scale = 1.0 / float(dh) ** 0.5
    cdt = wo.dtype                                    # bf16 MXU operand dtype

    qh = _split_heads((q * scale).astype(cdt), nhead, dh)    # (H, Lq, dh)
    kh = _split_heads(k.astype(cdt), nhead, dh)               # (H, Lk, dh)
    vh = _split_heads(v.astype(cdt), nhead, dh)                # (H, Lk, dh)

    s = jnp.einsum('hqd,hkd->hqk', qh, kh, preferred_element_type=jnp.float32)
    s = s - jnp.max(s, axis=-1, keepdims=True)
    p = jnp.exp(s)
    p = p * pl.reciprocal(jnp.sum(p, axis=-1, keepdims=True), approx=True)

    o = jnp.einsum('hqk,hkd->hqd', p.astype(cdt), vh,
                   preferred_element_type=jnp.float32)         # (H, Lq, dh)
    o = _merge_heads(o.astype(cdt))                            # (Lq, D) bf16
    return jnp.dot(o, wo, preferred_element_type=jnp.float32) + bo


# --------------------------------- the kernel --------------------------------

def _decoder_layer_kernel(
    tgt_ref, mem_ref, qpos_ref, pos_ref,
    sa_wqk, sa_bqk, sa_wv, sa_bv, sa_wo, sa_bo,
    ca_wq, ca_bq, ca_wk, ca_bk, ca_wv, ca_bv, ca_wo, ca_bo,
    ff_w1, ff_b1, ff_w2, ff_b2,
    n1_g, n1_b, n2_g, n2_b, n3_g, n3_b,
    out_ref, *, nhead,
):
    # Per-batch blocks (batch dim squeezed): tgt/qpos -> (T, D), mem/pos -> (S, D).
    x = tgt_ref[...]
    m = mem_ref[...]
    qp = qpos_ref[...]
    pp = pos_ref[...]
    D = x.shape[-1]

    # ---- self-attention block (forward_post: q = k = tgt + query_pos, v = tgt)
    xqp = x + qp
    qk = _linear(xqp, sa_wqk[...], sa_bqk[...])       # fused Q|K projection (T, 2D)
    v = _linear(x, sa_wv[...], sa_bv[...])            # (T, D)
    sa = _attention(qk[:, :D], qk[:, D:], v, sa_wo[...], sa_bo[...], nhead)
    t = _layernorm(x + sa, n1_g[...], n1_b[...])

    # ---- cross-attention block (q = t + query_pos, k = memory + pos, v = memory)
    q = _linear(t + qp, ca_wq[...], ca_bq[...])
    k = _linear(m + pp, ca_wk[...], ca_bk[...])
    v = _linear(m, ca_wv[...], ca_bv[...])
    ca = _attention(q, k, v, ca_wo[...], ca_bo[...], nhead)
    t = _layernorm(t + ca, n2_g[...], n2_b[...])

    # ---- feed-forward block (relu) ----
    h = jnp.maximum(_linear(t, ff_w1[...], ff_b1[...]), 0.0)
    ff = _linear(h, ff_w2[...], ff_b2[...])
    t = _layernorm(t + ff, n3_g[...], n3_b[...])

    out_ref[...] = t.astype(out_ref.dtype)


# ------------------------- wrapper-side weight prep ---------------------------

def _prepare_params(params):
    """One-time (plain JAX) weight relayout: pre-transpose to (Din, Dout), fuse
    the self-attention Q and K projections into a single (D, 2D) matrix, bf16."""
    (sa_wq, sa_wk, sa_wv, sa_bq, sa_bk, sa_bv, sa_wo, sa_bo,
     ca_wq, ca_wk, ca_wv, ca_bq, ca_bk, ca_bv, ca_wo, ca_bo,
     ff_w1, ff_b1, ff_w2, ff_b2,
     n1_g, n1_b, n2_g, n2_b, n3_g, n3_b) = params
    bf16 = jnp.bfloat16

    def t(w):   # (Dout, Din) torch layout -> (Din, Dout) bf16
        return jnp.transpose(w, (1, 0)).astype(bf16)

    sa_wqk = jnp.concatenate([t(sa_wq), t(sa_wk)], axis=1)   # (D, 2D) bf16
    sa_bqk = jnp.concatenate([sa_bq, sa_bk], axis=1)          # (1, 2D) f32

    return (
        sa_wqk, sa_bqk, t(sa_wv), sa_bv, t(sa_wo), sa_bo,
        t(ca_wq), ca_bq, t(ca_wk), ca_bk, t(ca_wv), ca_bv, t(ca_wo), ca_bo,
        t(ff_w1), ff_b1, t(ff_w2), ff_b2,
        n1_g, n1_b, n2_g, n2_b, n3_g, n3_b,
    )


def _vmem_limit_bytes():
    """Generation-aware VMEM request: ~3/4 of physical, capped at 100 MiB."""
    try:
        cap = int(pltpu.get_tpu_info().vmem_capacity_bytes)
    except Exception:
        cap = 128 * 1024 * 1024
    return int(min(100 * 1024 * 1024, (cap * 3) // 4))


# --------------------------------- wrapper ------------------------------------

def transformer_decoder_layer(tgt, memory, params, query_pos, pos, *, nhead):
    """tgt/query_pos: (T, B, D), memory/pos: (S, B, D) -- PyTorch seq-first layout."""
    T, B, D = tgt.shape
    S = memory.shape[0]
    FF = params[16].shape[0]

    prepared = _prepare_params(params)

    # Batch-major presentation: one cheap XLA transpose makes every per-batch
    # block a single contiguous DMA run (important when D*4 < ~1 KiB).
    acts = tuple(jnp.transpose(a, (1, 0, 2))
                 for a in (tgt, memory, query_pos, pos))   # (B, T, D)/(B, S, D)

    def act_spec(L):
        return pl.BlockSpec((None, L, D), lambda b: (b, 0, 0))

    def const_spec(a):
        n = a.ndim
        # Grid-invariant weights (constant index map); at DETR scale these
        # should also be single-buffered (pl.Buffered(1)) to save VMEM.
        return pl.BlockSpec(a.shape, lambda b, _n=n: (0,) * _n)

    in_specs = ([act_spec(T), act_spec(S), act_spec(T), act_spec(S)]
                + [const_spec(a) for a in prepared])
    out_spec = pl.BlockSpec((None, T, D), lambda b: (b, 0, 0))

    # Advisory cost estimate so XLA doesn't treat the custom call as free.
    flops = int(B * (2 * D * D * (6 * T + 2 * S)       # projections
                     + 4 * T * T * D + 4 * T * S * D   # attention score + P@V
                     + 4 * T * D * FF))                 # feed-forward
    transcendentals = int(B * nhead * (T * T + T * S))
    bytes_accessed = int(sum(int(a.size) * a.dtype.itemsize
                             for a in acts + prepared)
                         + T * B * D * 4)

    kernel = functools.partial(_decoder_layer_kernel, nhead=nhead)

    out = pl.pallas_call(
        kernel,
        out_shape=jax.ShapeDtypeStruct((B, T, D), jnp.float32),
        grid_spec=pltpu.PrefetchScalarGridSpec(
            num_scalar_prefetch=0,
            grid=(B,),                       # batch elements are independent
            in_specs=in_specs,
            out_specs=out_spec,
        ),
        compiler_params=pltpu.CompilerParams(
            dimension_semantics=("parallel",),   # lets v7x shard over 2 TCs
            vmem_limit_bytes=_vmem_limit_bytes(),
        ),
        cost_estimate=pl.CostEstimate(
            flops=flops,
            transcendentals=transcendentals,
            bytes_accessed=bytes_accessed,
        ),
    )(*acts, *prepared)

    return jnp.transpose(out, (1, 0, 2))     # back to seq-first (T, B, D)


# ------------------------------ parameter init --------------------------------

def init_params(key, d_model, dim_feedforward):
    keys = jax.random.split(key, 26)
    ki = iter(keys)

    def w(shape, scale=0.02):
        return (scale * jax.random.normal(next(ki), shape)).astype(jnp.float32)

    # self-attention
    sa_wq, sa_wk, sa_wv, sa_wo = (w((d_model, d_model)) for _ in range(4))
    sa_bq, sa_bk, sa_bv, sa_bo = (w((1, d_model)) for _ in range(4))
    # cross-attention
    ca_wq, ca_wk, ca_wv, ca_wo = (w((d_model, d_model)) for _ in range(4))
    ca_bq, ca_bk, ca_bv, ca_bo = (w((1, d_model)) for _ in range(4))
    # feed-forward
    ff_w1 = w((dim_feedforward, d_model))
    ff_b1 = w((1, dim_feedforward))
    ff_w2 = w((d_model, dim_feedforward))
    ff_b2 = w((1, d_model))
    # layer norms (gamma ~ 1, beta ~ 0, slight perturbation for coverage)
    n1_g = 1.0 + w((1, d_model), 0.01)
    n1_b = w((1, d_model), 0.01)
    n2_g = 1.0 + w((1, d_model), 0.01)
    n2_b = w((1, d_model), 0.01)
    n3_g = 1.0 + w((1, d_model), 0.01)
    n3_b = w((1, d_model), 0.01)

    return (sa_wq, sa_wk, sa_wv, sa_bq, sa_bk, sa_bv, sa_wo, sa_bo,
            ca_wq, ca_wk, ca_wv, ca_bq, ca_bk, ca_bv, ca_wo, ca_bo,
            ff_w1, ff_b1, ff_w2, ff_b2,
            n1_g, n1_b, n2_g, n2_b, n3_g, n3_b)


# ----------------------------- pure-JAX reference ------------------------------

def reference(tgt, memory, qpos, pos, params, nhead):
    (sa_wq, sa_wk, sa_wv, sa_bq, sa_bk, sa_bv, sa_wo, sa_bo,
     ca_wq, ca_wk, ca_wv, ca_bq, ca_bk, ca_bv, ca_wo, ca_bo,
     ff_w1, ff_b1, ff_w2, ff_b2,
     n1_g, n1_b, n2_g, n2_b, n3_g, n3_b) = params

    hp = jax.lax.Precision.HIGHEST

    def lin(x, w, b):
        return jnp.einsum('bti,oi->bto', x, w, precision=hp) + b[None]

    def ln(x, g, b, eps=1e-5):
        mu = x.mean(-1, keepdims=True)
        var = ((x - mu) ** 2).mean(-1, keepdims=True)
        return (x - mu) / jnp.sqrt(var + eps) * g[None] + b[None]

    def mha(qi, ki, vi, wq, wk, wv, bq, bk, bv, wo, bo):
        B, T, D = qi.shape
        S = ki.shape[1]
        dh = D // nhead
        q = lin(qi, wq, bq).reshape(B, T, nhead, dh) / jnp.sqrt(dh)
        k = lin(ki, wk, bk).reshape(B, S, nhead, dh)
        v = lin(vi, wv, bv).reshape(B, S, nhead, dh)
        s = jnp.einsum('bthd,bshd->bhts', q, k, precision=hp)
        p = jax.nn.softmax(s, axis=-1)
        o = jnp.einsum('bhts,bshd->bthd', p, v, precision=hp).reshape(B, T, D)
        return lin(o, wo, bo)

    t = jnp.transpose(tgt, (1, 0, 2))
    m = jnp.transpose(memory, (1, 0, 2))
    qp = jnp.transpose(qpos, (1, 0, 2))
    pp = jnp.transpose(pos, (1, 0, 2))

    qk = t + qp
    t2 = mha(qk, qk, t, sa_wq, sa_wk, sa_wv, sa_bq, sa_bk, sa_bv, sa_wo, sa_bo)
    t = ln(t + t2, n1_g, n1_b)
    t2 = mha(t + qp, m + pp, m, ca_wq, ca_wk, ca_wv, ca_bq, ca_bk, ca_bv, ca_wo, ca_bo)
    t = ln(t + t2, n2_g, n2_b)
    h = jax.nn.relu(lin(t, ff_w1, ff_b1))
    t2 = lin(h, ff_w2, ff_b2)
    t = ln(t + t2, n3_g, n3_b)
    return jnp.transpose(t, (1, 0, 2))


# ----------------------------------- main --------------------------------------

if __name__ == "__main__":
    T, S, B, D, H, FF = 8, 8, 2, 32, 4, 64   # seq_tgt, seq_mem, batch, d_model, nhead, dff

    key = jax.random.PRNGKey(0)
    k_in, k_p = jax.random.split(key)
    kt, km, kq, kp = jax.random.split(k_in, 4)
    tgt = jax.random.normal(kt, (T, B, D), jnp.float32)
    memory = jax.random.normal(km, (S, B, D), jnp.float32)
    query_pos = jax.random.normal(kq, (T, B, D), jnp.float32)
    pos = jax.random.normal(kp, (S, B, D), jnp.float32)
    params = init_params(k_p, D, FF)

    out = transformer_decoder_layer(tgt, memory, params, query_pos, pos, nhead=H)
    out = jax.block_until_ready(out)

    ref = jax.block_until_ready(reference(tgt, memory, query_pos, pos, params, H))
    assert out.shape == (T, B, D) and bool(jnp.all(jnp.isfinite(out)))
    # bf16 MXU operands + approx reciprocal vs f32 HIGHEST reference.
    np.testing.assert_allclose(np.asarray(out), np.asarray(ref), atol=2e-2, rtol=2e-2)

    print("KERNEL_OK")
</pallas_src>

<mosaic_0001>
module attributes {stable_mosaic.version = 11 : i64} {
  func.func @_decoder_layer_kernel(%arg0: i32, %arg1: memref<1x8x32xf32, #tpu.memory_space<vmem>>, %arg2: memref<1x8x32xf32, #tpu.memory_space<vmem>>, %arg3: memref<1x8x32xf32, #tpu.memory_space<vmem>>, %arg4: memref<1x8x32xf32, #tpu.memory_space<vmem>>, %arg5: memref<32x64xbf16, #tpu.memory_space<vmem>>, %arg6: memref<1x64xf32, #tpu.memory_space<vmem>>, %arg7: memref<32x32xbf16, #tpu.memory_space<vmem>>, %arg8: memref<1x32xf32, #tpu.memory_space<vmem>>, %arg9: memref<32x32xbf16, #tpu.memory_space<vmem>>, %arg10: memref<1x32xf32, #tpu.memory_space<vmem>>, %arg11: memref<32x32xbf16, #tpu.memory_space<vmem>>, %arg12: memref<1x32xf32, #tpu.memory_space<vmem>>, %arg13: memref<32x32xbf16, #tpu.memory_space<vmem>>, %arg14: memref<1x32xf32, #tpu.memory_space<vmem>>, %arg15: memref<32x32xbf16, #tpu.memory_space<vmem>>, %arg16: memref<1x32xf32, #tpu.memory_space<vmem>>, %arg17: memref<32x32xbf16, #tpu.memory_space<vmem>>, %arg18: memref<1x32xf32, #tpu.memory_space<vmem>>, %arg19: memref<32x64xbf16, #tpu.memory_space<vmem>>, %arg20: memref<1x64xf32, #tpu.memory_space<vmem>>, %arg21: memref<64x32xbf16, #tpu.memory_space<vmem>>, %arg22: memref<1x32xf32, #tpu.memory_space<vmem>>, %arg23: memref<1x32xf32, #tpu.memory_space<vmem>>, %arg24: memref<1x32xf32, #tpu.memory_space<vmem>>, %arg25: memref<1x32xf32, #tpu.memory_space<vmem>>, %arg26: memref<1x32xf32, #tpu.memory_space<vmem>>, %arg27: memref<1x32xf32, #tpu.memory_space<vmem>>, %arg28: memref<1x32xf32, #tpu.memory_space<vmem>>, %arg29: memref<1x8x32xf32, #tpu.memory_space<vmem>>) attributes {dimension_semantics = [#tpu.dimension_semantics<parallel>], iteration_bounds = array<i64: 2>, scalar_prefetch = 0 : i64, scratch_operands = 0 : i64, tpu.core_type = #tpu.core_type<tc>, window_params = [{transform_indices = @transform_0, window_bounds = array<i64: 1, 8, 32>}, {transform_indices = @transform_1, window_bounds = array<i64: 1, 8, 32>}, {transform_indices = @transform_2, window_bounds = array<i64: 1, 8, 32>}, {transform_indices = @transform_3, window_bounds = array<i64: 1, 8, 32>}, {pipeline_mode = #tpu.pipeline_mode<synchronous>, transform_indices = @transform_4, window_bounds = array<i64: 32, 64>}, {pipeline_mode = #tpu.pipeline_mode<synchronous>, transform_indices = @transform_5, window_bounds = array<i64: 1, 64>}, {pipeline_mode = #tpu.pipeline_mode<synchronous>, transform_indices = @transform_6, window_bounds = array<i64: 32, 32>}, {pipeline_mode = #tpu.pipeline_mode<synchronous>, transform_indices = @transform_7, window_bounds = array<i64: 1, 32>}, {pipeline_mode = #tpu.pipeline_mode<synchronous>, transform_indices = @transform_8, window_bounds = array<i64: 32, 32>}, {pipeline_mode = #tpu.pipeline_mode<synchronous>, transform_indices = @transform_9, window_bounds = array<i64: 1, 32>}, {pipeline_mode = #tpu.pipeline_mode<synchronous>, transform_indices = @transform_10, window_bounds = array<i64: 32, 32>}, {pipeline_mode = #tpu.pipeline_mode<synchronous>, transform_indices = @transform_11, window_bounds = array<i64: 1, 32>}, {pipeline_mode = #tpu.pipeline_mode<synchronous>, transform_indices = @transform_12, window_bounds = array<i64: 32, 32>}, {pipeline_mode = #tpu.pipeline_mode<synchronous>, transform_indices = @transform_13, window_bounds = array<i64: 1, 32>}, {pipeline_mode = #tpu.pipeline_mode<synchronous>, transform_indices = @transform_14, window_bounds = array<i64: 32, 32>}, {pipeline_mode = #tpu.pipeline_mode<synchronous>, transform_indices = @transform_15, window_bounds = array<i64: 1, 32>}, {pipeline_mode = #tpu.pipeline_mode<synchronous>, transform_indices = @transform_16, window_bounds = array<i64: 32, 32>}, {pipeline_mode = #tpu.pipeline_mode<synchronous>, transform_indices = @transform_17, window_bounds = array<i64: 1, 32>}, {pipeline_mode = #tpu.pipeline_mode<synchronous>, transform_indices = @transform_18, window_bounds = array<i64: 32, 64>}, {pipeline_mode = #tpu.pipeline_mode<synchronous>, transform_indices = @transform_19, window_bounds = array<i64: 1, 64>}, {pipeline_mode = #tpu.pipeline_mode<synchronous>, transform_indices = @transform_20, window_bounds = array<i64: 64, 32>}, {pipeline_mode = #tpu.pipeline_mode<synchronous>, transform_indices = @transform_21, window_bounds = array<i64: 1, 32>}, {pipeline_mode = #tpu.pipeline_mode<synchronous>, transform_indices = @transform_22, window_bounds = array<i64: 1, 32>}, {pipeline_mode = #tpu.pipeline_mode<synchronous>, transform_indices = @transform_23, window_bounds = array<i64: 1, 32>}, {pipeline_mode = #tpu.pipeline_mode<synchronous>, transform_indices = @transform_24, window_bounds = array<i64: 1, 32>}, {pipeline_mode = #tpu.pipeline_mode<synchronous>, transform_indices = @transform_25, window_bounds = array<i64: 1, 32>}, {pipeline_mode = #tpu.pipeline_mode<synchronous>, transform_indices = @transform_26, window_bounds = array<i64: 1, 32>}, {pipeline_mode = #tpu.pipeline_mode<synchronous>, transform_indices = @transform_27, window_bounds = array<i64: 1, 32>}, {transform_indices = @transform_28, window_bounds = array<i64: 1, 8, 32>}]} {
    %c0 = arith.constant 0 : index
    %c0_0 = arith.constant 0 : index
    %c0_1 = arith.constant 0 : index
    %0 = vector.load %arg1[%c0, %c0_0, %c0_1] : memref<1x8x32xf32, #tpu.memory_space<vmem>>, vector<1x8x32xf32>
    %1 = vector.shape_cast %0 : vector<1x8x32xf32> to vector<8x32xf32>
    %c0_2 = arith.constant 0 : index
    %c0_3 = arith.constant 0 : index
    %c0_4 = arith.constant 0 : index
    %2 = vector.load %arg2[%c0_2, %c0_3, %c0_4] : memref<1x8x32xf32, #tpu.memory_space<vmem>>, vector<1x8x32xf32>
    %3 = vector.shape_cast %2 : vector<1x8x32xf32> to vector<8x32xf32>
    %c0_5 = arith.constant 0 : index
    %c0_6 = arith.constant 0 : index
    %c0_7 = arith.constant 0 : index
    %4 = vector.load %arg3[%c0_5, %c0_6, %c0_7] : memref<1x8x32xf32, #tpu.memory_space<vmem>>, vector<1x8x32xf32>
    %5 = vector.shape_cast %4 : vector<1x8x32xf32> to vector<8x32xf32>
    %c0_8 = arith.constant 0 : index
    %c0_9 = arith.constant 0 : index
    %c0_10 = arith.constant 0 : index
    %6 = vector.load %arg4[%c0_8, %c0_9, %c0_10] : memref<1x8x32xf32, #tpu.memory_space<vmem>>, vector<1x8x32xf32>
    %7 = vector.shape_cast %6 : vector<1x8x32xf32> to vector<8x32xf32>
    %8 = arith.addf %1, %5 : vector<8x32xf32>
    %c0_11 = arith.constant 0 : index
    %c0_12 = arith.constant 0 : index
    %9 = vector.load %arg5[%c0_11, %c0_12] : memref<32x64xbf16, #tpu.memory_space<vmem>>, vector<32x64xbf16>
    %c0_13 = arith.constant 0 : index
    %c0_14 = arith.constant 0 : index
    %10 = vector.load %arg6[%c0_13, %c0_14] : memref<1x64xf32, #tpu.memory_space<vmem>>, vector<1x64xf32>
    %11 = arith.truncf %8 : vector<8x32xf32> to vector<8x32xbf16>
    %cst = arith.constant dense<0.000000e+00> : vector<8x64xf32>
    %12 = tpu.matmul %11, %9, %cst {dimension_numbers = #tpu.dot_dimension_numbers<[1], [0], [0], [1], [0, 0, 1, 1], [], []>} : vector<8x32xbf16>, vector<32x64xbf16>, vector<8x64xf32> -> vector<8x64xf32>
    %13 = vector.broadcast %10 : vector<1x64xf32> to vector<8x64xf32>
    %14 = arith.addf %12, %13 : vector<8x64xf32>
    %c0_15 = arith.constant 0 : index
    %c0_16 = arith.constant 0 : index
    %15 = vector.load %arg7[%c0_15, %c0_16] : memref<32x32xbf16, #tpu.memory_space<vmem>>, vector<32x32xbf16>
    %c0_17 = arith.constant 0 : index
    %c0_18 = arith.constant 0 : index
    %16 = vector.load %arg8[%c0_17, %c0_18] : memref<1x32xf32, #tpu.memory_space<vmem>>, vector<1x32xf32>
    %17 = arith.truncf %1 : vector<8x32xf32> to vector<8x32xbf16>
    %cst_19 = arith.constant dense<0.000000e+00> : vector<8x32xf32>
    %18 = tpu.matmul %17, %15, %cst_19 {dimension_numbers = #tpu.dot_dimension_numbers<[1], [0], [0], [1], [0, 0, 1, 1], [], []>} : vector<8x32xbf16>, vector<32x32xbf16>, vector<8x32xf32> -> vector<8x32xf32>
    %19 = vector.broadcast %16 : vector<1x32xf32> to vector<8x32xf32>
    %20 = arith.addf %18, %19 : vector<8x32xf32>
    %21 = vector.extract_strided_slice %14 {offsets = [0, 0], sizes = [8, 32], strides = [1, 1]} : vector<8x64xf32> to vector<8x32xf32>
    %22 = vector.extract_strided_slice %14 {offsets = [0, 32], sizes = [8, 32], strides = [1, 1]} : vector<8x64xf32> to vector<8x32xf32>
    %c0_20 = arith.constant 0 : index
    %c0_21 = arith.constant 0 : index
    %23 = vector.load %arg9[%c0_20, %c0_21] : memref<32x32xbf16, #tpu.memory_space<vmem>>, vector<32x32xbf16>
    %c0_22 = arith.constant 0 : index
    %c0_23 = arith.constant 0 : index
    %24 = vector.load %arg10[%c0_22, %c0_23] : memref<1x32xf32, #tpu.memory_space<vmem>>, vector<1x32xf32>
    %cst_24 = arith.constant 0.353553385 : f32
    %25 = vector.broadcast %cst_24 : f32 to vector<8x32xf32>
    %26 = arith.mulf %21, %25 : vector<8x32xf32>
    %27 = arith.truncf %26 : vector<8x32xf32> to vector<8x32xbf16>
    %28 = vector.extract_strided_slice %27 {offsets = [0, 0], sizes = [8, 8], strides = [1, 1]} : vector<8x32xbf16> to vector<8x8xbf16>
    %29 = vector.extract_strided_slice %27 {offsets = [0, 8], sizes = [8, 8], strides = [1, 1]} : vector<8x32xbf16> to vector<8x8xbf16>
    %30 = vector.extract_strided_slice %27 {offsets = [0, 16], sizes = [8, 8], strides = [1, 1]} : vector<8x32xbf16> to vector<8x8xbf16>
    %31 = vector.extract_strided_slice %27 {offsets = [0, 24], sizes = [8, 8], strides = [1, 1]} : vector<8x32xbf16> to vector<8x8xbf16>
    %32 = vector.shape_cast %28 : vector<8x8xbf16> to vector<1x8x8xbf16>
    %33 = vector.shape_cast %29 : vector<8x8xbf16> to vector<1x8x8xbf16>
    %34 = vector.shape_cast %30 : vector<8x8xbf16> to vector<1x8x8xbf16>
    %35 = vector.shape_cast %31 : vector<8x8xbf16> to vector<1x8x8xbf16>
    %36 = tpu.concatenate %32, %33, %34, %35 in 0 : vector<1x8x8xbf16>, vector<1x8x8xbf16>, vector<1x8x8xbf16>, vector<1x8x8xbf16> -> vector<4x8x8xbf16>
    %37 = arith.truncf %22 : vector<8x32xf32> to vector<8x32xbf16>
    %38 = vector.extract_strided_slice %37 {offsets = [0, 0], sizes = [8, 8], strides = [1, 1]} : vector<8x32xbf16> to vector<8x8xbf16>
    %39 = vector.extract_strided_slice %37 {offsets = [0, 8], sizes = [8, 8], strides = [1, 1]} : vector<8x32xbf16> to vector<8x8xbf16>
    %40 = vector.extract_strided_slice %37 {offsets = [0, 16], sizes = [8, 8], strides = [1, 1]} : vector<8x32xbf16> to vector<8x8xbf16>
    %41 = vector.extract_strided_slice %37 {offsets = [0, 24], sizes = [8, 8], strides = [1, 1]} : vector<8x32xbf16> to vector<8x8xbf16>
    %42 = vector.shape_cast %38 : vector<8x8xbf16> to vector<1x8x8xbf16>
    %43 = vector.shape_cast %39 : vector<8x8xbf16> to vector<1x8x8xbf16>
    %44 = vector.shape_cast %40 : vector<8x8xbf16> to vector<1x8x8xbf16>
    %45 = vector.shape_cast %41 : vector<8x8xbf16> to vector<1x8x8xbf16>
    %46 = tpu.concatenate %42, %43, %44, %45 in 0 : vector<1x8x8xbf16>, vector<1x8x8xbf16>, vector<1x8x8xbf16>, vector<1x8x8xbf16> -> vector<4x8x8xbf16>
    %47 = arith.truncf %20 : vector<8x32xf32> to vector<8x32xbf16>
    %48 = vector.extract_strided_slice %47 {offsets = [0, 0], sizes = [8, 8], strides = [1, 1]} : vector<8x32xbf16> to vector<8x8xbf16>
    %49 = vector.extract_strided_slice %47 {offsets = [0, 8], sizes = [8, 8], strides = [1, 1]} : vector<8x32xbf16> to vector<8x8xbf16>
    %50 = vector.extract_strided_slice %47 {offsets = [0, 16], sizes = [8, 8], strides = [1, 1]} : vector<8x32xbf16> to vector<8x8xbf16>
    %51 = vector.extract_strided_slice %47 {offsets = [0, 24], sizes = [8, 8], strides = [1, 1]} : vector<8x32xbf16> to vector<8x8xbf16>
    %52 = vector.shape_cast %48 : vector<8x8xbf16> to vector<1x8x8xbf16>
    %53 = vector.shape_cast %49 : vector<8x8xbf16> to vector<1x8x8xbf16>
    %54 = vector.shape_cast %50 : vector<8x8xbf16> to vector<1x8x8xbf16>
    %55 = vector.shape_cast %51 : vector<8x8xbf16> to vector<1x8x8xbf16>
    %56 = tpu.concatenate %52, %53, %54, %55 in 0 : vector<1x8x8xbf16>, vector<1x8x8xbf16>, vector<1x8x8xbf16>, vector<1x8x8xbf16> -> vector<4x8x8xbf16>
    "tpu.trace_start"() <{level = 10 : i32, message = "hqd,hkd->hqk"}> : () -> ()
    %cst_25 = arith.constant dense<0.000000e+00> : vector<4x8x8xf32>
    %57 = tpu.matmul %36, %46, %cst_25 {dimension_numbers = #tpu.dot_dimension_numbers<[2], [2], [1], [1], [0, 0, 0, 1, 1, 1], [0], [0]>} : vector<4x8x8xbf16>, vector<4x8x8xbf16>, vector<4x8x8xf32> -> vector<4x8x8xf32>
    "tpu.trace_stop"() : () -> ()
    %cst_26 = arith.constant dense<0xFF800000> : vector<4x8xf32>
    %58 = vector.multi_reduction <maximumf>, %57, %cst_26 [2] : vector<4x8x8xf32> to vector<4x8xf32>
    %59 = vector.shape_cast %58 : vector<4x8xf32> to vector<4x8x1xf32>
    %60 = vector.broadcast %59 : vector<4x8x1xf32> to vector<4x8x8xf32>
    %61 = arith.subf %57, %60 : vector<4x8x8xf32>
    %62 = math.exp %61 : vector<4x8x8xf32>
    %cst_27 = arith.constant dense<0.000000e+00> : vector<4x8xf32>
    %63 = vector.multi_reduction <add>, %62, %cst_27 [2] : vector<4x8x8xf32> to vector<4x8xf32>
    %64 = vector.shape_cast %63 : vector<4x8xf32> to vector<4x8x1xf32>
    %65 = tpu.reciprocal %64 {approx = true} : vector<4x8x1xf32> -> vector<4x8x1xf32>
    %66 = vector.broadcast %65 : vector<4x8x1xf32> to vector<4x8x8xf32>
    %67 = arith.mulf %62, %66 : vector<4x8x8xf32>
    %68 = arith.truncf %67 : vector<4x8x8xf32> to vector<4x8x8xbf16>
    "tpu.trace_start"() <{level = 10 : i32, message = "hqk,hkd->hqd"}> : () -> ()
    %cst_28 = arith.constant dense<0.000000e+00> : vector<4x8x8xf32>
    %69 = tpu.matmul %68, %56, %cst_28 {dimension_numbers = #tpu.dot_dimension_numbers<[2], [1], [1], [2], [0, 0, 0, 1, 1, 2], [0], [0]>} : vector<4x8x8xbf16>, vector<4x8x8xbf16>, vector<4x8x8xf32> -> vector<4x8x8xf32>
    "tpu.trace_stop"() : () -> ()
    %70 = arith.truncf %69 : vector<4x8x8xf32> to vector<4x8x8xbf16>
    %71 = vector.extract_strided_slice %70 {offsets = [0, 0, 0], sizes = [1, 8, 8], strides = [1, 1, 1]} : vector<4x8x8xbf16> to vector<1x8x8xbf16>
    %72 = vector.shape_cast %71 : vector<1x8x8xbf16> to vector<8x8xbf16>
    %73 = vector.extract_strided_slice %70 {offsets = [1, 0, 0], sizes = [1, 8, 8], strides = [1, 1, 1]} : vector<4x8x8xbf16> to vector<1x8x8xbf16>
    %74 = vector.shape_cast %73 : vector<1x8x8xbf16> to vector<8x8xbf16>
    %75 = vector.extract_strided_slice %70 {offsets = [2, 0, 0], sizes = [1, 8, 8], strides = [1, 1, 1]} : vector<4x8x8xbf16> to vector<1x8x8xbf16>
    %76 = vector.shape_cast %75 : vector<1x8x8xbf16> to vector<8x8xbf16>
    %77 = vector.extract_strided_slice %70 {offsets = [3, 0, 0], sizes = [1, 8, 8], strides = [1, 1, 1]} : vector<4x8x8xbf16> to vector<1x8x8xbf16>
    %78 = vector.shape_cast %77 : vector<1x8x8xbf16> to vector<8x8xbf16>
    %79 = tpu.concatenate %72, %74, %76, %78 in 1 : vector<8x8xbf16>, vector<8x8xbf16>, vector<8x8xbf16>, vector<8x8xbf16> -> vector<8x32xbf16>
    %cst_29 = arith.constant dense<0.000000e+00> : vector<8x32xf32>
    %80 = tpu.matmul %79, %23, %cst_29 {dimension_numbers = #tpu.dot_dimension_numbers<[1], [0], [0], [1], [0, 0, 1, 1], [], []>} : vector<8x32xbf16>, vector<32x32xbf16>, vector<8x32xf32> -> vector<8x32xf32>
    %81 = vector.broadcast %24 : vector<1x32xf32> to vector<8x32xf32>
    %82 = arith.addf %80, %81 : vector<8x32xf32>
    %83 = arith.addf %1, %82 : vector<8x32xf32>
    %c0_30 = arith.constant 0 : index
    %c0_31 = arith.constant 0 : index
    %84 = vector.load %arg23[%c0_30, %c0_31] : memref<1x32xf32, #tpu.memory_space<vmem>>, vector<1x32xf32>
    %c0_32 = arith.constant 0 : index
    %c0_33 = arith.constant 0 : index
    %85 = vector.load %arg24[%c0_32, %c0_33] : memref<1x32xf32, #tpu.memory_space<vmem>>, vector<1x32xf32>
    %cst_34 = arith.constant dense<0.000000e+00> : vector<8xf32>
    %86 = vector.multi_reduction <add>, %83, %cst_34 [1] : vector<8x32xf32> to vector<8xf32>
    %87 = vector.shape_cast %86 : vector<8xf32> to vector<8x1xf32>
    %cst_35 = arith.constant 3.200000e+01 : f32
    %88 = vector.broadcast %cst_35 : f32 to vector<8x1xf32>
    %89 = arith.divf %87, %88 : vector<8x1xf32>
    %90 = vector.broadcast %89 : vector<8x1xf32> to vector<8x32xf32>
    %91 = arith.subf %83, %90 : vector<8x32xf32>
    %92 = arith.mulf %91, %91 : vector<8x32xf32>
    %cst_36 = arith.constant dense<0.000000e+00> : vector<8xf32>
    %93 = vector.multi_reduction <add>, %92, %cst_36 [1] : vector<8x32xf32> to vector<8xf32>
    %94 = vector.shape_cast %93 : vector<8xf32> to vector<8x1xf32>
    %cst_37 = arith.constant 3.200000e+01 : f32
    %95 = vector.broadcast %cst_37 : f32 to vector<8x1xf32>
    %96 = arith.divf %94, %95 : vector<8x1xf32>
    %97 = vector.broadcast %89 : vector<8x1xf32> to vector<8x32xf32>
    %98 = arith.subf %83, %97 : vector<8x32xf32>
    %cst_38 = arith.constant 9.99999974E-6 : f32
    %99 = vector.broadcast %cst_38 : f32 to vector<8x1xf32>
    %100 = arith.addf %96, %99 : vector<8x1xf32>
    %101 = math.rsqrt %100 : vector<8x1xf32>
    %102 = vector.broadcast %101 : vector<8x1xf32> to vector<8x32xf32>
    %103 = arith.mulf %98, %102 : vector<8x32xf32>
    %104 = vector.broadcast %84 : vector<1x32xf32> to vector<8x32xf32>
    %105 = arith.mulf %103, %104 : vector<8x32xf32>
    %106 = vector.broadcast %85 : vector<1x32xf32> to vector<8x32xf32>
    %107 = arith.addf %105, %106 : vector<8x32xf32>
    %108 = arith.addf %107, %5 : vector<8x32xf32>
    %c0_39 = arith.constant 0 : index
    %c0_40 = arith.constant 0 : index
    %109 = vector.load %arg11[%c0_39, %c0_40] : memref<32x32xbf16, #tpu.memory_space<vmem>>, vector<32x32xbf16>
    %c0_41 = arith.constant 0 : index
    %c0_42 = arith.constant 0 : index
    %110 = vector.load %arg12[%c0_41, %c0_42] : memref<1x32xf32, #tpu.memory_space<vmem>>, vector<1x32xf32>
    %111 = arith.truncf %108 : vector<8x32xf32> to vector<8x32xbf16>
    %cst_43 = arith.constant dense<0.000000e+00> : vector<8x32xf32>
    %112 = tpu.matmul %111, %109, %cst_43 {dimension_numbers = #tpu.dot_dimension_numbers<[1], [0], [0], [1], [0, 0, 1, 1], [], []>} : vector<8x32xbf16>, vector<32x32xbf16>, vector<8x32xf32> -> vector<8x32xf32>
    %113 = vector.broadcast %110 : vector<1x32xf32> to vector<8x32xf32>
    %114 = arith.addf %112, %113 : vector<8x32xf32>
    %115 = arith.addf %3, %7 : vector<8x32xf32>
    %c0_44 = arith.constant 0 : index
    %c0_45 = arith.constant 0 : index
    %116 = vector.load %arg13[%c0_44, %c0_45] : memref<32x32xbf16, #tpu.memory_space<vmem>>, vector<32x32xbf16>
    %c0_46 = arith.constant 0 : index
    %c0_47 = arith.constant 0 : index
    %117 = vector.load %arg14[%c0_46, %c0_47] : memref<1x32xf32, #tpu.memory_space<vmem>>, vector<1x32xf32>
    %118 = arith.truncf %115 : vector<8x32xf32> to vector<8x32xbf16>
    %cst_48 = arith.constant dense<0.000000e+00> : vector<8x32xf32>
    %119 = tpu.matmul %118, %116, %cst_48 {dimension_numbers = #tpu.dot_dimension_numbers<[1], [0], [0], [1], [0, 0, 1, 1], [], []>} : vector<8x32xbf16>, vector<32x32xbf16>, vector<8x32xf32> -> vector<8x32xf32>
    %120 = vector.broadcast %117 : vector<1x32xf32> to vector<8x32xf32>
    %121 = arith.addf %119, %120 : vector<8x32xf32>
    %c0_49 = arith.constant 0 : index
    %c0_50 = arith.constant 0 : index
    %122 = vector.load %arg15[%c0_49, %c0_50] : memref<32x32xbf16, #tpu.memory_space<vmem>>, vector<32x32xbf16>
    %c0_51 = arith.constant 0 : index
    %c0_52 = arith.constant 0 : index
    %123 = vector.load %arg16[%c0_51, %c0_52] : memref<1x32xf32, #tpu.memory_space<vmem>>, vector<1x32xf32>
    %124 = arith.truncf %3 : vector<8x32xf32> to vector<8x32xbf16>
    %cst_53 = arith.constant dense<0.000000e+00> : vector<8x32xf32>
    %125 = tpu.matmul %124, %122, %cst_53 {dimension_numbers = #tpu.dot_dimension_numbers<[1], [0], [0], [1], [0, 0, 1, 1], [], []>} : vector<8x32xbf16>, vector<32x32xbf16>, vector<8x32xf32> -> vector<8x32xf32>
    %126 = vector.broadcast %123 : vector<1x32xf32> to vector<8x32xf32>
    %127 = arith.addf %125, %126 : vector<8x32xf32>
    %c0_54 = arith.constant 0 : index
    %c0_55 = arith.constant 0 : index
    %128 = vector.load %arg17[%c0_54, %c0_55] : memref<32x32xbf16, #tpu.memory_space<vmem>>, vector<32x32xbf16>
    %c0_56 = arith.constant 0 : index
    %c0_57 = arith.constant 0 : index
    %129 = vector.load %arg18[%c0_56, %c0_57] : memref<1x32xf32, #tpu.memory_space<vmem>>, vector<1x32xf32>
    %cst_58 = arith.constant 0.353553385 : f32
    %130 = vector.broadcast %cst_58 : f32 to vector<8x32xf32>
    %131 = arith.mulf %114, %130 : vector<8x32xf32>
    %132 = arith.truncf %131 : vector<8x32xf32> to vector<8x32xbf16>
    %133 = vector.extract_strided_slice %132 {offsets = [0, 0], sizes = [8, 8], strides = [1, 1]} : vector<8x32xbf16> to vector<8x8xbf16>
    %134 = vector.extract_strided_slice %132 {offsets = [0, 8], sizes = [8, 8], strides = [1, 1]} : vector<8x32xbf16> to vector<8x8xbf16>
    %135 = vector.extract_strided_slice %132 {offsets = [0, 16], sizes = [8, 8], strides = [1, 1]} : vector<8x32xbf16> to vector<8x8xbf16>
    %136 = vector.extract_strided_slice %132 {offsets = [0, 24], sizes = [8, 8], strides = [1, 1]} : vector<8x32xbf16> to vector<8x8xbf16>
    %137 = vector.shape_cast %133 : vector<8x8xbf16> to vector<1x8x8xbf16>
    %138 = vector.shape_cast %134 : vector<8x8xbf16> to vector<1x8x8xbf16>
    %139 = vector.shape_cast %135 : vector<8x8xbf16> to vector<1x8x8xbf16>
    %140 = vector.shape_cast %136 : vector<8x8xbf16> to vector<1x8x8xbf16>
    %141 = tpu.concatenate %137, %138, %139, %140 in 0 : vector<1x8x8xbf16>, vector<1x8x8xbf16>, vector<1x8x8xbf16>, vector<1x8x8xbf16> -> vector<4x8x8xbf16>
    %142 = arith.truncf %121 : vector<8x32xf32> to vector<8x32xbf16>
    %143 = vector.extract_strided_slice %142 {offsets = [0, 0], sizes = [8, 8], strides = [1, 1]} : vector<8x32xbf16> to vector<8x8xbf16>
    %144 = vector.extract_strided_slice %142 {offsets = [0, 8], sizes = [8, 8], strides = [1, 1]} : vector<8x32xbf16> to vector<8x8xbf16>
    %145 = vector.extract_strided_slice %142 {offsets = [0, 16], sizes = [8, 8], strides = [1, 1]} : vector<8x32xbf16> to vector<8x8xbf16>
    %146 = vector.extract_strided_slice %142 {offsets = [0, 24], sizes = [8, 8], strides = [1, 1]} : vector<8x32xbf16> to vector<8x8xbf16>
    %147 = vector.shape_cast %143 : vector<8x8xbf16> to vector<1x8x8xbf16>
    %148 = vector.shape_cast %144 : vector<8x8xbf16> to vector<1x8x8xbf16>
    %149 = vector.shape_cast %145 : vector<8x8xbf16> to vector<1x8x8xbf16>
    %150 = vector.shape_cast %146 : vector<8x8xbf16> to vector<1x8x8xbf16>
    %151 = tpu.concatenate %147, %148, %149, %150 in 0 : vector<1x8x8xbf16>, vector<1x8x8xbf16>, vector<1x8x8xbf16>, vector<1x8x8xbf16> -> vector<4x8x8xbf16>
    %152 = arith.truncf %127 : vector<8x32xf32> to vector<8x32xbf16>
    %153 = vector.extract_strided_slice %152 {offsets = [0, 0], sizes = [8, 8], strides = [1, 1]} : vector<8x32xbf16> to vector<8x8xbf16>
    %154 = vector.extract_strided_slice %152 {offsets = [0, 8], sizes = [8, 8], strides = [1, 1]} : vector<8x32xbf16> to vector<8x8xbf16>
    %155 = vector.extract_strided_slice %152 {offsets = [0, 16], sizes = [8, 8], strides = [1, 1]} : vector<8x32xbf16> to vector<8x8xbf16>
    %156 = vector.extract_strided_slice %152 {offsets = [0, 24], sizes = [8, 8], strides = [1, 1]} : vector<8x32xbf16> to vector<8x8xbf16>
    %157 = vector.shape_cast %153 : vector<8x8xbf16> to vector<1x8x8xbf16>
    %158 = vector.shape_cast %154 : vector<8x8xbf16> to vector<1x8x8xbf16>
    %159 = vector.shape_cast %155 : vector<8x8xbf16> to vector<1x8x8xbf16>
    %160 = vector.shape_cast %156 : vector<8x8xbf16> to vector<1x8x8xbf16>
    %161 = tpu.concatenate %157, %158, %159, %160 in 0 : vector<1x8x8xbf16>, vector<1x8x8xbf16>, vector<1x8x8xbf16>, vector<1x8x8xbf16> -> vector<4x8x8xbf16>
    "tpu.trace_start"() <{level = 10 : i32, message = "hqd,hkd->hqk"}> : () -> ()
    %cst_59 = arith.constant dense<0.000000e+00> : vector<4x8x8xf32>
    %162 = tpu.matmul %141, %151, %cst_59 {dimension_numbers = #tpu.dot_dimension_numbers<[2], [2], [1], [1], [0, 0, 0, 1, 1, 1], [0], [0]>} : vector<4x8x8xbf16>, vector<4x8x8xbf16>, vector<4x8x8xf32> -> vector<4x8x8xf32>
    "tpu.trace_stop"() : () -> ()
    %cst_60 = arith.constant dense<0xFF800000> : vector<4x8xf32>
    %163 = vector.multi_reduction <maximumf>, %162, %cst_60 [2] : vector<4x8x8xf32> to vector<4x8xf32>
    %164 = vector.shape_cast %163 : vector<4x8xf32> to vector<4x8x1xf32>
    %165 = vector.broadcast %164 : vector<4x8x1xf32> to vector<4x8x8xf32>
    %166 = arith.subf %162, %165 : vector<4x8x8xf32>
    %167 = math.exp %166 : vector<4x8x8xf32>
    %cst_61 = arith.constant dense<0.000000e+00> : vector<4x8xf32>
    %168 = vector.multi_reduction <add>, %167, %cst_61 [2] : vector<4x8x8xf32> to vector<4x8xf32>
    %169 = vector.shape_cast %168 : vector<4x8xf32> to vector<4x8x1xf32>
    %170 = tpu.reciprocal %169 {approx = true} : vector<4x8x1xf32> -> vector<4x8x1xf32>
    %171 = vector.broadcast %170 : vector<4x8x1xf32> to vector<4x8x8xf32>
    %172 = arith.mulf %167, %171 : vector<4x8x8xf32>
    %173 = arith.truncf %172 : vector<4x8x8xf32> to vector<4x8x8xbf16>
    "tpu.trace_start"() <{level = 10 : i32, message = "hqk,hkd->hqd"}> : () -> ()
    %cst_62 = arith.constant dense<0.000000e+00> : vector<4x8x8xf32>
    %174 = tpu.matmul %173, %161, %cst_62 {dimension_numbers = #tpu.dot_dimension_numbers<[2], [1], [1], [2], [0, 0, 0, 1, 1, 2], [0], [0]>} : vector<4x8x8xbf16>, vector<4x8x8xbf16>, vector<4x8x8xf32> -> vector<4x8x8xf32>
    "tpu.trace_stop"() : () -> ()
    %175 = arith.truncf %174 : vector<4x8x8xf32> to vector<4x8x8xbf16>
    %176 = vector.extract_strided_slice %175 {offsets = [0, 0, 0], sizes = [1, 8, 8], strides = [1, 1, 1]} : vector<4x8x8xbf16> to vector<1x8x8xbf16>
    %177 = vector.shape_cast %176 : vector<1x8x8xbf16> to vector<8x8xbf16>
    %178 = vector.extract_strided_slice %175 {offsets = [1, 0, 0], sizes = [1, 8, 8], strides = [1, 1, 1]} : vector<4x8x8xbf16> to vector<1x8x8xbf16>
    %179 = vector.shape_cast %178 : vector<1x8x8xbf16> to vector<8x8xbf16>
    %180 = vector.extract_strided_slice %175 {offsets = [2, 0, 0], sizes = [1, 8, 8], strides = [1, 1, 1]} : vector<4x8x8xbf16> to vector<1x8x8xbf16>
    %181 = vector.shape_cast %180 : vector<1x8x8xbf16> to vector<8x8xbf16>
    %182 = vector.extract_strided_slice %175 {offsets = [3, 0, 0], sizes = [1, 8, 8], strides = [1, 1, 1]} : vector<4x8x8xbf16> to vector<1x8x8xbf16>
    %183 = vector.shape_cast %182 : vector<1x8x8xbf16> to vector<8x8xbf16>
    %184 = tpu.concatenate %177, %179, %181, %183 in 1 : vector<8x8xbf16>, vector<8x8xbf16>, vector<8x8xbf16>, vector<8x8xbf16> -> vector<8x32xbf16>
    %cst_63 = arith.constant dense<0.000000e+00> : vector<8x32xf32>
    %185 = tpu.matmul %184, %128, %cst_63 {dimension_numbers = #tpu.dot_dimension_numbers<[1], [0], [0], [1], [0, 0, 1, 1], [], []>} : vector<8x32xbf16>, vector<32x32xbf16>, vector<8x32xf32> -> vector<8x32xf32>
    %186 = vector.broadcast %129 : vector<1x32xf32> to vector<8x32xf32>
    %187 = arith.addf %185, %186 : vector<8x32xf32>
    %188 = arith.addf %107, %187 : vector<8x32xf32>
    %c0_64 = arith.constant 0 : index
    %c0_65 = arith.constant 0 : index
    %189 = vector.load %arg25[%c0_64, %c0_65] : memref<1x32xf32, #tpu.memory_space<vmem>>, vector<1x32xf32>
    %c0_66 = arith.constant 0 : index
    %c0_67 = arith.constant 0 : index
    %190 = vector.load %arg26[%c0_66, %c0_67] : memref<1x32xf32, #tpu.memory_space<vmem>>, vector<1x32xf32>
    %cst_68 = arith.constant dense<0.000000e+00> : vector<8xf32>
    %191 = vector.multi_reduction <add>, %188, %cst_68 [1] : vector<8x32xf32> to vector<8xf32>
    %192 = vector.shape_cast %191 : vector<8xf32> to vector<8x1xf32>
    %cst_69 = arith.constant 3.200000e+01 : f32
    %193 = vector.broadcast %cst_69 : f32 to vector<8x1xf32>
    %194 = arith.divf %192, %193 : vector<8x1xf32>
    %195 = vector.broadcast %194 : vector<8x1xf32> to vector<8x32xf32>
    %196 = arith.subf %188, %195 : vector<8x32xf32>
    %197 = arith.mulf %196, %196 : vector<8x32xf32>
    %cst_70 = arith.constant dense<0.000000e+00> : vector<8xf32>
    %198 = vector.multi_reduction <add>, %197, %cst_70 [1] : vector<8x32xf32> to vector<8xf32>
    %199 = vector.shape_cast %198 : vector<8xf32> to vector<8x1xf32>
    %cst_71 = arith.constant 3.200000e+01 : f32
    %200 = vector.broadcast %cst_71 : f32 to vector<8x1xf32>
    %201 = arith.divf %199, %200 : vector<8x1xf32>
    %202 = vector.broadcast %194 : vector<8x1xf32> to vector<8x32xf32>
    %203 = arith.subf %188, %202 : vector<8x32xf32>
    %cst_72 = arith.constant 9.99999974E-6 : f32
    %204 = vector.broadcast %cst_72 : f32 to vector<8x1xf32>
    %205 = arith.addf %201, %204 : vector<8x1xf32>
    %206 = math.rsqrt %205 : vector<8x1xf32>
    %207 = vector.broadcast %206 : vector<8x1xf32> to vector<8x32xf32>
    %208 = arith.mulf %203, %207 : vector<8x32xf32>
    %209 = vector.broadcast %189 : vector<1x32xf32> to vector<8x32xf32>
    %210 = arith.mulf %208, %209 : vector<8x32xf32>
    %211 = vector.broadcast %190 : vector<1x32xf32> to vector<8x32xf32>
    %212 = arith.addf %210, %211 : vector<8x32xf32>
    %c0_73 = arith.constant 0 : index
    %c0_74 = arith.constant 0 : index
    %213 = vector.load %arg19[%c0_73, %c0_74] : memref<32x64xbf16, #tpu.memory_space<vmem>>, vector<32x64xbf16>
    %c0_75 = arith.constant 0 : index
    %c0_76 = arith.constant 0 : index
    %214 = vector.load %arg20[%c0_75, %c0_76] : memref<1x64xf32, #tpu.memory_space<vmem>>, vector<1x64xf32>
    %215 = arith.truncf %212 : vector<8x32xf32> to vector<8x32xbf16>
    %cst_77 = arith.constant dense<0.000000e+00> : vector<8x64xf32>
    %216 = tpu.matmul %215, %213, %cst_77 {dimension_numbers = #tpu.dot_dimension_numbers<[1], [0], [0], [1], [0, 0, 1, 1], [], []>} : vector<8x32xbf16>, vector<32x64xbf16>, vector<8x64xf32> -> vector<8x64xf32>
    %217 = vector.broadcast %214 : vector<1x64xf32> to vector<8x64xf32>
    %218 = arith.addf %216, %217 : vector<8x64xf32>
    %cst_78 = arith.constant 0.000000e+00 : f32
    %219 = vector.broadcast %cst_78 : f32 to vector<8x64xf32>
    %220 = arith.maximumf %218, %219 : vector<8x64xf32>
    %c0_79 = arith.constant 0 : index
    %c0_80 = arith.constant 0 : index
    %221 = vector.load %arg21[%c0_79, %c0_80] : memref<64x32xbf16, #tpu.memory_space<vmem>>, vector<64x32xbf16>
    %c0_81 = arith.constant 0 : index
    %c0_82 = arith.constant 0 : index
    %222 = vector.load %arg22[%c0_81, %c0_82] : memref<1x32xf32, #tpu.memory_space<vmem>>, vector<1x32xf32>
    %223 = arith.truncf %220 : vector<8x64xf32> to vector<8x64xbf16>
    %cst_83 = arith.constant dense<0.000000e+00> : vector<8x32xf32>
    %224 = tpu.matmul %223, %221, %cst_83 {dimension_numbers = #tpu.dot_dimension_numbers<[1], [0], [0], [1], [0, 0, 1, 1], [], []>} : vector<8x64xbf16>, vector<64x32xbf16>, vector<8x32xf32> -> vector<8x32xf32>
    %225 = vector.broadcast %222 : vector<1x32xf32> to vector<8x32xf32>
    %226 = arith.addf %224, %225 : vector<8x32xf32>
    %227 = arith.addf %212, %226 : vector<8x32xf32>
    %c0_84 = arith.constant 0 : index
    %c0_85 = arith.constant 0 : index
    %228 = vector.load %arg27[%c0_84, %c0_85] : memref<1x32xf32, #tpu.memory_space<vmem>>, vector<1x32xf32>
    %c0_86 = arith.constant 0 : index
    %c0_87 = arith.constant 0 : index
    %229 = vector.load %arg28[%c0_86, %c0_87] : memref<1x32xf32, #tpu.memory_space<vmem>>, vector<1x32xf32>
    %cst_88 = arith.constant dense<0.000000e+00> : vector<8xf32>
    %230 = vector.multi_reduction <add>, %227, %cst_88 [1] : vector<8x32xf32> to vector<8xf32>
    %231 = vector.shape_cast %230 : vector<8xf32> to vector<8x1xf32>
    %cst_89 = arith.constant 3.200000e+01 : f32
    %232 = vector.broadcast %cst_89 : f32 to vector<8x1xf32>
    %233 = arith.divf %231, %232 : vector<8x1xf32>
    %234 = vector.broadcast %233 : vector<8x1xf32> to vector<8x32xf32>
    %235 = arith.subf %227, %234 : vector<8x32xf32>
    %236 = arith.mulf %235, %235 : vector<8x32xf32>
    %cst_90 = arith.constant dense<0.000000e+00> : vector<8xf32>
    %237 = vector.multi_reduction <add>, %236, %cst_90 [1] : vector<8x32xf32> to vector<8xf32>
    %238 = vector.shape_cast %237 : vector<8xf32> to vector<8x1xf32>
    %cst_91 = arith.constant 3.200000e+01 : f32
    %239 = vector.broadcast %cst_91 : f32 to vector<8x1xf32>
    %240 = arith.divf %238, %239 : vector<8x1xf32>
    %241 = vector.broadcast %233 : vector<8x1xf32> to vector<8x32xf32>
    %242 = arith.subf %227, %241 : vector<8x32xf32>
    %cst_92 = arith.constant 9.99999974E-6 : f32
    %243 = vector.broadcast %cst_92 : f32 to vector<8x1xf32>
    %244 = arith.addf %240, %243 : vector<8x1xf32>
    %245 = math.rsqrt %244 : vector<8x1xf32>
    %246 = vector.broadcast %245 : vector<8x1xf32> to vector<8x32xf32>
    %247 = arith.mulf %242, %246 : vector<8x32xf32>
    %248 = vector.broadcast %228 : vector<1x32xf32> to vector<8x32xf32>
    %249 = arith.mulf %247, %248 : vector<8x32xf32>
    %250 = vector.broadcast %229 : vector<1x32xf32> to vector<8x32xf32>
    %251 = arith.addf %249, %250 : vector<8x32xf32>
    %c0_93 = arith.constant 0 : index
    %c0_94 = arith.constant 0 : index
    %c0_95 = arith.constant 0 : index
    %252 = vector.load %arg29[%c0_93, %c0_94, %c0_95] : memref<1x8x32xf32, #tpu.memory_space<vmem>>, vector<1x8x32xf32>
    %253 = vector.shape_cast %252 : vector<1x8x32xf32> to vector<8x32xf32>
    %254 = vector.shape_cast %251 : vector<8x32xf32> to vector<1x8x32xf32>
    tpu.vector_store %arg29[%c0_93, %c0_94, %c0_95], %254 {strides = array<i32>} : memref<1x8x32xf32, #tpu.memory_space<vmem>>, vector<1x8x32xf32>,
    return
  }
  func.func @transform_0(%arg0: i32) -> (i32, i32, i32) {
    %c0_i32 = arith.constant 0 : i32
    %c0_i32_0 = arith.constant 0 : i32
    %c0_i32_1 = arith.constant 0 : i32
    return %arg0, %c0_i32, %c0_i32_0 : i32, i32, i32
  }
  func.func @transform_1(%arg0: i32) -> (i32, i32, i32) {
    %c0_i32 = arith.constant 0 : i32
    %c0_i32_0 = arith.constant 0 : i32
    %c0_i32_1 = arith.constant 0 : i32
    return %arg0, %c0_i32, %c0_i32_0 : i32, i32, i32
  }
  func.func @transform_2(%arg0: i32) -> (i32, i32, i32) {
    %c0_i32 = arith.constant 0 : i32
    %c0_i32_0 = arith.constant 0 : i32
    %c0_i32_1 = arith.constant 0 : i32
    return %arg0, %c0_i32, %c0_i32_0 : i32, i32, i32
  }
  func.func @transform_3(%arg0: i32) -> (i32, i32, i32) {
    %c0_i32 = arith.constant 0 : i32
    %c0_i32_0 = arith.constant 0 : i32
    %c0_i32_1 = arith.constant 0 : i32
    return %arg0, %c0_i32, %c0_i32_0 : i32, i32, i32
  }
  func.func @transform_4(%arg0: i32) -> (i32, i32) {
    %c0_i32 = arith.constant 0 : i32
    %c0_i32_0 = arith.constant 0 : i32
    %c0_i32_1 = arith.constant 0 : i32
    return %c0_i32, %c0_i32_0 : i32, i32
  }
  func.func @transform_5(%arg0: i32) -> (i32, i32) {
    %c0_i32 = arith.constant 0 : i32
    %c0_i32_0 = arith.constant 0 : i32
    %c0_i32_1 = arith.constant 0 : i32
    return %c0_i32, %c0_i32_0 : i32, i32
  }
  func.func @transform_6(%arg0: i32) -> (i32, i32) {
    %c0_i32 = arith.constant 0 : i32
    %c0_i32_0 = arith.constant 0 : i32
    %c0_i32_1 = arith.constant 0 : i32
    return %c0_i32, %c0_i32_0 : i32, i32
  }
  func.func @transform_7(%arg0: i32) -> (i32, i32) {
    %c0_i32 = arith.constant 0 : i32
    %c0_i32_0 = arith.constant 0 : i32
    %c0_i32_1 = arith.constant 0 : i32
    return %c0_i32, %c0_i32_0 : i32, i32
  }
  func.func @transform_8(%arg0: i32) -> (i32, i32) {
    %c0_i32 = arith.constant 0 : i32
    %c0_i32_0 = arith.constant 0 : i32
    %c0_i32_1 = arith.constant 0 : i32
    return %c0_i32, %c0_i32_0 : i32, i32
  }
  func.func @transform_9(%arg0: i32) -> (i32, i32) {
    %c0_i32 = arith.constant 0 : i32
    %c0_i32_0 = arith.constant 0 : i32
    %c0_i32_1 = arith.constant 0 : i32
    return %c0_i32, %c0_i32_0 : i32, i32
  }
  func.func @transform_10(%arg0: i32) -> (i32, i32) {
    %c0_i32 = arith.constant 0 : i32
    %c0_i32_0 = arith.constant 0 : i32
    %c0_i32_1 = arith.constant 0 : i32
    return %c0_i32, %c0_i32_0 : i32, i32
  }
  func.func @transform_11(%arg0: i32) -> (i32, i32) {
    %c0_i32 = arith.constant 0 : i32
    %c0_i32_0 = arith.constant 0 : i32
    %c0_i32_1 = arith.constant 0 : i32
    return %c0_i32, %c0_i32_0 : i32, i32
  }
  func.func @transform_12(%arg0: i32) -> (i32, i32) {
    %c0_i32 = arith.constant 0 : i32
    %c0_i32_0 = arith.constant 0 : i32
    %c0_i32_1 = arith.constant 0 : i32
    return %c0_i32, %c0_i32_0 : i32, i32
  }
  func.func @transform_13(%arg0: i32) -> (i32, i32) {
    %c0_i32 = arith.constant 0 : i32
    %c0_i32_0 = arith.constant 0 : i32
    %c0_i32_1 = arith.constant 0 : i32
    return %c0_i32, %c0_i32_0 : i32, i32
  }
  func.func @transform_14(%arg0: i32) -> (i32, i32) {
    %c0_i32 = arith.constant 0 : i32
    %c0_i32_0 = arith.constant 0 : i32
    %c0_i32_1 = arith.constant 0 : i32
    return %c0_i32, %c0_i32_0 : i32, i32
  }
  func.func @transform_15(%arg0: i32) -> (i32, i32) {
    %c0_i32 = arith.constant 0 : i32
    %c0_i32_0 = arith.constant 0 : i32
    %c0_i32_1 = arith.constant 0 : i32
    return %c0_i32, %c0_i32_0 : i32, i32
  }
  func.func @transform_16(%arg0: i32) -> (i32, i32) {
    %c0_i32 = arith.constant 0 : i32
    %c0_i32_0 = arith.constant 0 : i32
    %c0_i32_1 = arith.constant 0 : i32
    return %c0_i32, %c0_i32_0 : i32, i32
  }
  func.func @transform_17(%arg0: i32) -> (i32, i32) {
    %c0_i32 = arith.constant 0 : i32
    %c0_i32_0 = arith.constant 0 : i32
    %c0_i32_1 = arith.constant 0 : i32
    return %c0_i32, %c0_i32_0 : i32, i32
  }
  func.func @transform_18(%arg0: i32) -> (i32, i32) {
    %c0_i32 = arith.constant 0 : i32
    %c0_i32_0 = arith.constant 0 : i32
    %c0_i32_1 = arith.constant 0 : i32
    return %c0_i32, %c0_i32_0 : i32, i32
  }
  func.func @transform_19(%arg0: i32) -> (i32, i32) {
    %c0_i32 = arith.constant 0 : i32
    %c0_i32_0 = arith.constant 0 : i32
    %c0_i32_1 = arith.constant 0 : i32
    return %c0_i32, %c0_i32_0 : i32, i32
  }
  func.func @transform_20(%arg0: i32) -> (i32, i32) {
    %c0_i32 = arith.constant 0 : i32
    %c0_i32_0 = arith.constant 0 : i32
    %c0_i32_1 = arith.constant 0 : i32
    return %c0_i32, %c0_i32_0 : i32, i32
  }
  func.func @transform_21(%arg0: i32) -> (i32, i32) {
    %c0_i32 = arith.constant 0 : i32
    %c0_i32_0 = arith.constant 0 : i32
    %c0_i32_1 = arith.constant 0 : i32
    return %c0_i32, %c0_i32_0 : i32, i32
  }
  func.func @transform_22(%arg0: i32) -> (i32, i32) {
    %c0_i32 = arith.constant 0 : i32
    %c0_i32_0 = arith.constant 0 : i32
    %c0_i32_1 = arith.constant 0 : i32
    return %c0_i32, %c0_i32_0 : i32, i32
  }
  func.func @transform_23(%arg0: i32) -> (i32, i32) {
    %c0_i32 = arith.constant 0 : i32
    %c0_i32_0 = arith.constant 0 : i32
    %c0_i32_1 = arith.constant 0 : i32
    return %c0_i32, %c0_i32_0 : i32, i32
  }
  func.func @transform_24(%arg0: i32) -> (i32, i32) {
    %c0_i32 = arith.constant 0 : i32
    %c0_i32_0 = arith.constant 0 : i32
    %c0_i32_1 = arith.constant 0 : i32
    return %c0_i32, %c0_i32_0 : i32, i32
  }
  func.func @transform_25(%arg0: i32) -> (i32, i32) {
    %c0_i32 = arith.constant 0 : i32
    %c0_i32_0 = arith.constant 0 : i32
    %c0_i32_1 = arith.constant 0 : i32
    return %c0_i32, %c0_i32_0 : i32, i32
  }
  func.func @transform_26(%arg0: i32) -> (i32, i32) {
    %c0_i32 = arith.constant 0 : i32
    %c0_i32_0 = arith.constant 0 : i32
    %c0_i32_1 = arith.constant 0 : i32
    return %c0_i32, %c0_i32_0 : i32, i32
  }
  func.func @transform_27(%arg0: i32) -> (i32, i32) {
    %c0_i32 = arith.constant 0 : i32
    %c0_i32_0 = arith.constant 0 : i32
    %c0_i32_1 = arith.constant 0 : i32
    return %c0_i32, %c0_i32_0 : i32, i32
  }
  func.func @transform_28(%arg0: i32) -> (i32, i32, i32) {
    %c0_i32 = arith.constant 0 : i32
    %c0_i32_0 = arith.constant 0 : i32
    %c0_i32_1 = arith.constant 0 : i32
    return %arg0, %c0_i32, %c0_i32_0 : i32, i32, i32
  }
}

</mosaic_0001>

<llo_original>
// kernel: tpu_custom_call.1
$region0: #{tpu_custom_call.1}
  #allocation0 [shape = 'u32[]', space=smem, size = 0x4, offset = 0x4, fixed_abs, tag = 'smem constant byte address 0x4 - core index']
  #allocation1 [shape = 'u32[144,128]{1,0:T(1,128)}', space=vmem, size = 0x12000, scoped, tag = 'internal scratch']
  %s0 = inlined_call_operand.hbm [shape: f32[2,8,32], index: 0, kind: input, shape index: {}]
  %s1 = inlined_call_operand.hbm [shape: f32[2,8,32], index: 1, kind: input, shape index: {}]
  %s2 = inlined_call_operand.hbm [shape: f32[2,8,32], index: 2, kind: input, shape index: {}]
  %s3 = inlined_call_operand.hbm [shape: f32[2,8,32], index: 3, kind: input, shape index: {}]
  %s4 = inlined_call_operand.hbm [shape: bf16[32,64], index: 4, kind: input, shape index: {}]
  %s5 = inlined_call_operand.hbm [shape: f32[1,64], index: 5, kind: input, shape index: {}]
  %s6 = inlined_call_operand.hbm [shape: bf16[32,32], index: 6, kind: input, shape index: {}]
  %s7 = inlined_call_operand.hbm [shape: f32[1,32], index: 7, kind: input, shape index: {}]
  %s8 = inlined_call_operand.hbm [shape: bf16[32,32], index: 8, kind: input, shape index: {}]
  %s9 = inlined_call_operand.hbm [shape: f32[1,32], index: 9, kind: input, shape index: {}]
  %s10 = inlined_call_operand.hbm [shape: bf16[32,32], index: 10, kind: input, shape index: {}]
  %s11 = inlined_call_operand.hbm [shape: f32[1,32], index: 11, kind: input, shape index: {}]
  %s12 = inlined_call_operand.hbm [shape: bf16[32,32], index: 12, kind: input, shape index: {}]
  %s13 = inlined_call_operand.hbm [shape: f32[1,32], index: 13, kind: input, shape index: {}]
  %s14 = inlined_call_operand.hbm [shape: bf16[32,32], index: 14, kind: input, shape index: {}]
  %s15 = inlined_call_operand.hbm [shape: f32[1,32], index: 15, kind: input, shape index: {}]
  %s16 = inlined_call_operand.hbm [shape: bf16[32,32], index: 16, kind: input, shape index: {}]
  %s17 = inlined_call_operand.hbm [shape: f32[1,32], index: 17, kind: input, shape index: {}]
  %s18 = inlined_call_operand.hbm [shape: bf16[32,64], index: 18, kind: input, shape index: {}]
  %s19 = inlined_call_operand.hbm [shape: f32[1,64], index: 19, kind: input, shape index: {}]
  %s20 = inlined_call_operand.hbm [shape: bf16[64,32], index: 20, kind: input, shape index: {}]
  %s21 = inlined_call_operand.hbm [shape: f32[1,32], index: 21, kind: input, shape index: {}]
  %s22 = inlined_call_operand.hbm [shape: f32[1,32], index: 22, kind: input, shape index: {}]
  %s23 = inlined_call_operand.hbm [shape: f32[1,32], index: 23, kind: input, shape index: {}]
  %s24 = inlined_call_operand.hbm [shape: f32[1,32], index: 24, kind: input, shape index: {}]
  %s25 = inlined_call_operand.hbm [shape: f32[1,32], index: 25, kind: input, shape index: {}]
  %s26 = inlined_call_operand.hbm [shape: f32[1,32], index: 26, kind: input, shape index: {}]
  %s27 = inlined_call_operand.hbm [shape: f32[1,32], index: 27, kind: input, shape index: {}]
  %s28 = inlined_call_operand.hbm [shape: f32[2,8,32], index: 28, kind: output, shape index: {}]
  %s29 = sld [smem:[#allocation0]]
  $region257: #{tpu_custom_call.1} parent=0
    _
  %s31 = ssub.s32 1, %s29
  %s32 = scalar_select 0, %s31, %s29
  $region1: #{tpu_custom_call.1} parent=0
    #allocation2 [shape = 'u8[8192]{0}', space=vmem, size = 0x2000, scoped, tag = 'input window, operand 0']
    #allocation3 [shape = 's32[2]{0}', space=sflag, size = 0x8, scoped, tag = 'scoped memory for tpu_custom_call.1']
    #allocation4 [shape = 's32[2]{0}', space=sflag, size = 0x8, scoped, tag = 'scoped memory for tpu_custom_call.1']
    #allocation5 [shape = 'u8[8192]{0}', space=vmem, size = 0x2000, scoped, tag = 'input window, operand 1']
    #allocation6 [shape = 's32[2]{0}', space=sflag, size = 0x8, scoped, tag = 'scoped memory for tpu_custom_call.1']
    #allocation7 [shape = 'u8[8192]{0}', space=vmem, size = 0x2000, scoped, tag = 'input window, operand 2']
    #allocation8 [shape = 'u8[8192]{0}', space=vmem, size = 0x2000, scoped, tag = 'input window, operand 3']
    #allocation9 [shape = 's32[2]{0}', space=sflag, size = 0x8, scoped, tag = 'scoped memory for tpu_custom_call.1']
    #allocation10 [shape = 'u8[8192]{0}', space=vmem, size = 0x2000, scoped, tag = 'input window, operand 4, single buffered']
    #allocation11 [shape = 'u8[512]{0}', space=vmem, size = 0x400, scoped, tag = 'input window, operand 5, single buffered']
    #allocation12 [shape = 's32[1]{0}', space=sflag, size = 0x4, scoped, tag = 'scoped memory for tpu_custom_call.1']
    #allocation13 [shape = 'u8[8192]{0}', space=vmem, size = 0x2000, scoped, tag = 'input window, operand 6, single buffered']
    #allocation14 [shape = 'u8[512]{0}', space=vmem, size = 0x400, scoped, tag = 'input window, operand 7, single buffered']
    #allocation15 [shape = 's32[1]{0}', space=sflag, size = 0x4, scoped, tag = 'scoped memory for tpu_custom_call.1']
    #allocation16 [shape = 'u8[8192]{0}', space=vmem, size = 0x2000, scoped, tag = 'input window, operand 8, single buffered']
    #allocation17 [shape = 'u8[512]{0}', space=vmem, size = 0x400, scoped, tag = 'input window, operand 9, single buffered']
    #allocation18 [shape = 's32[1]{0}', space=sflag, size = 0x4, scoped, tag = 'scoped memory for tpu_custom_call.1']
    #allocation19 [shape = 'u8[8192]{0}', space=vmem, size = 0x2000, scoped, tag = 'input window, operand 10, single buffered']
    #allocation20 [shape = 'u8[512]{0}', space=vmem, size = 0x400, scoped, tag = 'input window, operand 11, single buffered']
    #allocation21 [shape = 's32[1]{0}', space=sflag, size = 0x4, scoped, tag = 'scoped memory for tpu_custom_call.1']
    #allocation22 [shape = 'u8[8192]{0}', space=vmem, size = 0x2000, scoped, tag = 'input window, operand 12, single buffered']
    #allocation23 [shape = 'u8[512]{0}', space=vmem, size = 0x400, scoped, tag = 'input window, operand 13, single buffered']
    #allocation24 [shape = 's32[1]{0}', space=sflag, size = 0x4, scoped, tag = 'scoped memory for tpu_custom_call.1']
    #allocation25 [shape = 'u8[8192]{0}', space=vmem, size = 0x2000, scoped, tag = 'input window, operand 14, single buffered']
    #allocation26 [shape = 'u8[512]{0}', space=vmem, size = 0x400, scoped, tag = 'input window, operand 15, single buffered']
    #allocation27 [shape = 's32[1]{0}', space=sflag, size = 0x4, scoped, tag = 'scoped memory for tpu_custom_call.1']
    #allocation28 [shape = 'u8[8192]{0}', space=vmem, size = 0x2000, scoped, tag = 'input window, operand 16, single buffered']
    #allocation29 [shape = 'u8[512]{0}', space=vmem, size = 0x400, scoped, tag = 'input window, operand 17, single buffered']
    #allocation30 [shape = 's32[1]{0}', space=sflag, size = 0x4, scoped, tag = 'scoped memory for tpu_custom_call.1']
    #allocation31 [shape = 'u8[8192]{0}', space=vmem, size = 0x2000, scoped, tag = 'input window, operand 18, single buffered']
    #allocation32 [shape = 'u8[512]{0}', space=vmem, size = 0x400, scoped, tag = 'input window, operand 19, single buffered']
    #allocation33 [shape = 's32[1]{0}', space=sflag, size = 0x4, scoped, tag = 'scoped memory for tpu_custom_call.1']
    #allocation34 [shape = 'u8[16384]{0}', space=vmem, size = 0x4000, scoped, tag = 'input window, operand 20, single buffered']
    #allocation35 [shape = 'u8[512]{0}', space=vmem, size = 0x400, scoped, tag = 'input window, operand 21, single buffered']
    #allocation36 [shape = 's32[1]{0}', space=sflag, size = 0x4, scoped, tag = 'scoped memory for tpu_custom_call.1']
    #allocation37 [shape = 'u8[512]{0}', space=vmem, size = 0x400, scoped, tag = 'input window, operand 22, single buffered']
    #allocation38 [shape = 'u8[512]{0}', space=vmem, size = 0x400, scoped, tag = 'input window, operand 23, single buffered']
    #allocation39 [shape = 's32[1]{0}', space=sflag, size = 0x4, scoped, tag = 'scoped memory for tpu_custom_call.1']
    #allocation40 [shape = 'u8[512]{0}', space=vmem, size = 0x400, scoped, tag = 'input window, operand 24, single buffered']
    #allocation41 [shape = 'u8[512]{0}', space=vmem, size = 0x400, scoped, tag = 'input window, operand 25, single buffered']
    #allocation42 [shape = 's32[1]{0}', space=sflag, size = 0x4, scoped, tag = 'scoped memory for tpu_custom_call.1']
    #allocation43 [shape = 'u8[512]{0}', space=vmem, size = 0x400, scoped, tag = 'input window, operand 26, single buffered']
    #allocation44 [shape = 'u8[512]{0}', space=vmem, size = 0x400, scoped, tag = 'input window, operand 27, single buffered']
    #allocation45 [shape = 's32[1]{0}', space=sflag, size = 0x4, scoped, tag = 'scoped memory for tpu_custom_call.1']
    #allocation46 [shape = 'u8[8192]{0}', space=vmem, size = 0x2000, scoped, tag = 'output window, operand 0']
    %33 = vsyncpa [#allocation3], 0
    %s34 = scalar_lea.sflag [#allocation3], 1
    %35 = vsyncpa %s34, 0
    %36 = vsyncpa [#allocation6], 0
    %s37 = scalar_lea.sflag [#allocation6], 1
    %38 = vsyncpa %s37, 0
    %39 = vsyncpa [#allocation9], 0
    %s40 = scalar_lea.sflag [#allocation9], 1
    %41 = vsyncpa %s40, 0
    %42 = vsyncpa [#allocation12], 0
    %43 = vsyncpa [#allocation15], 0
    %44 = vsyncpa [#allocation18], 0
    %45 = vsyncpa [#allocation21], 0
    %46 = vsyncpa [#allocation24], 0
    %47 = vsyncpa [#allocation27], 0
    %48 = vsyncpa [#allocation30], 0
    %49 = vsyncpa [#allocation33], 0
    %50 = vsyncpa [#allocation36], 0
    %51 = vsyncpa [#allocation39], 0
    %52 = vsyncpa [#allocation42], 0
    %53 = vsyncpa [#allocation45], 0
    %54 = vsyncpa [#allocation4], 0
    %s55 = scalar_lea.sflag [#allocation4], 1
    %56 = vsyncpa %s55, 0
    loop: start=0, step=1, limit=4
    $region2: #{tpu_custom_call.1} parent=1 // loop_pre_header
      _
    $region3: #{tpu_custom_call.1} parent=1 // loop_header
      %s58 = sphi 0, %s62
      %p59 = scmp.ge.s32.totalorder %s58, 4
      %s68 = sphi 0, %s70
      %s71 = sphi 0, %s68
      %s72 = sphi 0, %s71
      %s88 = sphi 0, %s72
      %s94 = sphi 0, %s96
      %s97 = sphi 0, %s94
      %s98 = sphi 0, %s97
      %s114 = sphi 0, %s98
      %s120 = sphi 0, %s122
      %s123 = sphi 0, %s120
      %s124 = sphi 0, %s123
      %s140 = sphi 0, %s124
      %s146 = sphi 0, %s148
      %s149 = sphi 0, %s146
      %s150 = sphi 0, %s149
      %s166 = sphi 0, %s150
      %s170 = sphi 0, %s170
      %s172 = sphi 0, %s170
      %s173 = sphi 0, %s172
      %s187 = sphi 0, %s173
      %s191 = sphi 0, %s191
      %s193 = sphi 0, %s191
      %s194 = sphi 0, %s193
      %s208 = sphi 0, %s194
      %s212 = sphi 0, %s212
      %s214 = sphi 0, %s212
      %s215 = sphi 0, %s214
      %s229 = sphi 0, %s215
      %s233 = sphi 0, %s233
      %s235 = sphi 0, %s233
      %s236 = sphi 0, %s235
      %s250 = sphi 0, %s236
      %s254 = sphi 0, %s254
      %s256 = sphi 0, %s254
      %s257 = sphi 0, %s256
      %s271 = sphi 0, %s257
      %s275 = sphi 0, %s275
      %s277 = sphi 0, %s275
      %s278 = sphi 0, %s277
      %s292 = sphi 0, %s278
      %s296 = sphi 0, %s296
      %s298 = sphi 0, %s296
      %s299 = sphi 0, %s298
      %s313 = sphi 0, %s299
      %s317 = sphi 0, %s317
      %s319 = sphi 0, %s317
      %s320 = sphi 0, %s319
      %s334 = sphi 0, %s320
      %s338 = sphi 0, %s338
      %s340 = sphi 0, %s338
      %s341 = sphi 0, %s340
      %s355 = sphi 0, %s341
      %s359 = sphi 0, %s359
      %s361 = sphi 0, %s359
      %s362 = sphi 0, %s361
      %s376 = sphi 0, %s362
      %s380 = sphi 0, %s380
      %s382 = sphi 0, %s380
      %s383 = sphi 0, %s382
      %s397 = sphi 0, %s383
      %s401 = sphi 0, %s401
      %s403 = sphi 0, %s401
      %s404 = sphi 0, %s403
      %s418 = sphi 0, %s404
      %s422 = sphi 0, %s422
      %s424 = sphi 0, %s422
      %s425 = sphi 0, %s424
      %s439 = sphi 0, %s425
      %s443 = sphi 0, %s443
      %s445 = sphi 0, %s443
      %s446 = sphi 0, %s445
      %s460 = sphi 0, %s446
      %s464 = sphi 0, %s464
      %s466 = sphi 0, %s464
      %s467 = sphi 0, %s466
      %s481 = sphi 0, %s467
      %s485 = sphi 0, %s485
      %s487 = sphi 0, %s485
      %s488 = sphi 0, %s487
      %s502 = sphi 0, %s488
      %s506 = sphi 0, %s506
      %s508 = sphi 0, %s506
      %s509 = sphi 0, %s508
      %s523 = sphi 0, %s509
      %s527 = sphi 0, %s527
      %s529 = sphi 0, %s527
      %s530 = sphi 0, %s529
      %s544 = sphi 0, %s530
      %s548 = sphi 0, %s548
      %s550 = sphi 0, %s548
      %s551 = sphi 0, %s550
      %s565 = sphi 0, %s551
      %s569 = sphi 0, %s569
      %s571 = sphi 0, %s569
      %s572 = sphi 0, %s571
      %s586 = sphi 0, %s572
      %s590 = sphi 0, %s590
      %s592 = sphi 0, %s590
      %s593 = sphi 0, %s592
      %s607 = sphi 0, %s593
      %s611 = sphi 0, %s611
      %s613 = sphi 0, %s611
      %s614 = sphi 0, %s613
      %s628 = sphi 0, %s614
      %s632 = sphi 0, %s632
      %s634 = sphi 0, %s632
      %s635 = sphi 0, %s634
      %s649 = sphi 0, %s635
      %s653 = sphi 0, %s653
      %s655 = sphi 0, %s653
      %s656 = sphi 0, %s655
      %s670 = sphi 0, %s656
      %s676 = sphi 0, %s678
      %s679 = sphi 0, %s676
      %s680 = sphi 0, %s679
      %s696 = sphi 0, %s680
    $region4: #{tpu_custom_call.1} parent=1 // loop_header_branch
      %61 = sbr.rel (%p59) target = $region8
    $region5: #{tpu_custom_call.1} parent=1 // loop_body
      %s63 = ssub.s32 %s58, 1
      %s64 = ssub.s32 %s58, 2
      %s65 = sadd.s32 %s58, 1
      %s66 = ssub.s32 %s58, %s65
      %p67 = scmp.eq.s32.totalorder %s66, 0
      %s69 = sadd.s32 %s68, 1
      %s70 = scalar_select %p67, %s68, %s69
      %p73 = pneg %p67
      %p74 = scmp.eq.s32.totalorder %s58, 1
      %p75 = por %p73, %p74
      %p76 = scmp.ne.s32.totalorder %s68, %s71
      %p77 = scmp.eq.s32.totalorder %s58, 0
      %p78 = por %p76, %p77
      %p79 = scmp.ne.s32.totalorder %s68, %s71
      %p80 = scmp.eq.s32.totalorder %s63, 1
      %p81 = por %p79, %p80
      %p82 = scmp.ne.s32.totalorder %s71, %s72
      %p83 = scmp.eq.s32.totalorder %s63, 0
      %p84 = por %p82, %p83
      %p85 = scmp.ne.s32.totalorder %s71, %s72
      %p86 = scmp.eq.s32.totalorder %s64, 1
      %p87 = por %p85, %p86
      %p89 = scmp.ne.s32.totalorder %s72, %s88
      %p90 = scmp.eq.s32.totalorder %s64, 0
      %p91 = por %p89, %p90
      %s92 = ssub.s32 %s58, %s65
      %p93 = scmp.eq.s32.totalorder %s92, 0
      %s95 = sadd.s32 %s94, 1
      %s96 = scalar_select %p93, %s94, %s95
      %p99 = pneg %p93
      %p100 = scmp.eq.s32.totalorder %s58, 1
      %p101 = por %p99, %p100
      %p102 = scmp.ne.s32.totalorder %s94, %s97
      %p103 = scmp.eq.s32.totalorder %s58, 0
      %p104 = por %p102, %p103
      %p105 = scmp.ne.s32.totalorder %s94, %s97
      %p106 = scmp.eq.s32.totalorder %s63, 1
      %p107 = por %p105, %p106
      %p108 = scmp.ne.s32.totalorder %s97, %s98
      %p109 = scmp.eq.s32.totalorder %s63, 0
      %p110 = por %p108, %p109
      %p111 = scmp.ne.s32.totalorder %s97, %s98
      %p112 = scmp.eq.s32.totalorder %s64, 1
      %p113 = por %p111, %p112
      %p115 = scmp.ne.s32.totalorder %s98, %s114
      %p116 = scmp.eq.s32.totalorder %s64, 0
      %p117 = por %p115, %p116
      %s118 = ssub.s32 %s58, %s65
      %p119 = scmp.eq.s32.totalorder %s118, 0
      %s121 = sadd.s32 %s120, 1
      %s122 = scalar_select %p119, %s120, %s121
      %p125 = pneg %p119
      %p126 = scmp.eq.s32.totalorder %s58, 1
      %p127 = por %p125, %p126
      %p128 = scmp.ne.s32.totalorder %s120, %s123
      %p129 = scmp.eq.s32.totalorder %s58, 0
      %p130 = por %p128, %p129
      %p131 = scmp.ne.s32.totalorder %s120, %s123
      %p132 = scmp.eq.s32.totalorder %s63, 1
      %p133 = por %p131, %p132
      %p134 = scmp.ne.s32.totalorder %s123, %s124
      %p135 = scmp.eq.s32.totalorder %s63, 0
      %p136 = por %p134, %p135
      %p137 = scmp.ne.s32.totalorder %s123, %s124
      %p138 = scmp.eq.s32.totalorder %s64, 1
      %p139 = por %p137, %p138
      %p141 = scmp.ne.s32.totalorder %s124, %s140
      %p142 = scmp.eq.s32.totalorder %s64, 0
      %p143 = por %p141, %p142
      %s144 = ssub.s32 %s58, %s65
      %p145 = scmp.eq.s32.totalorder %s144, 0
      %s147 = sadd.s32 %s146, 1
      %s148 = scalar_select %p145, %s146, %s147
      %p151 = pneg %p145
      %p152 = scmp.eq.s32.totalorder %s58, 1
      %p153 = por %p151, %p152
      %p154 = scmp.ne.s32.totalorder %s146, %s149
      %p155 = scmp.eq.s32.totalorder %s58, 0
      %p156 = por %p154, %p155
      %p157 = scmp.ne.s32.totalorder %s146, %s149
      %p158 = scmp.eq.s32.totalorder %s63, 1
      %p159 = por %p157, %p158
      %p160 = scmp.ne.s32.totalorder %s149, %s150
      %p161 = scmp.eq.s32.totalorder %s63, 0
      %p162 = por %p160, %p161
      %p163 = scmp.ne.s32.totalorder %s149, %s150
      %p164 = scmp.eq.s32.totalorder %s64, 1
      %p165 = por %p163, %p164
      %p167 = scmp.ne.s32.totalorder %s150, %s166
      %p168 = scmp.eq.s32.totalorder %s64, 0
      %p169 = por %p167, %p168
      %s171 = sadd.s32 %s170, 1
      %p174 = scmp.eq.s32.totalorder %s58, 1
      %p175 = scmp.ne.s32.totalorder %s170, %s172
      %p176 = scmp.eq.s32.totalorder %s58, 0
      %p177 = por %p175, %p176
      %p178 = scmp.ne.s32.totalorder %s170, %s172
      %p179 = scmp.eq.s32.totalorder %s63, 1
      %p180 = por %p178, %p179
      %p181 = scmp.ne.s32.totalorder %s172, %s173
      %p182 = scmp.eq.s32.totalorder %s63, 0
      %p183 = por %p181, %p182
      %p184 = scmp.ne.s32.totalorder %s172, %s173
      %p185 = scmp.eq.s32.totalorder %s64, 1
      %p186 = por %p184, %p185
      %p188 = scmp.ne.s32.totalorder %s173, %s187
      %p189 = scmp.eq.s32.totalorder %s64, 0
      %p190 = por %p188, %p189
      %s192 = sadd.s32 %s191, 1
      %p195 = scmp.eq.s32.totalorder %s58, 1
      %p196 = scmp.ne.s32.totalorder %s191, %s193
      %p197 = scmp.eq.s32.totalorder %s58, 0
      %p198 = por %p196, %p197
      %p199 = scmp.ne.s32.totalorder %s191, %s193
      %p200 = scmp.eq.s32.totalorder %s63, 1
      %p201 = por %p199, %p200
      %p202 = scmp.ne.s32.totalorder %s193, %s194
      %p203 = scmp.eq.s32.totalorder %s63, 0
      %p204 = por %p202, %p203
      %p205 = scmp.ne.s32.totalorder %s193, %s194
      %p206 = scmp.eq.s32.totalorder %s64, 1
      %p207 = por %p205, %p206
      %p209 = scmp.ne.s32.totalorder %s194, %s208
      %p210 = scmp.eq.s32.totalorder %s64, 0
      %p211 = por %p209, %p210
      %s213 = sadd.s32 %s212, 1
      %p216 = scmp.eq.s32.totalorder %s58, 1
      %p217 = scmp.ne.s32.totalorder %s212, %s214
      %p218 = scmp.eq.s32.totalorder %s58, 0
      %p219 = por %p217, %p218
      %p220 = scmp.ne.s32.totalorder %s212, %s214
      %p221 = scmp.eq.s32.totalorder %s63, 1
      %p222 = por %p220, %p221
      %p223 = scmp.ne.s32.totalorder %s214, %s215
      %p224 = scmp.eq.s32.totalorder %s63, 0
      %p225 = por %p223, %p224
      %p226 = scmp.ne.s32.totalorder %s214, %s215
      %p227 = scmp.eq.s32.totalorder %s64, 1
      %p228 = por %p226, %p227
      %p230 = scmp.ne.s32.totalorder %s215, %s229
      %p231 = scmp.eq.s32.totalorder %s64, 0
      %p232 = por %p230, %p231
      %s234 = sadd.s32 %s233, 1
      %p237 = scmp.eq.s32.totalorder %s58, 1
      %p238 = scmp.ne.s32.totalorder %s233, %s235
      %p239 = scmp.eq.s32.totalorder %s58, 0
      %p240 = por %p238, %p239
      %p241 = scmp.ne.s32.totalorder %s233, %s235
      %p242 = scmp.eq.s32.totalorder %s63, 1
      %p243 = por %p241, %p242
      %p244 = scmp.ne.s32.totalorder %s235, %s236
      %p245 = scmp.eq.s32.totalorder %s63, 0
      %p246 = por %p244, %p245
      %p247 = scmp.ne.s32.totalorder %s235, %s236
      %p248 = scmp.eq.s32.totalorder %s64, 1
      %p249 = por %p247, %p248
      %p251 = scmp.ne.s32.totalorder %s236, %s250
      %p252 = scmp.eq.s32.totalorder %s64, 0
      %p253 = por %p251, %p252
      %s255 = sadd.s32 %s254, 1
      %p258 = scmp.eq.s32.totalorder %s58, 1
      %p259 = scmp.ne.s32.totalorder %s254, %s256
      %p260 = scmp.eq.s32.totalorder %s58, 0
      %p261 = por %p259, %p260
      %p262 = scmp.ne.s32.totalorder %s254, %s256
      %p263 = scmp.eq.s32.totalorder %s63, 1
      %p264 = por %p262, %p263
      %p265 = scmp.ne.s32.totalorder %s256, %s257
      %p266 = scmp.eq.s32.totalorder %s63, 0
      %p267 = por %p265, %p266
      %p268 = scmp.ne.s32.totalorder %s256, %s257
      %p269 = scmp.eq.s32.totalorder %s64, 1
      %p270 = por %p268, %p269
      %p272 = scmp.ne.s32.totalorder %s257, %s271
      %p273 = scmp.eq.s32.totalorder %s64, 0
      %p274 = por %p272, %p273
      %s276 = sadd.s32 %s275, 1
      %p279 = scmp.eq.s32.totalorder %s58, 1
      %p280 = scmp.ne.s32.totalorder %s275, %s277
      %p281 = scmp.eq.s32.totalorder %s58, 0
      %p282 = por %p280, %p281
      %p283 = scmp.ne.s32.totalorder %s275, %s277
      %p284 = scmp.eq.s32.totalorder %s63, 1
      %p285 = por %p283, %p284
      %p286 = scmp.ne.s32.totalorder %s277, %s278
      %p287 = scmp.eq.s32.totalorder %s63, 0
      %p288 = por %p286, %p287
      %p289 = scmp.ne.s32.totalorder %s277, %s278
      %p290 = scmp.eq.s32.totalorder %s64, 1
      %p291 = por %p289, %p290
      %p293 = scmp.ne.s32.totalorder %s278, %s292
      %p294 = scmp.eq.s32.totalorder %s64, 0
      %p295 = por %p293, %p294
      %s297 = sadd.s32 %s296, 1
      %p300 = scmp.eq.s32.totalorder %s58, 1
      %p301 = scmp.ne.s32.totalorder %s296, %s298
      %p302 = scmp.eq.s32.totalorder %s58, 0
      %p303 = por %p301, %p302
      %p304 = scmp.ne.s32.totalorder %s296, %s298
      %p305 = scmp.eq.s32.totalorder %s63, 1
      %p306 = por %p304, %p305
      %p307 = scmp.ne.s32.totalorder %s298, %s299
      %p308 = scmp.eq.s32.totalorder %s63, 0
      %p309 = por %p307, %p308
      %p310 = scmp.ne.s32.totalorder %s298, %s299
      %p311 = scmp.eq.s32.totalorder %s64, 1
      %p312 = por %p310, %p311
      %p314 = scmp.ne.s32.totalorder %s299, %s313
      %p315 = scmp.eq.s32.totalorder %s64, 0
      %p316 = por %p314, %p315
      %s318 = sadd.s32 %s317, 1
      %p321 = scmp.eq.s32.totalorder %s58, 1
      %p322 = scmp.ne.s32.totalorder %s317, %s319
      %p323 = scmp.eq.s32.totalorder %s58, 0
      %p324 = por %p322, %p323
      %p325 = scmp.ne.s32.totalorder %s317, %s319
      %p326 = scmp.eq.s32.totalorder %s63, 1
      %p327 = por %p325, %p326
      %p328 = scmp.ne.s32.totalorder %s319, %s320
      %p329 = scmp.eq.s32.totalorder %s63, 0
      %p330 = por %p328, %p329
      %p331 = scmp.ne.s32.totalorder %s319, %s320
      %p332 = scmp.eq.s32.totalorder %s64, 1
      %p333 = por %p331, %p332
      %p335 = scmp.ne.s32.totalorder %s320, %s334
      %p336 = scmp.eq.s32.totalorder %s64, 0
      %p337 = por %p335, %p336
      %s339 = sadd.s32 %s338, 1
      %p342 = scmp.eq.s32.totalorder %s58, 1
      %p343 = scmp.ne.s32.totalorder %s338, %s340
      %p344 = scmp.eq.s32.totalorder %s58, 0
      %p345 = por %p343, %p344
      %p346 = scmp.ne.s32.totalorder %s338, %s340
      %p347 = scmp.eq.s32.totalorder %s63, 1
      %p348 = por %p346, %p347
      %p349 = scmp.ne.s32.totalorder %s340, %s341
      %p350 = scmp.eq.s32.totalorder %s63, 0
      %p351 = por %p349, %p350
      %p352 = scmp.ne.s32.totalorder %s340, %s341
      %p353 = scmp.eq.s32.totalorder %s64, 1
      %p354 = por %p352, %p353
      %p356 = scmp.ne.s32.totalorder %s341, %s355
      %p357 = scmp.eq.s32.totalorder %s64, 0
      %p358 = por %p356, %p357
      %s360 = sadd.s32 %s359, 1
      %p363 = scmp.eq.s32.totalorder %s58, 1
      %p364 = scmp.ne.s32.totalorder %s359, %s361
      %p365 = scmp.eq.s32.totalorder %s58, 0
      %p366 = por %p364, %p365
      %p367 = scmp.ne.s32.totalorder %s359, %s361
      %p368 = scmp.eq.s32.totalorder %s63, 1
      %p369 = por %p367, %p368
      %p370 = scmp.ne.s32.totalorder %s361, %s362
      %p371 = scmp.eq.s32.totalorder %s63, 0
      %p372 = por %p370, %p371
      %p373 = scmp.ne.s32.totalorder %s361, %s362
      %p374 = scmp.eq.s32.totalorder %s64, 1
      %p375 = por %p373, %p374
      %p377 = scmp.ne.s32.totalorder %s362, %s376
      %p378 = scmp.eq.s32.totalorder %s64, 0
      %p379 = por %p377, %p378
      %s381 = sadd.s32 %s380, 1
      %p384 = scmp.eq.s32.totalorder %s58, 1
      %p385 = scmp.ne.s32.totalorder %s380, %s382
      %p386 = scmp.eq.s32.totalorder %s58, 0
      %p387 = por %p385, %p386
      %p388 = scmp.ne.s32.totalorder %s380, %s382
      %p389 = scmp.eq.s32.totalorder %s63, 1
      %p390 = por %p388, %p389
      %p391 = scmp.ne.s32.totalorder %s382, %s383
      %p392 = scmp.eq.s32.totalorder %s63, 0
      %p393 = por %p391, %p392
      %p394 = scmp.ne.s32.totalorder %s382, %s383
      %p395 = scmp.eq.s32.totalorder %s64, 1
      %p396 = por %p394, %p395
      %p398 = scmp.ne.s32.totalorder %s383, %s397
      %p399 = scmp.eq.s32.totalorder %s64, 0
      %p400 = por %p398, %p399
      %s402 = sadd.s32 %s401, 1
      %p405 = scmp.eq.s32.totalorder %s58, 1
      %p406 = scmp.ne.s32.totalorder %s401, %s403
      %p407 = scmp.eq.s32.totalorder %s58, 0
      %p408 = por %p406, %p407
      %p409 = scmp.ne.s32.totalorder %s401, %s403
      %p410 = scmp.eq.s32.totalorder %s63, 1
      %p411 = por %p409, %p410
      %p412 = scmp.ne.s32.totalorder %s403, %s404
      %p413 = scmp.eq.s32.totalorder %s63, 0
      %p414 = por %p412, %p413
      %p415 = scmp.ne.s32.totalorder %s403, %s404
      %p416 = scmp.eq.s32.totalorder %s64, 1
      %p417 = por %p415, %p416
      %p419 = scmp.ne.s32.totalorder %s404, %s418
      %p420 = scmp.eq.s32.totalorder %s64, 0
      %p421 = por %p419, %p420
      %s423 = sadd.s32 %s422, 1
      %p426 = scmp.eq.s32.totalorder %s58, 1
      %p427 = scmp.ne.s32.totalorder %s422, %s424
      %p428 = scmp.eq.s32.totalorder %s58, 0
      %p429 = por %p427, %p428
      %p430 = scmp.ne.s32.totalorder %s422, %s424
      %p431 = scmp.eq.s32.totalorder %s63, 1
      %p432 = por %p430, %p431
      %p433 = scmp.ne.s32.totalorder %s424, %s425
      %p434 = scmp.eq.s32.totalorder %s63, 0
      %p435 = por %p433, %p434
      %p436 = scmp.ne.s32.totalorder %s424, %s425
      %p437 = scmp.eq.s32.totalorder %s64, 1
      %p438 = por %p436, %p437
      %p440 = scmp.ne.s32.totalorder %s425, %s439
      %p441 = scmp.eq.s32.totalorder %s64, 0
      %p442 = por %p440, %p441
      %s444 = sadd.s32 %s443, 1
      %p447 = scmp.eq.s32.totalorder %s58, 1
      %p448 = scmp.ne.s32.totalorder %s443, %s445
      %p449 = scmp.eq.s32.totalorder %s58, 0
      %p450 = por %p448, %p449
      %p451 = scmp.ne.s32.totalorder %s443, %s445
      %p452 = scmp.eq.s32.totalorder %s63, 1
      %p453 = por %p451, %p452
      %p454 = scmp.ne.s32.totalorder %s445, %s446
      %p455 = scmp.eq.s32.totalorder %s63, 0
      %p456 = por %p454, %p455
      %p457 = scmp.ne.s32.totalorder %s445, %s446
      %p458 = scmp.eq.s32.totalorder %s64, 1
      %p459 = por %p457, %p458
      %p461 = scmp.ne.s32.totalorder %s446, %s460
      %p462 = scmp.eq.s32.totalorder %s64, 0
      %p463 = por %p461, %p462
      %s465 = sadd.s32 %s464, 1
      %p468 = scmp.eq.s32.totalorder %s58, 1
      %p469 = scmp.ne.s32.totalorder %s464, %s466
      %p470 = scmp.eq.s32.totalorder %s58, 0
      %p471 = por %p469, %p470
      %p472 = scmp.ne.s32.totalorder %s464, %s466
      %p473 = scmp.eq.s32.totalorder %s63, 1
      %p474 = por %p472, %p473
      %p475 = scmp.ne.s32.totalorder %s466, %s467
      %p476 = scmp.eq.s32.totalorder %s63, 0
      %p477 = por %p475, %p476
      %p478 = scmp.ne.s32.totalorder %s466, %s467
      %p479 = scmp.eq.s32.totalorder %s64, 1
      %p480 = por %p478, %p479
      %p482 = scmp.ne.s32.totalorder %s467, %s481
      %p483 = scmp.eq.s32.totalorder %s64, 0
      %p484 = por %p482, %p483
      %s486 = sadd.s32 %s485, 1
      %p489 = scmp.eq.s32.totalorder %s58, 1
      %p490 = scmp.ne.s32.totalorder %s485, %s487
      %p491 = scmp.eq.s32.totalorder %s58, 0
      %p492 = por %p490, %p491
      %p493 = scmp.ne.s32.totalorder %s485, %s487
      %p494 = scmp.eq.s32.totalorder %s63, 1
      %p495 = por %p493, %p494
      %p496 = scmp.ne.s32.totalorder %s487, %s488
      %p497 = scmp.eq.s32.totalorder %s63, 0
      %p498 = por %p496, %p497
      %p499 = scmp.ne.s32.totalorder %s487, %s488
      %p500 = scmp.eq.s32.totalorder %s64, 1
      %p501 = por %p499, %p500
      %p503 = scmp.ne.s32.totalorder %s488, %s502
      %p504 = scmp.eq.s32.totalorder %s64, 0
      %p505 = por %p503, %p504
      %s507 = sadd.s32 %s506, 1
      %p510 = scmp.eq.s32.totalorder %s58, 1
      %p511 = scmp.ne.s32.totalorder %s506, %s508
      %p512 = scmp.eq.s32.totalorder %s58, 0
      %p513 = por %p511, %p512
      %p514 = scmp.ne.s32.totalorder %s506, %s508
      %p515 = scmp.eq.s32.totalorder %s63, 1
      %p516 = por %p514, %p515
      %p517 = scmp.ne.s32.totalorder %s508, %s509
      %p518 = scmp.eq.s32.totalorder %s63, 0
      %p519 = por %p517, %p518
      %p520 = scmp.ne.s32.totalorder %s508, %s509
      %p521 = scmp.eq.s32.totalorder %s64, 1
      %p522 = por %p520, %p521
      %p524 = scmp.ne.s32.totalorder %s509, %s523
      %p525 = scmp.eq.s32.totalorder %s64, 0
      %p526 = por %p524, %p525
      %s528 = sadd.s32 %s527, 1
      %p531 = scmp.eq.s32.totalorder %s58, 1
      %p532 = scmp.ne.s32.totalorder %s527, %s529
      %p533 = scmp.eq.s32.totalorder %s58, 0
      %p534 = por %p532, %p533
      %p535 = scmp.ne.s32.totalorder %s527, %s529
      %p536 = scmp.eq.s32.totalorder %s63, 1
      %p537 = por %p535, %p536
      %p538 = scmp.ne.s32.totalorder %s529, %s530
      %p539 = scmp.eq.s32.totalorder %s63, 0
      %p540 = por %p538, %p539
      %p541 = scmp.ne.s32.totalorder %s529, %s530
      %p542 = scmp.eq.s32.totalorder %s64, 1
      %p543 = por %p541, %p542
      %p545 = scmp.ne.s32.totalorder %s530, %s544
      %p546 = scmp.eq.s32.totalorder %s64, 0
      %p547 = por %p545, %p546
      %s549 = sadd.s32 %s548, 1
      %p552 = scmp.eq.s32.totalorder %s58, 1
      %p553 = scmp.ne.s32.totalorder %s548, %s550
      %p554 = scmp.eq.s32.totalorder %s58, 0
      %p555 = por %p553, %p554
      %p556 = scmp.ne.s32.totalorder %s548, %s550
      %p557 = scmp.eq.s32.totalorder %s63, 1
      %p558 = por %p556, %p557
      %p559 = scmp.ne.s32.totalorder %s550, %s551
      %p560 = scmp.eq.s32.totalorder %s63, 0
      %p561 = por %p559, %p560
      %p562 = scmp.ne.s32.totalorder %s550, %s551
      %p563 = scmp.eq.s32.totalorder %s64, 1
      %p564 = por %p562, %p563
      %p566 = scmp.ne.s32.totalorder %s551, %s565
      %p567 = scmp.eq.s32.totalorder %s64, 0
      %p568 = por %p566, %p567
      %s570 = sadd.s32 %s569, 1
      %p573 = scmp.eq.s32.totalorder %s58, 1
      %p574 = scmp.ne.s32.totalorder %s569, %s571
      %p575 = scmp.eq.s32.totalorder %s58, 0
      %p576 = por %p574, %p575
      %p577 = scmp.ne.s32.totalorder %s569, %s571
      %p578 = scmp.eq.s32.totalorder %s63, 1
      %p579 = por %p577, %p578
      %p580 = scmp.ne.s32.totalorder %s571, %s572
      %p581 = scmp.eq.s32.totalorder %s63, 0
      %p582 = por %p580, %p581
      %p583 = scmp.ne.s32.totalorder %s571, %s572
      %p584 = scmp.eq.s32.totalorder %s64, 1
      %p585 = por %p583, %p584
      %p587 = scmp.ne.s32.totalorder %s572, %s586
      %p588 = scmp.eq.s32.totalorder %s64, 0
      %p589 = por %p587, %p588
      %s591 = sadd.s32 %s590, 1
      %p594 = scmp.eq.s32.totalorder %s58, 1
      %p595 = scmp.ne.s32.totalorder %s590, %s592
      %p596 = scmp.eq.s32.totalorder %s58, 0
      %p597 = por %p595, %p596
      %p598 = scmp.ne.s32.totalorder %s590, %s592
      %p599 = scmp.eq.s32.totalorder %s63, 1
      %p600 = por %p598, %p599
      %p601 = scmp.ne.s32.totalorder %s592, %s593
      %p602 = scmp.eq.s32.totalorder %s63, 0
      %p603 = por %p601, %p602
      %p604 = scmp.ne.s32.totalorder %s592, %s593
      %p605 = scmp.eq.s32.totalorder %s64, 1
      %p606 = por %p604, %p605
      %p608 = scmp.ne.s32.totalorder %s593, %s607
      %p609 = scmp.eq.s32.totalorder %s64, 0
      %p610 = por %p608, %p609
      %s612 = sadd.s32 %s611, 1
      %p615 = scmp.eq.s32.totalorder %s58, 1
      %p616 = scmp.ne.s32.totalorder %s611, %s613
      %p617 = scmp.eq.s32.totalorder %s58, 0
      %p618 = por %p616, %p617
      %p619 = scmp.ne.s32.totalorder %s611, %s613
      %p620 = scmp.eq.s32.totalorder %s63, 1
      %p621 = por %p619, %p620
      %p622 = scmp.ne.s32.totalorder %s613, %s614
      %p623 = scmp.eq.s32.totalorder %s63, 0
      %p624 = por %p622, %p623
      %p625 = scmp.ne.s32.totalorder %s613, %s614
      %p626 = scmp.eq.s32.totalorder %s64, 1
      %p627 = por %p625, %p626
      %p629 = scmp.ne.s32.totalorder %s614, %s628
      %p630 = scmp.eq.s32.totalorder %s64, 0
      %p631 = por %p629, %p630
      %s633 = sadd.s32 %s632, 1
      %p636 = scmp.eq.s32.totalorder %s58, 1
      %p637 = scmp.ne.s32.totalorder %s632, %s634
      %p638 = scmp.eq.s32.totalorder %s58, 0
      %p639 = por %p637, %p638
      %p640 = scmp.ne.s32.totalorder %s632, %s634
      %p641 = scmp.eq.s32.totalorder %s63, 1
      %p642 = por %p640, %p641
      %p643 = scmp.ne.s32.totalorder %s634, %s635
      %p644 = scmp.eq.s32.totalorder %s63, 0
      %p645 = por %p643, %p644
      %p646 = scmp.ne.s32.totalorder %s634, %s635
      %p647 = scmp.eq.s32.totalorder %s64, 1
      %p648 = por %p646, %p647
      %p650 = scmp.ne.s32.totalorder %s635, %s649
      %p651 = scmp.eq.s32.totalorder %s64, 0
      %p652 = por %p650, %p651
      %s654 = sadd.s32 %s653, 1
      %p657 = scmp.eq.s32.totalorder %s58, 1
      %p658 = scmp.ne.s32.totalorder %s653, %s655
      %p659 = scmp.eq.s32.totalorder %s58, 0
      %p660 = por %p658, %p659
      %p661 = scmp.ne.s32.totalorder %s653, %s655
      %p662 = scmp.eq.s32.totalorder %s63, 1
      %p663 = por %p661, %p662
      %p664 = scmp.ne.s32.totalorder %s655, %s656
      %p665 = scmp.eq.s32.totalorder %s63, 0
      %p666 = por %p664, %p665
      %p667 = scmp.ne.s32.totalorder %s655, %s656
      %p668 = scmp.eq.s32.totalorder %s64, 1
      %p669 = por %p667, %p668
      %p671 = scmp.ne.s32.totalorder %s656, %s670
      %p672 = scmp.eq.s32.totalorder %s64, 0
      %p673 = por %p671, %p672
      %s674 = ssub.s32 %s58, %s65
      %p675 = scmp.eq.s32.totalorder %s674, 0
      %s677 = sadd.s32 %s676, 1
      %s678 = scalar_select %p675, %s676, %s677
      %p681 = pneg %p675
      %p682 = scmp.eq.s32.totalorder %s58, 1
      %p683 = por %p681, %p682
      %p684 = scmp.ne.s32.totalorder %s676, %s679
      %p685 = scmp.eq.s32.totalorder %s58, 0
      %p686 = por %p684, %p685
      %p687 = scmp.ne.s32.totalorder %s676, %s679
      %p688 = scmp.eq.s32.totalorder %s63, 1
      %p689 = por %p687, %p688
      %p690 = scmp.ne.s32.totalorder %s679, %s680
      %p691 = scmp.eq.s32.totalorder %s63, 0
      %p692 = por %p690, %p691
      %p693 = scmp.ne.s32.totalorder %s679, %s680
      %p694 = scmp.eq.s32.totalorder %s64, 1
      %p695 = por %p693, %p694
      %p697 = scmp.ne.s32.totalorder %s680, %s696
      %p698 = scmp.eq.s32.totalorder %s64, 0
      %p699 = por %p697, %p698
      %p700 = scmp.le.s32.totalorder 1, %s58
      %p701 = scmp.lt.s32.totalorder %s58, 3
      %p702 = pnand %p700, %p701
      %p703 = pneg %p702
      // Predicated region
      $region9: #{tpu_custom_call.1} parent=5 // pred_check
        _
      $region10: #{tpu_custom_call.1} parent=5 // pred_check_branch
        %705 = sbr.rel (%p702) target = $region12
      $region11: #{tpu_custom_call.1} parent=5 // pred_region
        %s706 = ssub.s32 %s58, 1
        // Predicated region
        $region13: #{tpu_custom_call.1} parent=11 // pred_check
          %p707 = pneg %p183
        $region14: #{tpu_custom_call.1} parent=11 // pred_check_branch
          %709 = sbr.rel (%p707) target = $region16
        $region15: #{tpu_custom_call.1} parent=11 // pred_region
          %s711 = ssub.s32 256, 256
          %712 = vsyncadd [#allocation9], %s711
          %s713 = sshll.u32 [#allocation10], 4
          %s714 = int_to_ptr.vmem [resolvable:$true] %s713
          %719 = dma.hbm_to_vmem [thread:$0]  %s4, 256, %s714, [#allocation9], 64, 64, 4
        $region16: #{tpu_custom_call.1} parent=11 // pred_fallthru
          _
        // Predicated region
        $region17: #{tpu_custom_call.1} parent=11 // pred_check
          %p720 = pneg %p204
        $region18: #{tpu_custom_call.1} parent=11 // pred_check_branch
          %722 = sbr.rel (%p720) target = $region20
        $region19: #{tpu_custom_call.1} parent=11 // pred_region
          %s724 = ssub.s32 16, 16
          %725 = vsyncadd [#allocation12], %s724
          %s727 = sshll.u32 [#allocation11], 4
          %s728 = int_to_ptr.vmem [resolvable:$true] %s727
          %730 = dma.hbm_to_vmem [thread:$0]  %s5, 16, %s728, [#allocation12]
        $region20: #{tpu_custom_call.1} parent=11 // pred_fallthru
          _
        // Predicated region
        $region21: #{tpu_custom_call.1} parent=11 // pred_check
          %p731 = pneg %p225
        $region22: #{tpu_custom_call.1} parent=11 // pred_check_branch
          %733 = sbr.rel (%p731) target = $region24
        $region23: #{tpu_custom_call.1} parent=11 // pred_region
          %s735 = ssub.s32 256, 256
          %736 = vsyncadd [#allocation12], %s735
          %s737 = sshll.u32 [#allocation13], 4
          %s738 = int_to_ptr.vmem [resolvable:$true] %s737
          %743 = dma.hbm_to_vmem [thread:$0]  %s6, 256, %s738, [#allocation12], 64, 64, 4
        $region24: #{tpu_custom_call.1} parent=11 // pred_fallthru
          _
        // Predicated region
        $region25: #{tpu_custom_call.1} parent=11 // pred_check
          %p744 = pneg %p246
        $region26: #{tpu_custom_call.1} parent=11 // pred_check_branch
          %746 = sbr.rel (%p744) target = $region28
        $region27: #{tpu_custom_call.1} parent=11 // pred_region
          %s748 = ssub.s32 16, 16
          %749 = vsyncadd [#allocation15], %s748
          %s751 = sshll.u32 [#allocation14], 4
          %s752 = int_to_ptr.vmem [resolvable:$true] %s751
          %754 = dma.hbm_to_vmem [thread:$0]  %s7, 16, %s752, [#allocation15]
        $region28: #{tpu_custom_call.1} parent=11 // pred_fallthru
          _
        // Predicated region
        $region29: #{tpu_custom_call.1} parent=11 // pred_check
          %p755 = pneg %p267
        $region30: #{tpu_custom_call.1} parent=11 // pred_check_branch
          %757 = sbr.rel (%p755) target = $region32
        $region31: #{tpu_custom_call.1} parent=11 // pred_region
          %s759 = ssub.s32 256, 256
          %760 = vsyncadd [#allocation15], %s759
          %s761 = sshll.u32 [#allocation16], 4
          %s762 = int_to_ptr.vmem [resolvable:$true] %s761
          %767 = dma.hbm_to_vmem [thread:$0]  %s8, 256, %s762, [#allocation15], 64, 64, 4
        $region32: #{tpu_custom_call.1} parent=11 // pred_fallthru
          _
        // Predicated region
        $region33: #{tpu_custom_call.1} parent=11 // pred_check
          %p768 = pneg %p288
        $region34: #{tpu_custom_call.1} parent=11 // pred_check_branch
          %770 = sbr.rel (%p768) target = $region36
        $region35: #{tpu_custom_call.1} parent=11 // pred_region
          %s772 = ssub.s32 16, 16
          %773 = vsyncadd [#allocation18], %s772
          %s775 = sshll.u32 [#allocation17], 4
          %s776 = int_to_ptr.vmem [resolvable:$true] %s775
          %778 = dma.hbm_to_vmem [thread:$0]  %s9, 16, %s776, [#allocation18]
        $region36: #{tpu_custom_call.1} parent=11 // pred_fallthru
          _
        // Predicated region
        $region37: #{tpu_custom_call.1} parent=11 // pred_check
          %p779 = pneg %p309
        $region38: #{tpu_custom_call.1} parent=11 // pred_check_branch
          %781 = sbr.rel (%p779) target = $region40
        $region39: #{tpu_custom_call.1} parent=11 // pred_region
          %s783 = ssub.s32 256, 256
          %784 = vsyncadd [#allocation18], %s783
          %s785 = sshll.u32 [#allocation19], 4
          %s786 = int_to_ptr.vmem [resolvable:$true] %s785
          %791 = dma.hbm_to_vmem [thread:$0]  %s10, 256, %s786, [#allocation18], 64, 64, 4
        $region40: #{tpu_custom_call.1} parent=11 // pred_fallthru
          _
        // Predicated region
        $region41: #{tpu_custom_call.1} parent=11 // pred_check
          %p792 = pneg %p330
        $region42: #{tpu_custom_call.1} parent=11 // pred_check_branch
          %794 = sbr.rel (%p792) target = $region44
        $region43: #{tpu_custom_call.1} parent=11 // pred_region
          %s796 = ssub.s32 16, 16
          %797 = vsyncadd [#allocation21], %s796
          %s799 = sshll.u32 [#allocation20], 4
          %s800 = int_to_ptr.vmem [resolvable:$true] %s799
          %802 = dma.hbm_to_vmem [thread:$0]  %s11, 16, %s800, [#allocation21]
        $region44: #{tpu_custom_call.1} parent=11 // pred_fallthru
          _
        // Predicated region
        $region45: #{tpu_custom_call.1} parent=11 // pred_check
          %p803 = pneg %p351
        $region46: #{tpu_custom_call.1} parent=11 // pred_check_branch
          %805 = sbr.rel (%p803) target = $region48
        $region47: #{tpu_custom_call.1} parent=11 // pred_region
          %s807 = ssub.s32 256, 256
          %808 = vsyncadd [#allocation21], %s807
          %s809 = sshll.u32 [#allocation22], 4
          %s810 = int_to_ptr.vmem [resolvable:$true] %s809
          %815 = dma.hbm_to_vmem [thread:$0]  %s12, 256, %s810, [#allocation21], 64, 64, 4
        $region48: #{tpu_custom_call.1} parent=11 // pred_fallthru
          _
        // Predicated region
        $region49: #{tpu_custom_call.1} parent=11 // pred_check
          %p816 = pneg %p372
        $region50: #{tpu_custom_call.1} parent=11 // pred_check_branch
          %818 = sbr.rel (%p816) target = $region52
        $region51: #{tpu_custom_call.1} parent=11 // pred_region
          %s820 = ssub.s32 16, 16
          %821 = vsyncadd [#allocation24], %s820
          %s823 = sshll.u32 [#allocation23], 4
          %s824 = int_to_ptr.vmem [resolvable:$true] %s823
          %826 = dma.hbm_to_vmem [thread:$0]  %s13, 16, %s824, [#allocation24]
        $region52: #{tpu_custom_call.1} parent=11 // pred_fallthru
          _
        // Predicated region
        $region53: #{tpu_custom_call.1} parent=11 // pred_check
          %p827 = pneg %p393
        $region54: #{tpu_custom_call.1} parent=11 // pred_check_branch
          %829 = sbr.rel (%p827) target = $region56
        $region55: #{tpu_custom_call.1} parent=11 // pred_region
          %s831 = ssub.s32 256, 256
          %832 = vsyncadd [#allocation24], %s831
          %s833 = sshll.u32 [#allocation25], 4
          %s834 = int_to_ptr.vmem [resolvable:$true] %s833
          %839 = dma.hbm_to_vmem [thread:$0]  %s14, 256, %s834, [#allocation24], 64, 64, 4
        $region56: #{tpu_custom_call.1} parent=11 // pred_fallthru
          _
        // Predicated region
        $region57: #{tpu_custom_call.1} parent=11 // pred_check
          %p840 = pneg %p414
        $region58: #{tpu_custom_call.1} parent=11 // pred_check_branch
          %842 = sbr.rel (%p840) target = $region60
        $region59: #{tpu_custom_call.1} parent=11 // pred_region
          %s844 = ssub.s32 16, 16
          %845 = vsyncadd [#allocation27], %s844
          %s847 = sshll.u32 [#allocation26], 4
          %s848 = int_to_ptr.vmem [resolvable:$true] %s847
          %850 = dma.hbm_to_vmem [thread:$0]  %s15, 16, %s848, [#allocation27]
        $region60: #{tpu_custom_call.1} parent=11 // pred_fallthru
          _
        // Predicated region
        $region61: #{tpu_custom_call.1} parent=11 // pred_check
          %p851 = pneg %p435
        $region62: #{tpu_custom_call.1} parent=11 // pred_check_branch
          %853 = sbr.rel (%p851) target = $region64
        $region63: #{tpu_custom_call.1} parent=11 // pred_region
          %s855 = ssub.s32 256, 256
          %856 = vsyncadd [#allocation27], %s855
          %s857 = sshll.u32 [#allocation28], 4
          %s858 = int_to_ptr.vmem [resolvable:$true] %s857
          %863 = dma.hbm_to_vmem [thread:$0]  %s16, 256, %s858, [#allocation27], 64, 64, 4
        $region64: #{tpu_custom_call.1} parent=11 // pred_fallthru
          _
        // Predicated region
        $region65: #{tpu_custom_call.1} parent=11 // pred_check
          %p864 = pneg %p456
        $region66: #{tpu_custom_call.1} parent=11 // pred_check_branch
          %866 = sbr.rel (%p864) target = $region68
        $region67: #{tpu_custom_call.1} parent=11 // pred_region
          %s868 = ssub.s32 16, 16
          %869 = vsyncadd [#allocation30], %s868
          %s871 = sshll.u32 [#allocation29], 4
          %s872 = int_to_ptr.vmem [resolvable:$true] %s871
          %874 = dma.hbm_to_vmem [thread:$0]  %s17, 16, %s872, [#allocation30]
        $region68: #{tpu_custom_call.1} parent=11 // pred_fallthru
          _
        // Predicated region
        $region69: #{tpu_custom_call.1} parent=11 // pred_check
          %p875 = pneg %p477
        $region70: #{tpu_custom_call.1} parent=11 // pred_check_branch
          %877 = sbr.rel (%p875) target = $region72
        $region71: #{tpu_custom_call.1} parent=11 // pred_region
          %s879 = ssub.s32 256, 256
          %880 = vsyncadd [#allocation30], %s879
          %s881 = sshll.u32 [#allocation31], 4
          %s882 = int_to_ptr.vmem [resolvable:$true] %s881
          %887 = dma.hbm_to_vmem [thread:$0]  %s18, 256, %s882, [#allocation30], 64, 64, 4
        $region72: #{tpu_custom_call.1} parent=11 // pred_fallthru
          _
        // Predicated region
        $region73: #{tpu_custom_call.1} parent=11 // pred_check
          %p888 = pneg %p498
        $region74: #{tpu_custom_call.1} parent=11 // pred_check_branch
          %890 = sbr.rel (%p888) target = $region76
        $region75: #{tpu_custom_call.1} parent=11 // pred_region
          %s892 = ssub.s32 16, 16
          %893 = vsyncadd [#allocation33], %s892
          %s895 = sshll.u32 [#allocation32], 4
          %s896 = int_to_ptr.vmem [resolvable:$true] %s895
          %898 = dma.hbm_to_vmem [thread:$0]  %s19, 16, %s896, [#allocation33]
        $region76: #{tpu_custom_call.1} parent=11 // pred_fallthru
          _
        // Predicated region
        $region77: #{tpu_custom_call.1} parent=11 // pred_check
          %p899 = pneg %p519
        $region78: #{tpu_custom_call.1} parent=11 // pred_check_branch
          %901 = sbr.rel (%p899) target = $region80
        $region79: #{tpu_custom_call.1} parent=11 // pred_region
          %s903 = ssub.s32 512, 512
          %904 = vsyncadd [#allocation33], %s903
          %s905 = sshll.u32 [#allocation34], 4
          %s906 = int_to_ptr.vmem [resolvable:$true] %s905
          %911 = dma.hbm_to_vmem [thread:$0]  %s20, 512, %s906, [#allocation33], 64, 64, 4
        $region80: #{tpu_custom_call.1} parent=11 // pred_fallthru
          _
        // Predicated region
        $region81: #{tpu_custom_call.1} parent=11 // pred_check
          %p912 = pneg %p540
        $region82: #{tpu_custom_call.1} parent=11 // pred_check_branch
          %914 = sbr.rel (%p912) target = $region84
        $region83: #{tpu_custom_call.1} parent=11 // pred_region
          %s916 = ssub.s32 16, 16
          %917 = vsyncadd [#allocation36], %s916
          %s919 = sshll.u32 [#allocation35], 4
          %s920 = int_to_ptr.vmem [resolvable:$true] %s919
          %922 = dma.hbm_to_vmem [thread:$0]  %s21, 16, %s920, [#allocation36]
        $region84: #{tpu_custom_call.1} parent=11 // pred_fallthru
          _
        // Predicated region
        $region85: #{tpu_custom_call.1} parent=11 // pred_check
          %p923 = pneg %p561
        $region86: #{tpu_custom_call.1} parent=11 // pred_check_branch
          %925 = sbr.rel (%p923) target = $region88
        $region87: #{tpu_custom_call.1} parent=11 // pred_region
          %s927 = ssub.s32 16, 16
          %928 = vsyncadd [#allocation36], %s927
          %s930 = sshll.u32 [#allocation37], 4
          %s931 = int_to_ptr.vmem [resolvable:$true] %s930
          %933 = dma.hbm_to_vmem [thread:$0]  %s22, 16, %s931, [#allocation36]
        $region88: #{tpu_custom_call.1} parent=11 // pred_fallthru
          _
        // Predicated region
        $region89: #{tpu_custom_call.1} parent=11 // pred_check
          %p934 = pneg %p582
        $region90: #{tpu_custom_call.1} parent=11 // pred_check_branch
          %936 = sbr.rel (%p934) target = $region92
        $region91: #{tpu_custom_call.1} parent=11 // pred_region
          %s938 = ssub.s32 16, 16
          %939 = vsyncadd [#allocation39], %s938
          %s941 = sshll.u32 [#allocation38], 4
          %s942 = int_to_ptr.vmem [resolvable:$true] %s941
          %944 = dma.hbm_to_vmem [thread:$0]  %s23, 16, %s942, [#allocation39]
        $region92: #{tpu_custom_call.1} parent=11 // pred_fallthru
          _
        // Predicated region
        $region93: #{tpu_custom_call.1} parent=11 // pred_check
          %p945 = pneg %p603
        $region94: #{tpu_custom_call.1} parent=11 // pred_check_branch
          %947 = sbr.rel (%p945) target = $region96
        $region95: #{tpu_custom_call.1} parent=11 // pred_region
          %s949 = ssub.s32 16, 16
          %950 = vsyncadd [#allocation39], %s949
          %s952 = sshll.u32 [#allocation40], 4
          %s953 = int_to_ptr.vmem [resolvable:$true] %s952
          %955 = dma.hbm_to_vmem [thread:$0]  %s24, 16, %s953, [#allocation39]
        $region96: #{tpu_custom_call.1} parent=11 // pred_fallthru
          _
        // Predicated region
        $region97: #{tpu_custom_call.1} parent=11 // pred_check
          %p956 = pneg %p624
        $region98: #{tpu_custom_call.1} parent=11 // pred_check_branch
          %958 = sbr.rel (%p956) target = $region100
        $region99: #{tpu_custom_call.1} parent=11 // pred_region
          %s960 = ssub.s32 16, 16
          %961 = vsyncadd [#allocation42], %s960
          %s963 = sshll.u32 [#allocation41], 4
          %s964 = int_to_ptr.vmem [resolvable:$true] %s963
          %966 = dma.hbm_to_vmem [thread:$0]  %s25, 16, %s964, [#allocation42]
        $region100: #{tpu_custom_call.1} parent=11 // pred_fallthru
          _
        // Predicated region
        $region101: #{tpu_custom_call.1} parent=11 // pred_check
          %p967 = pneg %p645
        $region102: #{tpu_custom_call.1} parent=11 // pred_check_branch
          %969 = sbr.rel (%p967) target = $region104
        $region103: #{tpu_custom_call.1} parent=11 // pred_region
          %s971 = ssub.s32 16, 16
          %972 = vsyncadd [#allocation42], %s971
          %s974 = sshll.u32 [#allocation43], 4
          %s975 = int_to_ptr.vmem [resolvable:$true] %s974
          %977 = dma.hbm_to_vmem [thread:$0]  %s26, 16, %s975, [#allocation42]
        $region104: #{tpu_custom_call.1} parent=11 // pred_fallthru
          _
        // Predicated region
        $region105: #{tpu_custom_call.1} parent=11 // pred_check
          %p978 = pneg %p666
        $region106: #{tpu_custom_call.1} parent=11 // pred_check_branch
          %980 = sbr.rel (%p978) target = $region108
        $region107: #{tpu_custom_call.1} parent=11 // pred_region
          %s982 = ssub.s32 16, 16
          %983 = vsyncadd [#allocation45], %s982
          %s985 = sshll.u32 [#allocation44], 4
          %s986 = int_to_ptr.vmem [resolvable:$true] %s985
          %988 = dma.hbm_to_vmem [thread:$0]  %s27, 16, %s986, [#allocation45]
        $region108: #{tpu_custom_call.1} parent=11 // pred_fallthru
          _
      $region12: #{tpu_custom_call.1} parent=5 // pred_fallthru
        _
      %p989 = scmp.lt.s32.totalorder %s58, 2
      // Predicated region
      $region109: #{tpu_custom_call.1} parent=5 // pred_check
        %p990 = pneg %p989
      $region110: #{tpu_custom_call.1} parent=5 // pred_check_branch
        %992 = sbr.rel (%p990) target = $region112
      $region111: #{tpu_custom_call.1} parent=5 // pred_region
        // Predicated region
        $region113: #{tpu_custom_call.1} parent=111 // pred_check
          %p993 = pneg %p78
        $region114: #{tpu_custom_call.1} parent=111 // pred_check_branch
          %995 = sbr.rel (%p993) target = $region116
        $region115: #{tpu_custom_call.1} parent=111 // pred_region
          %s996 = sand.u32 %s68, 1
          %s997 = scalar_lea.sflag [#allocation3], %s996
          %s998 = sand.u32 %s68, 1
          %s999 = smul.addr %s998, 8
          %s1000 = scalar_lea.vmem [#allocation2], %s999
          %s1002 = ssub.s32 128, 128
          %1003 = vsyncadd %s997, %s1002
          %s1004 = smul.addr %s58, 128
          %s1005 = scalar_lea.hbm %s0, %s1004
          %s1007 = sshll.u32 %s1000, 4
          %s1008 = int_to_ptr.vmem [resolvable:$true] %s1007
          %1010 = dma.hbm_to_vmem [thread:$0]  %s1005, 128, %s1008, %s997
        $region116: #{tpu_custom_call.1} parent=111 // pred_fallthru
          _
        // Predicated region
        $region117: #{tpu_custom_call.1} parent=111 // pred_check
          %p1011 = pneg %p104
        $region118: #{tpu_custom_call.1} parent=111 // pred_check_branch
          %1013 = sbr.rel (%p1011) target = $region120
        $region119: #{tpu_custom_call.1} parent=111 // pred_region
          %s1014 = sand.u32 %s58, 1
          %s1015 = scalar_lea.sflag [#allocation6], %s1014
          %s1016 = sand.u32 %s94, 1
          %s1017 = smul.addr %s1016, 8
          %s1018 = scalar_lea.vmem [#allocation5], %s1017
          %s1020 = ssub.s32 128, 128
          %1021 = vsyncadd %s1015, %s1020
          %s1022 = smul.addr %s58, 128
          %s1023 = scalar_lea.hbm %s1, %s1022
          %s1025 = sshll.u32 %s1018, 4
          %s1026 = int_to_ptr.vmem [resolvable:$true] %s1025
          %1028 = dma.hbm_to_vmem [thread:$0]  %s1023, 128, %s1026, %s1015
        $region120: #{tpu_custom_call.1} parent=111 // pred_fallthru
          _
        // Predicated region
        $region121: #{tpu_custom_call.1} parent=111 // pred_check
          %p1029 = pneg %p130
        $region122: #{tpu_custom_call.1} parent=111 // pred_check_branch
          %1031 = sbr.rel (%p1029) target = $region124
        $region123: #{tpu_custom_call.1} parent=111 // pred_region
          %s1032 = sand.u32 %s58, 1
          %s1033 = scalar_lea.sflag [#allocation6], %s1032
          %s1034 = sand.u32 %s120, 1
          %s1035 = smul.addr %s1034, 8
          %s1036 = scalar_lea.vmem [#allocation7], %s1035
          %s1038 = ssub.s32 128, 128
          %1039 = vsyncadd %s1033, %s1038
          %s1040 = smul.addr %s58, 128
          %s1041 = scalar_lea.hbm %s2, %s1040
          %s1043 = sshll.u32 %s1036, 4
          %s1044 = int_to_ptr.vmem [resolvable:$true] %s1043
          %1046 = dma.hbm_to_vmem [thread:$0]  %s1041, 128, %s1044, %s1033
        $region124: #{tpu_custom_call.1} parent=111 // pred_fallthru
          _
        // Predicated region
        $region125: #{tpu_custom_call.1} parent=111 // pred_check
          %p1047 = pneg %p156
        $region126: #{tpu_custom_call.1} parent=111 // pred_check_branch
          %1049 = sbr.rel (%p1047) target = $region128
        $region127: #{tpu_custom_call.1} parent=111 // pred_region
          %s1050 = sand.u32 %s58, 1
          %s1051 = scalar_lea.sflag [#allocation9], %s1050
          %s1052 = sand.u32 %s146, 1
          %s1053 = smul.addr %s1052, 8
          %s1054 = scalar_lea.vmem [#allocation8], %s1053
          %s1056 = ssub.s32 128, 128
          %1057 = vsyncadd %s1051, %s1056
          %s1058 = smul.addr %s58, 128
          %s1059 = scalar_lea.hbm %s3, %s1058
          %s1061 = sshll.u32 %s1054, 4
          %s1062 = int_to_ptr.vmem [resolvable:$true] %s1061
          %1064 = dma.hbm_to_vmem [thread:$0]  %s1059, 128, %s1062, %s1051
        $region128: #{tpu_custom_call.1} parent=111 // pred_fallthru
          _
      $region112: #{tpu_custom_call.1} parent=5 // pred_fallthru
        _
      %p1065 = scmp.le.s32.totalorder 1, %s58
      %p1066 = scmp.lt.s32.totalorder %s58, 3
      %p1067 = pnand %p1065, %p1066
      %p1068 = pneg %p1067
      // Predicated region
      $region129: #{tpu_custom_call.1} parent=5 // pred_check
        _
      $region130: #{tpu_custom_call.1} parent=5 // pred_check_branch
        %1070 = sbr.rel (%p1067) target = $region132
      $region131: #{tpu_custom_call.1} parent=5 // pred_region
        %s1071 = ssub.s32 %s58, 1
        %s1072 = sand.u32 %s71, 1
        %s1073 = scalar_lea.sflag [#allocation3], %s1072
        %s1074 = sand.u32 %s71, 1
        %s1075 = smul.addr %s1074, 8
        %s1076 = scalar_lea.vmem [#allocation2], %s1075
        // Predicated region
        $region133: #{tpu_custom_call.1} parent=131 // pred_check
          %p1077 = pneg %p84
        $region134: #{tpu_custom_call.1} parent=131 // pred_check_branch
          %1079 = sbr.rel (%p1077) target = $region136
        $region135: #{tpu_custom_call.1} parent=131 // pred_region
          %1080 = dma.done %s1073, 128
        $region136: #{tpu_custom_call.1} parent=131 // pred_fallthru
          _
        %s1081 = sand.u32 %s63, 1
        %s1082 = scalar_lea.sflag [#allocation6], %s1081
        %s1083 = sand.u32 %s97, 1
        %s1084 = smul.addr %s1083, 8
        %s1085 = scalar_lea.vmem [#allocation5], %s1084
        // Predicated region
        $region137: #{tpu_custom_call.1} parent=131 // pred_check
          %p1086 = pneg %p110
        $region138: #{tpu_custom_call.1} parent=131 // pred_check_branch
          %1088 = sbr.rel (%p1086) target = $region140
        $region139: #{tpu_custom_call.1} parent=131 // pred_region
          %1089 = dma.done %s1082, 128
        $region140: #{tpu_custom_call.1} parent=131 // pred_fallthru
          _
        %s1090 = sand.u32 %s63, 1
        %s1091 = scalar_lea.sflag [#allocation6], %s1090
        %s1092 = sand.u32 %s123, 1
        %s1093 = smul.addr %s1092, 8
        %s1094 = scalar_lea.vmem [#allocation7], %s1093
        // Predicated region
        $region141: #{tpu_custom_call.1} parent=131 // pred_check
          %p1095 = pneg %p136
        $region142: #{tpu_custom_call.1} parent=131 // pred_check_branch
          %1097 = sbr.rel (%p1095) target = $region144
        $region143: #{tpu_custom_call.1} parent=131 // pred_region
          %1098 = dma.done %s1091, 128
        $region144: #{tpu_custom_call.1} parent=131 // pred_fallthru
          _
        %s1099 = sand.u32 %s63, 1
        %s1100 = scalar_lea.sflag [#allocation9], %s1099
        %s1101 = sand.u32 %s149, 1
        %s1102 = smul.addr %s1101, 8
        %s1103 = scalar_lea.vmem [#allocation8], %s1102
        // Predicated region
        $region145: #{tpu_custom_call.1} parent=131 // pred_check
          %p1104 = pneg %p162
        $region146: #{tpu_custom_call.1} parent=131 // pred_check_branch
          %1106 = sbr.rel (%p1104) target = $region148
        $region147: #{tpu_custom_call.1} parent=131 // pred_region
          %1107 = dma.done %s1100, 128
        $region148: #{tpu_custom_call.1} parent=131 // pred_fallthru
          _
        // Predicated region
        $region149: #{tpu_custom_call.1} parent=131 // pred_check
          %p1108 = pneg %p183
        $region150: #{tpu_custom_call.1} parent=131 // pred_check_branch
          %1110 = sbr.rel (%p1108) target = $region152
        $region151: #{tpu_custom_call.1} parent=131 // pred_region
          %1111 = dma.done [#allocation9], 256
        $region152: #{tpu_custom_call.1} parent=131 // pred_fallthru
          _
        // Predicated region
        $region153: #{tpu_custom_call.1} parent=131 // pred_check
          %p1112 = pneg %p204
        $region154: #{tpu_custom_call.1} parent=131 // pred_check_branch
          %1114 = sbr.rel (%p1112) target = $region156
        $region155: #{tpu_custom_call.1} parent=131 // pred_region
          %1115 = dma.done [#allocation12], 16
        $region156: #{tpu_custom_call.1} parent=131 // pred_fallthru
          _
        // Predicated region
        $region157: #{tpu_custom_call.1} parent=131 // pred_check
          %p1116 = pneg %p225
        $region158: #{tpu_custom_call.1} parent=131 // pred_check_branch
          %1118 = sbr.rel (%p1116) target = $region160
        $region159: #{tpu_custom_call.1} parent=131 // pred_region
          %1119 = dma.done [#allocation12], 256
        $region160: #{tpu_custom_call.1} parent=131 // pred_fallthru
          _
        // Predicated region
        $region161: #{tpu_custom_call.1} parent=131 // pred_check
          %p1120 = pneg %p246
        $region162: #{tpu_custom_call.1} parent=131 // pred_check_branch
          %1122 = sbr.rel (%p1120) target = $region164
        $region163: #{tpu_custom_call.1} parent=131 // pred_region
          %1123 = dma.done [#allocation15], 16
        $region164: #{tpu_custom_call.1} parent=131 // pred_fallthru
          _
        // Predicated region
        $region165: #{tpu_custom_call.1} parent=131 // pred_check
          %p1124 = pneg %p267
        $region166: #{tpu_custom_call.1} parent=131 // pred_check_branch
          %1126 = sbr.rel (%p1124) target = $region168
        $region167: #{tpu_custom_call.1} parent=131 // pred_region
          %1127 = dma.done [#allocation15], 256
        $region168: #{tpu_custom_call.1} parent=131 // pred_fallthru
          _
        // Predicated region
        $region169: #{tpu_custom_call.1} parent=131 // pred_check
          %p1128 = pneg %p288
        $region170: #{tpu_custom_call.1} parent=131 // pred_check_branch
          %1130 = sbr.rel (%p1128) target = $region172
        $region171: #{tpu_custom_call.1} parent=131 // pred_region
          %1131 = dma.done [#allocation18], 16
        $region172: #{tpu_custom_call.1} parent=131 // pred_fallthru
          _
        // Predicated region
        $region173: #{tpu_custom_call.1} parent=131 // pred_check
          %p1132 = pneg %p309
        $region174: #{tpu_custom_call.1} parent=131 // pred_check_branch
          %1134 = sbr.rel (%p1132) target = $region176
        $region175: #{tpu_custom_call.1} parent=131 // pred_region
          %1135 = dma.done [#allocation18], 256
        $region176: #{tpu_custom_call.1} parent=131 // pred_fallthru
          _
        // Predicated region
        $region177: #{tpu_custom_call.1} parent=131 // pred_check
          %p1136 = pneg %p330
        $region178: #{tpu_custom_call.1} parent=131 // pred_check_branch
          %1138 = sbr.rel (%p1136) target = $region180
        $region179: #{tpu_custom_call.1} parent=131 // pred_region
          %1139 = dma.done [#allocation21], 16
        $region180: #{tpu_custom_call.1} parent=131 // pred_fallthru
          _
        // Predicated region
        $region181: #{tpu_custom_call.1} parent=131 // pred_check
          %p1140 = pneg %p351
        $region182: #{tpu_custom_call.1} parent=131 // pred_check_branch
          %1142 = sbr.rel (%p1140) target = $region184
        $region183: #{tpu_custom_call.1} parent=131 // pred_region
          %1143 = dma.done [#allocation21], 256
        $region184: #{tpu_custom_call.1} parent=131 // pred_fallthru
          _
        // Predicated region
        $region185: #{tpu_custom_call.1} parent=131 // pred_check
          %p1144 = pneg %p372
        $region186: #{tpu_custom_call.1} parent=131 // pred_check_branch
          %1146 = sbr.rel (%p1144) target = $region188
        $region187: #{tpu_custom_call.1} parent=131 // pred_region
          %1147 = dma.done [#allocation24], 16
        $region188: #{tpu_custom_call.1} parent=131 // pred_fallthru
          _
        // Predicated region
        $region189: #{tpu_custom_call.1} parent=131 // pred_check
          %p1148 = pneg %p393
        $region190: #{tpu_custom_call.1} parent=131 // pred_check_branch
          %1150 = sbr.rel (%p1148) target = $region192
        $region191: #{tpu_custom_call.1} parent=131 // pred_region
          %1151 = dma.done [#allocation24], 256
        $region192: #{tpu_custom_call.1} parent=131 // pred_fallthru
          _
        // Predicated region
        $region193: #{tpu_custom_call.1} parent=131 // pred_check
          %p1152 = pneg %p414
        $region194: #{tpu_custom_call.1} parent=131 // pred_check_branch
          %1154 = sbr.rel (%p1152) target = $region196
        $region195: #{tpu_custom_call.1} parent=131 // pred_region
          %1155 = dma.done [#allocation27], 16
        $region196: #{tpu_custom_call.1} parent=131 // pred_fallthru
          _
        // Predicated region
        $region197: #{tpu_custom_call.1} parent=131 // pred_check
          %p1156 = pneg %p435
        $region198: #{tpu_custom_call.1} parent=131 // pred_check_branch
          %1158 = sbr.rel (%p1156) target = $region200
        $region199: #{tpu_custom_call.1} parent=131 // pred_region
          %1159 = dma.done [#allocation27], 256
        $region200: #{tpu_custom_call.1} parent=131 // pred_fallthru
          _
        // Predicated region
        $region201: #{tpu_custom_call.1} parent=131 // pred_check
          %p1160 = pneg %p456
        $region202: #{tpu_custom_call.1} parent=131 // pred_check_branch
          %1162 = sbr.rel (%p1160) target = $region204
        $region203: #{tpu_custom_call.1} parent=131 // pred_region
          %1163 = dma.done [#allocation30], 16
        $region204: #{tpu_custom_call.1} parent=131 // pred_fallthru
          _
        // Predicated region
        $region205: #{tpu_custom_call.1} parent=131 // pred_check
          %p1164 = pneg %p477
        $region206: #{tpu_custom_call.1} parent=131 // pred_check_branch
          %1166 = sbr.rel (%p1164) target = $region208
        $region207: #{tpu_custom_call.1} parent=131 // pred_region
          %1167 = dma.done [#allocation30], 256
        $region208: #{tpu_custom_call.1} parent=131 // pred_fallthru
          _
        // Predicated region
        $region209: #{tpu_custom_call.1} parent=131 // pred_check
          %p1168 = pneg %p498
        $region210: #{tpu_custom_call.1} parent=131 // pred_check_branch
          %1170 = sbr.rel (%p1168) target = $region212
        $region211: #{tpu_custom_call.1} parent=131 // pred_region
          %1171 = dma.done [#allocation33], 16
        $region212: #{tpu_custom_call.1} parent=131 // pred_fallthru
          _
        // Predicated region
        $region213: #{tpu_custom_call.1} parent=131 // pred_check
          %p1172 = pneg %p519
        $region214: #{tpu_custom_call.1} parent=131 // pred_check_branch
          %1174 = sbr.rel (%p1172) target = $region216
        $region215: #{tpu_custom_call.1} parent=131 // pred_region
          %1175 = dma.done [#allocation33], 512
        $region216: #{tpu_custom_call.1} parent=131 // pred_fallthru
          _
        // Predicated region
        $region217: #{tpu_custom_call.1} parent=131 // pred_check
          %p1176 = pneg %p540
        $region218: #{tpu_custom_call.1} parent=131 // pred_check_branch
          %1178 = sbr.rel (%p1176) target = $region220
        $region219: #{tpu_custom_call.1} parent=131 // pred_region
          %1179 = dma.done [#allocation36], 16
        $region220: #{tpu_custom_call.1} parent=131 // pred_fallthru
          _
        // Predicated region
        $region221: #{tpu_custom_call.1} parent=131 // pred_check
          %p1180 = pneg %p561
        $region222: #{tpu_custom_call.1} parent=131 // pred_check_branch
          %1182 = sbr.rel (%p1180) target = $region224
        $region223: #{tpu_custom_call.1} parent=131 // pred_region
          %1183 = dma.done [#allocation36], 16
        $region224: #{tpu_custom_call.1} parent=131 // pred_fallthru
          _
        // Predicated region
        $region225: #{tpu_custom_call.1} parent=131 // pred_check
          %p1184 = pneg %p582
        $region226: #{tpu_custom_call.1} parent=131 // pred_check_branch
          %1186 = sbr.rel (%p1184) target = $region228
        $region227: #{tpu_custom_call.1} parent=131 // pred_region
          %1187 = dma.done [#allocation39], 16
        $region228: #{tpu_custom_call.1} parent=131 // pred_fallthru
          _
        // Predicated region
        $region229: #{tpu_custom_call.1} parent=131 // pred_check
          %p1188 = pneg %p603
        $region230: #{tpu_custom_call.1} parent=131 // pred_check_branch
          %1190 = sbr.rel (%p1188) target = $region232
        $region231: #{tpu_custom_call.1} parent=131 // pred_region
          %1191 = dma.done [#allocation39], 16
        $region232: #{tpu_custom_call.1} parent=131 // pred_fallthru
          _
        // Predicated region
        $region233: #{tpu_custom_call.1} parent=131 // pred_check
          %p1192 = pneg %p624
        $region234: #{tpu_custom_call.1} parent=131 // pred_check_branch
          %1194 = sbr.rel (%p1192) target = $region236
        $region235: #{tpu_custom_call.1} parent=131 // pred_region
          %1195 = dma.done [#allocation42], 16
        $region236: #{tpu_custom_call.1} parent=131 // pred_fallthru
          _
        // Predicated region
        $region237: #{tpu_custom_call.1} parent=131 // pred_check
          %p1196 = pneg %p645
        $region238: #{tpu_custom_call.1} parent=131 // pred_check_branch
          %1198 = sbr.rel (%p1196) target = $region240
        $region239: #{tpu_custom_call.1} parent=131 // pred_region
          %1199 = dma.done [#allocation42], 16
        $region240: #{tpu_custom_call.1} parent=131 // pred_fallthru
          _
        // Predicated region
        $region241: #{tpu_custom_call.1} parent=131 // pred_check
          %p1200 = pneg %p666
        $region242: #{tpu_custom_call.1} parent=131 // pred_check_branch
          %1202 = sbr.rel (%p1200) target = $region244
        $region243: #{tpu_custom_call.1} parent=131 // pred_region
          %1203 = dma.done [#allocation45], 16
        $region244: #{tpu_custom_call.1} parent=131 // pred_fallthru
          _
        %s1204 = sand.u32 %s71, 1
        %s1205 = scalar_lea.sflag [#allocation3], %s1204
        %s1206 = sand.u32 %s71, 1
        %s1207 = smul.addr %s1206, 8
        %s1208 = scalar_lea.vmem [#allocation2], %s1207
        %p1209 = pneg %p84
        %p1210 = pneg %p81
        %s1211 = sand.u32 %s63, 1
        %s1212 = scalar_lea.sflag [#allocation6], %s1211
        %s1213 = sand.u32 %s97, 1
        %s1214 = smul.addr %s1213, 8
        %s1215 = scalar_lea.vmem [#allocation5], %s1214
        %p1216 = pneg %p110
        %p1217 = pneg %p107
        %s1218 = sand.u32 %s63, 1
        %s1219 = scalar_lea.sflag [#allocation6], %s1218
        %s1220 = sand.u32 %s123, 1
        %s1221 = smul.addr %s1220, 8
        %s1222 = scalar_lea.vmem [#allocation7], %s1221
        %p1223 = pneg %p136
        %p1224 = pneg %p133
        %s1225 = sand.u32 %s63, 1
        %s1226 = scalar_lea.sflag [#allocation9], %s1225
        %s1227 = sand.u32 %s149, 1
        %s1228 = smul.addr %s1227, 8
        %s1229 = scalar_lea.vmem [#allocation8], %s1228
        %p1230 = pneg %p162
        %p1231 = pneg %p159
        %p1232 = pneg %p183
        %p1233 = pneg %p180
        %p1234 = pneg %p204
        %p1235 = pneg %p201
        %p1236 = pneg %p225
        %p1237 = pneg %p222
        %p1238 = pneg %p246
        %p1239 = pneg %p243
        %p1240 = pneg %p267
        %p1241 = pneg %p264
        %p1242 = pneg %p288
        %p1243 = pneg %p285
        %p1244 = pneg %p309
        %p1245 = pneg %p306
        %p1246 = pneg %p330
        %p1247 = pneg %p327
        %p1248 = pneg %p351
        %p1249 = pneg %p348
        %p1250 = pneg %p372
        %p1251 = pneg %p369
        %p1252 = pneg %p393
        %p1253 = pneg %p390
        %p1254 = pneg %p414
        %p1255 = pneg %p411
        %p1256 = pneg %p435
        %p1257 = pneg %p432
        %p1258 = pneg %p456
        %p1259 = pneg %p453
        %p1260 = pneg %p477
        %p1261 = pneg %p474
        %p1262 = pneg %p498
        %p1263 = pneg %p495
        %p1264 = pneg %p519
        %p1265 = pneg %p516
        %p1266 = pneg %p540
        %p1267 = pneg %p537
        %p1268 = pneg %p561
        %p1269 = pneg %p558
        %p1270 = pneg %p582
        %p1271 = pneg %p579
        %p1272 = pneg %p603
        %p1273 = pneg %p600
        %p1274 = pneg %p624
        %p1275 = pneg %p621
        %p1276 = pneg %p645
        %p1277 = pneg %p642
        %p1278 = pneg %p666
        %p1279 = pneg %p663
        %p1280 = pneg %p692
        %p1281 = pneg %p689
        %s1282 = sand.u32 %s679, 1
        %s1283 = scalar_lea.sflag [#allocation4], %s1282
        %s1284 = sand.u32 %s679, 1
        %s1285 = smul.addr %s1284, 8
        %s1286 = scalar_lea.vmem [#allocation46], %s1285
        %v1288 = vld [vmem:[%s1076] sm:$0xff]
        %v1289 = vld [vmem:[%s1085] sm:$0xff]
        %v1290 = vld [vmem:[%s1094] sm:$0xff]
        %v1291 = vld [vmem:[%s1103] sm:$0xff]
        %v1292 = vadd.f32 %v1288, %v1290
        %v1293 = vld [vmem:[#allocation10] sm:$0xf]
        %v1294 = vld [vmem:[#allocation10 + $0x4] sm:$0xf]
        %v1295 = vld [vmem:[#allocation10 + $0x8] sm:$0xf]
        %v1296 = vld [vmem:[#allocation10 + $0xc] sm:$0xf]
        %v1297 = vld [vmem:[#allocation11] sm:$0x1]
        %v1298 = vpack.c.bf16 %v1292, %v1292
        %v1300 = vlaneseq
        %v1301 = vshrl.u32 %v1300, 7
        %v1302 = vsub.s32 0, %v1301
        %v1303 = vrot.slane %v1297, %v1302
        %v1309 = vunpack.c.l.b16 %v1293
        %v1310 = vunpack.c.l.b16 %v1294
        %v1311 = vunpack.c.l.b16 %v1295
        %v1312 = vunpack.c.l.b16 %v1296
        %v1313 = vpack.c.b16 %v1310, %v1309
        %v1314 = vpack.c.b16 %v1312, %v1311
        %vm1317 = vcmask 261120
        %v1319 = vsel %vm1317, %v1298, 0
        %1321 = vmatprep.subr.bf16.mxu0 0
        %1322 = vmatpush1.bf16.msra.mxu0 %v1313
        %1323 = vmatprep.subr.bf16.mxu0 0
        %1324 = vmatpush1.bf16.msra.mxu0 %v1314
        %1325 = vmatprep.subr.bf16.mxu0 0
        %1326 = vmatpush1.bf16.msra.mxu0 0
        %1327 = vmatprep.subr.bf16.mxu0 0
        %1328 = vmatpush1.bf16.msra.mxu0 0
        %1329 = vmatprep.subr.bf16.mxu0 0
        %1330 = vmatpush1.bf16.msra.mxu0 0
        %1331 = vmatprep.subr.bf16.mxu0 0
        %1332 = vmatpush1.bf16.msra.mxu0 0
        %1333 = vmatprep.subr.bf16.mxu0 0
        %1334 = vmatpush1.bf16.msra.mxu0 0
        %1335 = vmatprep.subr.bf16.mxu0 0
        %1336 = vmatpush1.bf16.msra.mxu0 0
        %1337 = vmatprep.subr.bf16.mxu0 0
        %1338 = vmatpush1.bf16.msra.mxu0 0
        %1339 = vmatprep.subr.bf16.mxu0 0
        %1340 = vmatpush1.bf16.msra.mxu0 0
        %1341 = vmatprep.subr.bf16.mxu0 0
        %1342 = vmatpush1.bf16.msra.mxu0 0
        %1343 = vmatprep.subr.bf16.mxu0 0
        %1344 = vmatpush1.bf16.msra.mxu0 0
        %1345 = vmatprep.subr.bf16.mxu0 0
        %1346 = vmatpush1.bf16.msra.mxu0 0
        %1347 = vmatprep.subr.bf16.mxu0 0
        %1348 = vmatpush1.bf16.msra.mxu0 0
        %1349 = vmatprep.subr.bf16.mxu0 0
        %1350 = vmatpush1.bf16.msra.mxu0 0
        %1351 = vmatprep.subr.bf16.mxu0 0
        %1352 = vmatpush1.bf16.msra.mxu0 0
        %1353 = vmatprep.mubr.bf16.mxu0 0
        %1354 = vmatmul.mubr.bf16.gmra.mrb[0].mxu0 %v1319
        %v1355 = vpop.f32.mrb[0].mxu0
        %v1356 = vadd.f32 %v1303, %v1355
        %v1357 = vpop.f32.mrb[0].mxu0
        %v1358 = vpop.f32.mrb[0].mxu0
        %v1359 = vpop.f32.mrb[0].mxu0
        %1360 = vdwg.mxu0
        %v1361 = vld [vmem:[#allocation13] sm:$0xf]
        %v1362 = vld [vmem:[#allocation13 + $0x4] sm:$0xf]
        %v1363 = vld [vmem:[#allocation13 + $0x8] sm:$0xf]
        %v1364 = vld [vmem:[#allocation13 + $0xc] sm:$0xf]
        %v1365 = vld [vmem:[#allocation14] sm:$0x1]
        %v1366 = vpack.c.bf16 %v1288, %v1288
        %v1368 = vlaneseq
        %v1369 = vshrl.u32 %v1368, 7
        %v1370 = vsub.s32 0, %v1369
        %v1371 = vrot.slane %v1365, %v1370
        %v1377 = vunpack.c.l.b16 %v1361
        %v1378 = vunpack.c.l.b16 %v1362
        %v1379 = vunpack.c.l.b16 %v1363
        %v1380 = vunpack.c.l.b16 %v1364
        %v1381 = vpack.c.b16 %v1378, %v1377
        %v1382 = vpack.c.b16 %v1380, %v1379
        %v1386 = vsel %vm1317, %v1366, 0
        %1388 = vmatprep.subr.bf16.mxu0 0
        %1389 = vmatpush1.bf16.msra.mxu0 %v1381
        %1390 = vmatprep.subr.bf16.mxu0 0
        %1391 = vmatpush1.bf16.msra.mxu0 %v1382
        %1392 = vmatprep.subr.bf16.mxu0 0
        %1393 = vmatpush1.bf16.msra.mxu0 0
        %1394 = vmatprep.subr.bf16.mxu0 0
        %1395 = vmatpush1.bf16.msra.mxu0 0
        %1396 = vmatprep.subr.bf16.mxu0 0
        %1397 = vmatpush1.bf16.msra.mxu0 0
        %1398 = vmatprep.subr.bf16.mxu0 0
        %1399 = vmatpush1.bf16.msra.mxu0 0
        %1400 = vmatprep.subr.bf16.mxu0 0
        %1401 = vmatpush1.bf16.msra.mxu0 0
        %1402 = vmatprep.subr.bf16.mxu0 0
        %1403 = vmatpush1.bf16.msra.mxu0 0
        %1404 = vmatprep.subr.bf16.mxu0 0
        %1405 = vmatpush1.bf16.msra.mxu0 0
        %1406 = vmatprep.subr.bf16.mxu0 0
        %1407 = vmatpush1.bf16.msra.mxu0 0
        %1408 = vmatprep.subr.bf16.mxu0 0
        %1409 = vmatpush1.bf16.msra.mxu0 0
        %1410 = vmatprep.subr.bf16.mxu0 0
        %1411 = vmatpush1.bf16.msra.mxu0 0
        %1412 = vmatprep.subr.bf16.mxu0 0
        %1413 = vmatpush1.bf16.msra.mxu0 0
        %1414 = vmatprep.subr.bf16.mxu0 0
        %1415 = vmatpush1.bf16.msra.mxu0 0
        %1416 = vmatprep.subr.bf16.mxu0 0
        %1417 = vmatpush1.bf16.msra.mxu0 0
        %1418 = vmatprep.subr.bf16.mxu0 0
        %1419 = vmatpush1.bf16.msra.mxu0 0
        %1420 = vmatprep.mubr.bf16.mxu0 0
        %1421 = vmatmul.mubr.bf16.gmra.mrb[0].mxu0 %v1386
        %v1422 = vpop.f32.mrb[0].mxu0
        %v1423 = vadd.f32 %v1371, %v1422
        %v1424 = vpop.f32.mrb[0].mxu0
        %v1425 = vpop.f32.mrb[0].mxu0
        %v1426 = vpop.f32.mrb[0].mxu0
        %1427 = vdwg.mxu0
        %v1428 = vld [vmem:[#allocation16] sm:$0xf]
        %v1429 = vld [vmem:[#allocation16 + $0x4] sm:$0xf]
        %v1430 = vld [vmem:[#allocation16 + $0x8] sm:$0xf]
        %v1431 = vld [vmem:[#allocation16 + $0xc] sm:$0xf]
        %v1432 = vld [vmem:[#allocation17] sm:$0x1]
        %v1433 = vmul.f32 %v1356, 0.35355338
        %v1434 = vpack.c.bf16 %v1433, %v1433
        %1436 = vrot.lane.b32.xlu0 %v1434, 120
        %v1437 = vpop.permute.xlu0 %1436
        %1438 = vrot.lane.b32.xlu0 %v1434, 112
        %v1439 = vpop.permute.xlu0 %1438
        %1440 = vrot.lane.b32.xlu0 %v1434, 104
        %v1441 = vpop.permute.xlu0 %1440
        %v1442 = vpack.c.bf16 %v1356, %v1356
        %1444 = vrot.lane.b32.xlu0 %v1442, 120
        %v1445 = vpop.permute.xlu0 %1444
        %1446 = vrot.lane.b32.xlu0 %v1442, 112
        %v1447 = vpop.permute.xlu0 %1446
        %1448 = vrot.lane.b32.xlu0 %v1442, 104
        %v1449 = vpop.permute.xlu0 %1448
        %v1450 = vpack.c.bf16 %v1423, %v1423
        %1452 = vrot.lane.b32.xlu0 %v1450, 120
        %v1453 = vpop.permute.xlu0 %1452
        %1454 = vrot.lane.b32.xlu0 %v1450, 112
        %v1455 = vpop.permute.xlu0 %1454
        %1456 = vrot.lane.b32.xlu0 %v1450, 104
        %v1457 = vpop.permute.xlu0 %1456
        %1458 = vrot.lane.b32.xlu0 %v1442, 96
        %v1459 = vpop.permute.xlu0 %1458
        %vm1460 = vcmask 64512
        %v1462 = vsel %vm1460, %v1434, 0
        %v1465 = vsel %vm1460, %v1459, 0
        %1467 = vmatprep.subr.bf16.mxu0 0
        %1468 = vmatpush1.bf16.xpose.msra.mxu0 %v1465
        %1469 = vmatprep.subr.bf16.mxu0 0
        %1470 = vmatpush1.bf16.xpose.msra.mxu0 0
        %1471 = vmatprep.subr.bf16.mxu0 0
        %1472 = vmatpush1.bf16.xpose.msra.mxu0 0
        %1473 = vmatprep.subr.bf16.mxu0 0
        %1474 = vmatpush1.bf16.xpose.msra.mxu0 0
        %1475 = vmatprep.subr.bf16.mxu0 0
        %1476 = vmatpush1.bf16.xpose.msra.mxu0 0
        %1477 = vmatprep.subr.bf16.mxu0 0
        %1478 = vmatpush1.bf16.xpose.msra.mxu0 0
        %1479 = vmatprep.subr.bf16.mxu0 0
        %1480 = vmatpush1.bf16.xpose.msra.mxu0 0
        %1481 = vmatprep.subr.bf16.mxu0 0
        %1482 = vmatpush1.bf16.xpose.msra.mxu0 0
        %1483 = vmatprep.subr.bf16.mxu0 0
        %1484 = vmatpush1.bf16.xpose.msra.mxu0 0
        %1485 = vmatprep.subr.bf16.mxu0 0
        %1486 = vmatpush1.bf16.xpose.msra.mxu0 0
        %1487 = vmatprep.subr.bf16.mxu0 0
        %1488 = vmatpush1.bf16.xpose.msra.mxu0 0
        %1489 = vmatprep.subr.bf16.mxu0 0
        %1490 = vmatpush1.bf16.xpose.msra.mxu0 0
        %1491 = vmatprep.subr.bf16.mxu0 0
        %1492 = vmatpush1.bf16.xpose.msra.mxu0 0
        %1493 = vmatprep.subr.bf16.mxu0 0
        %1494 = vmatpush1.bf16.xpose.msra.mxu0 0
        %1495 = vmatprep.subr.bf16.mxu0 0
        %1496 = vmatpush1.bf16.xpose.msra.mxu0 0
        %1497 = vmatprep.subr.bf16.mxu0 0
        %1498 = vmatpush1.bf16.xpose.msra.mxu0 0
        %1499 = vmatprep.mubr.bf16.mxu0 0
        %1500 = vmatmul.mubr.bf16.gmra.mrb[0].mxu0 %v1462
        %v1501 = vpop.f32.mrb[0].mxu0
        %v1502 = vadd.f32 0.0, %v1501
        %v1503 = vpop.f32.mrb[0].mxu0
        %v1504 = vpop.f32.mrb[0].mxu0
        %v1505 = vpop.f32.mrb[0].mxu0
        %1506 = vdwg.mxu0
        %1507 = vrot.lane.b32.xlu0 %v1445, 96
        %v1508 = vpop.permute.xlu0 %1507
        %v1510 = vsel %vm1460, %v1437, 0
        %v1513 = vsel %vm1460, %v1508, 0
        %1515 = vmatprep.subr.bf16.mxu0 0
        %1516 = vmatpush1.bf16.xpose.msra.mxu0 %v1513
        %1517 = vmatprep.subr.bf16.mxu0 0
        %1518 = vmatpush1.bf16.xpose.msra.mxu0 0
        %1519 = vmatprep.subr.bf16.mxu0 0
        %1520 = vmatpush1.bf16.xpose.msra.mxu0 0
        %1521 = vmatprep.subr.bf16.mxu0 0
        %1522 = vmatpush1.bf16.xpose.msra.mxu0 0
        %1523 = vmatprep.subr.bf16.mxu0 0
        %1524 = vmatpush1.bf16.xpose.msra.mxu0 0
        %1525 = vmatprep.subr.bf16.mxu0 0
        %1526 = vmatpush1.bf16.xpose.msra.mxu0 0
        %1527 = vmatprep.subr.bf16.mxu0 0
        %1528 = vmatpush1.bf16.xpose.msra.mxu0 0
        %1529 = vmatprep.subr.bf16.mxu0 0
        %1530 = vmatpush1.bf16.xpose.msra.mxu0 0
        %1531 = vmatprep.subr.bf16.mxu0 0
        %1532 = vmatpush1.bf16.xpose.msra.mxu0 0
        %1533 = vmatprep.subr.bf16.mxu0 0
        %1534 = vmatpush1.bf16.xpose.msra.mxu0 0
        %1535 = vmatprep.subr.bf16.mxu0 0
        %1536 = vmatpush1.bf16.xpose.msra.mxu0 0
        %1537 = vmatprep.subr.bf16.mxu0 0
        %1538 = vmatpush1.bf16.xpose.msra.mxu0 0
        %1539 = vmatprep.subr.bf16.mxu0 0
        %1540 = vmatpush1.bf16.xpose.msra.mxu0 0
        %1541 = vmatprep.subr.bf16.mxu0 0
        %1542 = vmatpush1.bf16.xpose.msra.mxu0 0
        %1543 = vmatprep.subr.bf16.mxu0 0
        %1544 = vmatpush1.bf16.xpose.msra.mxu0 0
        %1545 = vmatprep.subr.bf16.mxu0 0
        %1546 = vmatpush1.bf16.xpose.msra.mxu0 0
        %1547 = vmatprep.mubr.bf16.mxu0 0
        %1548 = vmatmul.mubr.bf16.gmra.mrb[0].mxu0 %v1510
        %v1549 = vpop.f32.mrb[0].mxu0
        %v1550 = vadd.f32 0.0, %v1549
        %v1551 = vpop.f32.mrb[0].mxu0
        %v1552 = vpop.f32.mrb[0].mxu0
        %v1553 = vpop.f32.mrb[0].mxu0
        %1554 = vdwg.mxu0
        %1555 = vrot.lane.b32.xlu0 %v1447, 96
        %v1556 = vpop.permute.xlu0 %1555
        %v1558 = vsel %vm1460, %v1439, 0
        %v1561 = vsel %vm1460, %v1556, 0
        %1563 = vmatprep.subr.bf16.mxu0 0
        %1564 = vmatpush1.bf16.xpose.msra.mxu0 %v1561
        %1565 = vmatprep.subr.bf16.mxu0 0
        %1566 = vmatpush1.bf16.xpose.msra.mxu0 0
        %1567 = vmatprep.subr.bf16.mxu0 0
        %1568 = vmatpush1.bf16.xpose.msra.mxu0 0
        %1569 = vmatprep.subr.bf16.mxu0 0
        %1570 = vmatpush1.bf16.xpose.msra.mxu0 0
        %1571 = vmatprep.subr.bf16.mxu0 0
        %1572 = vmatpush1.bf16.xpose.msra.mxu0 0
        %1573 = vmatprep.subr.bf16.mxu0 0
        %1574 = vmatpush1.bf16.xpose.msra.mxu0 0
        %1575 = vmatprep.subr.bf16.mxu0 0
        %1576 = vmatpush1.bf16.xpose.msra.mxu0 0
        %1577 = vmatprep.subr.bf16.mxu0 0
        %1578 = vmatpush1.bf16.xpose.msra.mxu0 0
        %1579 = vmatprep.subr.bf16.mxu0 0
        %1580 = vmatpush1.bf16.xpose.msra.mxu0 0
        %1581 = vmatprep.subr.bf16.mxu0 0
        %1582 = vmatpush1.bf16.xpose.msra.mxu0 0
        %1583 = vmatprep.subr.bf16.mxu0 0
        %1584 = vmatpush1.bf16.xpose.msra.mxu0 0
        %1585 = vmatprep.subr.bf16.mxu0 0
        %1586 = vmatpush1.bf16.xpose.msra.mxu0 0
        %1587 = vmatprep.subr.bf16.mxu0 0
        %1588 = vmatpush1.bf16.xpose.msra.mxu0 0
        %1589 = vmatprep.subr.bf16.mxu0 0
        %1590 = vmatpush1.bf16.xpose.msra.mxu0 0
        %1591 = vmatprep.subr.bf16.mxu0 0
        %1592 = vmatpush1.bf16.xpose.msra.mxu0 0
        %1593 = vmatprep.subr.bf16.mxu0 0
        %1594 = vmatpush1.bf16.xpose.msra.mxu0 0
        %1595 = vmatprep.mubr.bf16.mxu0 0
        %1596 = vmatmul.mubr.bf16.gmra.mrb[0].mxu0 %v1558
        %v1597 = vpop.f32.mrb[0].mxu0
        %v1598 = vadd.f32 0.0, %v1597
        %v1599 = vpop.f32.mrb[0].mxu0
        %v1600 = vpop.f32.mrb[0].mxu0
        %v1601 = vpop.f32.mrb[0].mxu0
        %1602 = vdwg.mxu0
        %1603 = vrot.lane.b32.xlu0 %v1449, 96
        %v1604 = vpop.permute.xlu0 %1603
        %v1606 = vsel %vm1460, %v1441, 0
        %v1609 = vsel %vm1460, %v1604, 0
        %1611 = vmatprep.subr.bf16.mxu0 0
        %1612 = vmatpush1.bf16.xpose.msra.mxu0 %v1609
        %1613 = vmatprep.subr.bf16.mxu0 0
        %1614 = vmatpush1.bf16.xpose.msra.mxu0 0
        %1615 = vmatprep.subr.bf16.mxu0 0
        %1616 = vmatpush1.bf16.xpose.msra.mxu0 0
        %1617 = vmatprep.subr.bf16.mxu0 0
        %1618 = vmatpush1.bf16.xpose.msra.mxu0 0
        %1619 = vmatprep.subr.bf16.mxu0 0
        %1620 = vmatpush1.bf16.xpose.msra.mxu0 0
        %1621 = vmatprep.subr.bf16.mxu0 0
        %1622 = vmatpush1.bf16.xpose.msra.mxu0 0
        %1623 = vmatprep.subr.bf16.mxu0 0
        %1624 = vmatpush1.bf16.xpose.msra.mxu0 0
        %1625 = vmatprep.subr.bf16.mxu0 0
        %1626 = vmatpush1.bf16.xpose.msra.mxu0 0
        %1627 = vmatprep.subr.bf16.mxu0 0
        %1628 = vmatpush1.bf16.xpose.msra.mxu0 0
        %1629 = vmatprep.subr.bf16.mxu0 0
        %1630 = vmatpush1.bf16.xpose.msra.mxu0 0
        %1631 = vmatprep.subr.bf16.mxu0 0
        %1632 = vmatpush1.bf16.xpose.msra.mxu0 0
        %1633 = vmatprep.subr.bf16.mxu0 0
        %1634 = vmatpush1.bf16.xpose.msra.mxu0 0
        %1635 = vmatprep.subr.bf16.mxu0 0
        %1636 = vmatpush1.bf16.xpose.msra.mxu0 0
        %1637 = vmatprep.subr.bf16.mxu0 0
        %1638 = vmatpush1.bf16.xpose.msra.mxu0 0
        %1639 = vmatprep.subr.bf16.mxu0 0
        %1640 = vmatpush1.bf16.xpose.msra.mxu0 0
        %1641 = vmatprep.subr.bf16.mxu0 0
        %1642 = vmatpush1.bf16.xpose.msra.mxu0 0
        %1643 = vmatprep.mubr.bf16.mxu0 0
        %1644 = vmatmul.mubr.bf16.gmra.mrb[0].mxu0 %v1606
        %v1645 = vpop.f32.mrb[0].mxu0
        %v1646 = vadd.f32 0.0, %v1645
        %v1647 = vpop.f32.mrb[0].mxu0
        %v1648 = vpop.f32.mrb[0].mxu0
        %v1649 = vpop.f32.mrb[0].mxu0
        %1650 = vdwg.mxu0
        %v1651 = vsel %vm1460, %v1502, -inf
        %1652 = vmax.xlane.f32.xlu0 %v1651
        %v1653 = vpop.xlane.xlu0 %1652
        %v1654 = vsel %vm1460, %v1550, -inf
        %1655 = vmax.xlane.f32.xlu0 %v1654
        %v1656 = vpop.xlane.xlu0 %1655
        %v1657 = vsel %vm1460, %v1598, -inf
        %1658 = vmax.xlane.f32.xlu0 %v1657
        %v1659 = vpop.xlane.xlu0 %1658
        %v1660 = vsel %vm1460, %v1646, -inf
        %1661 = vmax.xlane.f32.xlu0 %v1660
        %v1662 = vpop.xlane.xlu0 %1661
        %v1663 = vsub.f32 %v1502, %v1653
        %v1664 = vsub.f32 %v1550, %v1656
        %v1665 = vsub.f32 %v1598, %v1659
        %v1666 = vsub.f32 %v1646, %v1662
        %v1667 = vmul.f32 %v1663, 1.442695
        %v1668 = vpow.pop %v1667
        %v1669 = vmul.f32 %v1664, 1.442695
        %v1670 = vpow.pop %v1669
        %v1671 = vmul.f32 %v1665, 1.442695
        %v1672 = vpow.pop %v1671
        %v1673 = vmul.f32 %v1666, 1.442695
        %v1674 = vpow.pop %v1673
        %v1675 = vsel %vm1460, %v1668, 0.0
        %1676 = vadd.xlane.f32.xlu0 %v1675
        %v1677 = vpop.xlane.xlu0 %1676
        %v1678 = vsel %vm1460, %v1670, 0.0
        %1679 = vadd.xlane.f32.xlu0 %v1678
        %v1680 = vpop.xlane.xlu0 %1679
        %v1681 = vsel %vm1460, %v1672, 0.0
        %1682 = vadd.xlane.f32.xlu0 %v1681
        %v1683 = vpop.xlane.xlu0 %1682
        %v1684 = vsel %vm1460, %v1674, 0.0
        %1685 = vadd.xlane.f32.xlu0 %v1684
        %v1686 = vpop.xlane.xlu0 %1685
        %v1687 = vrcp.pop %v1677
        %v1688 = vrcp.pop %v1680
        %v1689 = vrcp.pop %v1683
        %v1690 = vrcp.pop %v1686
        %v1691 = vmul.f32 %v1668, %v1687
        %v1692 = vmul.f32 %v1670, %v1688
        %v1693 = vmul.f32 %v1672, %v1689
        %v1694 = vmul.f32 %v1674, %v1690
        %v1695 = vpack.c.bf16 %v1691, %v1691
        %v1696 = vpack.c.bf16 %v1692, %v1692
        %v1697 = vpack.c.bf16 %v1693, %v1693
        %v1698 = vpack.c.bf16 %v1694, %v1694
        %v1700 = vsel %vm1460, %v1695, 0
        %vm1702 = vcmask 1043456
        %v1704 = vsel %vm1702, %v1450, 0
        %1706 = vmatprep.subr.bf16.mxu0 0
        %1707 = vmatpush1.bf16.msra.mxu0 %v1704
        %1708 = vmatprep.subr.bf16.mxu0 0
        %1709 = vmatpush1.bf16.msra.mxu0 0
        %1710 = vmatprep.subr.bf16.mxu0 0
        %1711 = vmatpush1.bf16.msra.mxu0 0
        %1712 = vmatprep.subr.bf16.mxu0 0
        %1713 = vmatpush1.bf16.msra.mxu0 0
        %1714 = vmatprep.subr.bf16.mxu0 0
        %1715 = vmatpush1.bf16.msra.mxu0 0
        %1716 = vmatprep.subr.bf16.mxu0 0
        %1717 = vmatpush1.bf16.msra.mxu0 0
        %1718 = vmatprep.subr.bf16.mxu0 0
        %1719 = vmatpush1.bf16.msra.mxu0 0
        %1720 = vmatprep.subr.bf16.mxu0 0
        %1721 = vmatpush1.bf16.msra.mxu0 0
        %1722 = vmatprep.subr.bf16.mxu0 0
        %1723 = vmatpush1.bf16.msra.mxu0 0
        %1724 = vmatprep.subr.bf16.mxu0 0
        %1725 = vmatpush1.bf16.msra.mxu0 0
        %1726 = vmatprep.subr.bf16.mxu0 0
        %1727 = vmatpush1.bf16.msra.mxu0 0
        %1728 = vmatprep.subr.bf16.mxu0 0
        %1729 = vmatpush1.bf16.msra.mxu0 0
        %1730 = vmatprep.subr.bf16.mxu0 0
        %1731 = vmatpush1.bf16.msra.mxu0 0
        %1732 = vmatprep.subr.bf16.mxu0 0
        %1733 = vmatpush1.bf16.msra.mxu0 0
        %1734 = vmatprep.subr.bf16.mxu0 0
        %1735 = vmatpush1.bf16.msra.mxu0 0
        %1736 = vmatprep.subr.bf16.mxu0 0
        %1737 = vmatpush1.bf16.msra.mxu0 0
        %1738 = vmatprep.mubr.bf16.mxu0 0
        %1739 = vmatmul.mubr.bf16.gmra.mrb[0].mxu0 %v1700
        %v1740 = vpop.f32.mrb[0].mxu0
        %v1741 = vadd.f32 0.0, %v1740
        %v1742 = vpop.f32.mrb[0].mxu0
        %v1743 = vpop.f32.mrb[0].mxu0
        %v1744 = vpop.f32.mrb[0].mxu0
        %1745 = vdwg.mxu0
        %v1747 = vsel %vm1460, %v1696, 0
        %v1750 = vsel %vm1702, %v1453, 0
        %1752 = vmatprep.subr.bf16.mxu0 0
        %1753 = vmatpush1.bf16.msra.mxu0 %v1750
        %1754 = vmatprep.subr.bf16.mxu0 0
        %1755 = vmatpush1.bf16.msra.mxu0 0
        %1756 = vmatprep.subr.bf16.mxu0 0
        %1757 = vmatpush1.bf16.msra.mxu0 0
        %1758 = vmatprep.subr.bf16.mxu0 0
        %1759 = vmatpush1.bf16.msra.mxu0 0
        %1760 = vmatprep.subr.bf16.mxu0 0
        %1761 = vmatpush1.bf16.msra.mxu0 0
        %1762 = vmatprep.subr.bf16.mxu0 0
        %1763 = vmatpush1.bf16.msra.mxu0 0
        %1764 = vmatprep.subr.bf16.mxu0 0
        %1765 = vmatpush1.bf16.msra.mxu0 0
        %1766 = vmatprep.subr.bf16.mxu0 0
        %1767 = vmatpush1.bf16.msra.mxu0 0
        %1768 = vmatprep.subr.bf16.mxu0 0
        %1769 = vmatpush1.bf16.msra.mxu0 0
        %1770 = vmatprep.subr.bf16.mxu0 0
        %1771 = vmatpush1.bf16.msra.mxu0 0
        %1772 = vmatprep.subr.bf16.mxu0 0
        %1773 = vmatpush1.bf16.msra.mxu0 0
        %1774 = vmatprep.subr.bf16.mxu0 0
        %1775 = vmatpush1.bf16.msra.mxu0 0
        %1776 = vmatprep.subr.bf16.mxu0 0
        %1777 = vmatpush1.bf16.msra.mxu0 0
        %1778 = vmatprep.subr.bf16.mxu0 0
        %1779 = vmatpush1.bf16.msra.mxu0 0
        %1780 = vmatprep.subr.bf16.mxu0 0
        %1781 = vmatpush1.bf16.msra.mxu0 0
        %1782 = vmatprep.subr.bf16.mxu0 0
        %1783 = vmatpush1.bf16.msra.mxu0 0
        %1784 = vmatprep.mubr.bf16.mxu0 0
        %1785 = vmatmul.mubr.bf16.gmra.mrb[0].mxu0 %v1747
        %v1786 = vpop.f32.mrb[0].mxu0
        %v1787 = vadd.f32 0.0, %v1786
        %v1788 = vpop.f32.mrb[0].mxu0
        %v1789 = vpop.f32.mrb[0].mxu0
        %v1790 = vpop.f32.mrb[0].mxu0
        %1791 = vdwg.mxu0
        %v1793 = vsel %vm1460, %v1697, 0
        %v1796 = vsel %vm1702, %v1455, 0
        %1798 = vmatprep.subr.bf16.mxu0 0
        %1799 = vmatpush1.bf16.msra.mxu0 %v1796
        %1800 = vmatprep.subr.bf16.mxu0 0
        %1801 = vmatpush1.bf16.msra.mxu0 0
        %1802 = vmatprep.subr.bf16.mxu0 0
        %1803 = vmatpush1.bf16.msra.mxu0 0
        %1804 = vmatprep.subr.bf16.mxu0 0
        %1805 = vmatpush1.bf16.msra.mxu0 0
        %1806 = vmatprep.subr.bf16.mxu0 0
        %1807 = vmatpush1.bf16.msra.mxu0 0
        %1808 = vmatprep.subr.bf16.mxu0 0
        %1809 = vmatpush1.bf16.msra.mxu0 0
        %1810 = vmatprep.subr.bf16.mxu0 0
        %1811 = vmatpush1.bf16.msra.mxu0 0
        %1812 = vmatprep.subr.bf16.mxu0 0
        %1813 = vmatpush1.bf16.msra.mxu0 0
        %1814 = vmatprep.subr.bf16.mxu0 0
        %1815 = vmatpush1.bf16.msra.mxu0 0
        %1816 = vmatprep.subr.bf16.mxu0 0
        %1817 = vmatpush1.bf16.msra.mxu0 0
        %1818 = vmatprep.subr.bf16.mxu0 0
        %1819 = vmatpush1.bf16.msra.mxu0 0
        %1820 = vmatprep.subr.bf16.mxu0 0
        %1821 = vmatpush1.bf16.msra.mxu0 0
        %1822 = vmatprep.subr.bf16.mxu0 0
        %1823 = vmatpush1.bf16.msra.mxu0 0
        %1824 = vmatprep.subr.bf16.mxu0 0
        %1825 = vmatpush1.bf16.msra.mxu0 0
        %1826 = vmatprep.subr.bf16.mxu0 0
        %1827 = vmatpush1.bf16.msra.mxu0 0
        %1828 = vmatprep.subr.bf16.mxu0 0
        %1829 = vmatpush1.bf16.msra.mxu0 0
        %1830 = vmatprep.mubr.bf16.mxu0 0
        %1831 = vmatmul.mubr.bf16.gmra.mrb[0].mxu0 %v1793
        %v1832 = vpop.f32.mrb[0].mxu0
        %v1833 = vadd.f32 0.0, %v1832
        %v1834 = vpop.f32.mrb[0].mxu0
        %v1835 = vpop.f32.mrb[0].mxu0
        %v1836 = vpop.f32.mrb[0].mxu0
        %1837 = vdwg.mxu0
        %v1839 = vsel %vm1460, %v1698, 0
        %v1842 = vsel %vm1702, %v1457, 0
        %1844 = vmatprep.subr.bf16.mxu0 0
        %1845 = vmatpush1.bf16.msra.mxu0 %v1842
        %1846 = vmatprep.subr.bf16.mxu0 0
        %1847 = vmatpush1.bf16.msra.mxu0 0
        %1848 = vmatprep.subr.bf16.mxu0 0
        %1849 = vmatpush1.bf16.msra.mxu0 0
        %1850 = vmatprep.subr.bf16.mxu0 0
        %1851 = vmatpush1.bf16.msra.mxu0 0
        %1852 = vmatprep.subr.bf16.mxu0 0
        %1853 = vmatpush1.bf16.msra.mxu0 0
        %1854 = vmatprep.subr.bf16.mxu0 0
        %1855 = vmatpush1.bf16.msra.mxu0 0
        %1856 = vmatprep.subr.bf16.mxu0 0
        %1857 = vmatpush1.bf16.msra.mxu0 0
        %1858 = vmatprep.subr.bf16.mxu0 0
        %1859 = vmatpush1.bf16.msra.mxu0 0
        %1860 = vmatprep.subr.bf16.mxu0 0
        %1861 = vmatpush1.bf16.msra.mxu0 0
        %1862 = vmatprep.subr.bf16.mxu0 0
        %1863 = vmatpush1.bf16.msra.mxu0 0
        %1864 = vmatprep.subr.bf16.mxu0 0
        %1865 = vmatpush1.bf16.msra.mxu0 0
        %1866 = vmatprep.subr.bf16.mxu0 0
        %1867 = vmatpush1.bf16.msra.mxu0 0
        %1868 = vmatprep.subr.bf16.mxu0 0
        %1869 = vmatpush1.bf16.msra.mxu0 0
        %1870 = vmatprep.subr.bf16.mxu0 0
        %1871 = vmatpush1.bf16.msra.mxu0 0
        %1872 = vmatprep.subr.bf16.mxu0 0
        %1873 = vmatpush1.bf16.msra.mxu0 0
        %1874 = vmatprep.subr.bf16.mxu0 0
        %1875 = vmatpush1.bf16.msra.mxu0 0
        %1876 = vmatprep.mubr.bf16.mxu0 0
        %1877 = vmatmul.mubr.bf16.gmra.mrb[0].mxu0 %v1839
        %v1878 = vpop.f32.mrb[0].mxu0
        %v1879 = vadd.f32 0.0, %v1878
        %v1880 = vpop.f32.mrb[0].mxu0
        %v1881 = vpop.f32.mrb[0].mxu0
        %v1882 = vpop.f32.mrb[0].mxu0
        %1883 = vdwg.mxu0
        %v1884 = vpack.c.bf16 %v1741, %v1741
        %v1885 = vpack.c.bf16 %v1787, %v1787
        %v1886 = vpack.c.bf16 %v1833, %v1833
        %v1887 = vpack.c.bf16 %v1879, %v1879
        %1889 = vrot.lane.b32.xlu0 %v1885, 8
        %v1890 = vpop.permute.xlu0 %1889
        %1892 = vrot.lane.b32.xlu0 %v1886, 16
        %v1893 = vpop.permute.xlu0 %1892
        %1895 = vrot.lane.b32.xlu0 %v1887, 24
        %v1896 = vpop.permute.xlu0 %1895
        %v1899 = vsel %vm1460, %v1884, %v1890
        %vm1900 = vcmask 130048
        %v1902 = vsel %vm1900, %v1899, %v1893
        %vm1903 = vcmask 195584
        %v1905 = vsel %vm1903, %v1902, %v1896
        %v1907 = vlaneseq
        %v1908 = vshrl.u32 %v1907, 7
        %v1909 = vsub.s32 0, %v1908
        %v1910 = vrot.slane %v1432, %v1909
        %v1916 = vunpack.c.l.b16 %v1428
        %v1917 = vunpack.c.l.b16 %v1429
        %v1918 = vunpack.c.l.b16 %v1430
        %v1919 = vunpack.c.l.b16 %v1431
        %v1920 = vpack.c.b16 %v1917, %v1916
        %v1921 = vpack.c.b16 %v1919, %v1918
        %v1924 = vsel %vm1317, %v1905, 0
        %1926 = vmatprep.subr.bf16.mxu0 0
        %1927 = vmatpush1.bf16.msra.mxu0 %v1920
        %1928 = vmatprep.subr.bf16.mxu0 0
        %1929 = vmatpush1.bf16.msra.mxu0 %v1921
        %1930 = vmatprep.subr.bf16.mxu0 0
        %1931 = vmatpush1.bf16.msra.mxu0 0
        %1932 = vmatprep.subr.bf16.mxu0 0
        %1933 = vmatpush1.bf16.msra.mxu0 0
        %1934 = vmatprep.subr.bf16.mxu0 0
        %1935 = vmatpush1.bf16.msra.mxu0 0
        %1936 = vmatprep.subr.bf16.mxu0 0
        %1937 = vmatpush1.bf16.msra.mxu0 0
        %1938 = vmatprep.subr.bf16.mxu0 0
        %1939 = vmatpush1.bf16.msra.mxu0 0
        %1940 = vmatprep.subr.bf16.mxu0 0
        %1941 = vmatpush1.bf16.msra.mxu0 0
        %1942 = vmatprep.subr.bf16.mxu0 0
        %1943 = vmatpush1.bf16.msra.mxu0 0
        %1944 = vmatprep.subr.bf16.mxu0 0
        %1945 = vmatpush1.bf16.msra.mxu0 0
        %1946 = vmatprep.subr.bf16.mxu0 0
        %1947 = vmatpush1.bf16.msra.mxu0 0
        %1948 = vmatprep.subr.bf16.mxu0 0
        %1949 = vmatpush1.bf16.msra.mxu0 0
        %1950 = vmatprep.subr.bf16.mxu0 0
        %1951 = vmatpush1.bf16.msra.mxu0 0
        %1952 = vmatprep.subr.bf16.mxu0 0
        %1953 = vmatpush1.bf16.msra.mxu0 0
        %1954 = vmatprep.subr.bf16.mxu0 0
        %1955 = vmatpush1.bf16.msra.mxu0 0
        %1956 = vmatprep.subr.bf16.mxu0 0
        %1957 = vmatpush1.bf16.msra.mxu0 0
        %1958 = vmatprep.mubr.bf16.mxu0 0
        %1959 = vmatmul.mubr.bf16.gmra.mrb[0].mxu0 %v1924
        %v1960 = vpop.f32.mrb[0].mxu0
        %v1961 = vadd.f32 %v1910, %v1960
        %v1962 = vpop.f32.mrb[0].mxu0
        %v1963 = vpop.f32.mrb[0].mxu0
        %v1964 = vpop.f32.mrb[0].mxu0
        %1965 = vdwg.mxu0
        %v1966 = vadd.f32 %v1288, %v1961
        %v1967 = vld [vmem:[#allocation37] sm:$0x1]
        %v1968 = vld [vmem:[#allocation38] sm:$0x1]
        %v1969 = vsel %vm1317, %v1966, 0.0
        %1970 = vadd.xlane.f32.xlu0 %v1969
        %v1971 = vpop.xlane.xlu0 %1970
        %v1972 = vrcp.pop 32.0
        %v1973 = vmul.f32 %v1971, %v1972
        %v1974 = vsub.f32 %v1966, %v1973
        %v1975 = vmul.f32 %v1974, %v1974
        %v1976 = vsel %vm1317, %v1975, 0.0
        %1977 = vadd.xlane.f32.xlu0 %v1976
        %v1978 = vpop.xlane.xlu0 %1977
        %v1979 = vmul.f32 %v1978, %v1972
        %v1980 = vadd.f32 %v1979, 1e-05
        %v1981 = vrsqrt.pop %v1980
        %v1982 = vmul.f32 %v1974, %v1981
        %v1984 = vlaneseq
        %v1985 = vshrl.u32 %v1984, 7
        %v1986 = vsub.s32 0, %v1985
        %v1987 = vrot.slane %v1967, %v1986
        %v1989 = vmul.f32 %v1982, %v1987
        %v1991 = vlaneseq
        %v1992 = vshrl.u32 %v1991, 7
        %v1993 = vsub.s32 0, %v1992
        %v1994 = vrot.slane %v1968, %v1993
        %v1996 = vadd.f32 %v1989, %v1994
        %v1997 = vadd.f32 %v1996, %v1290
        %v1998 = vld [vmem:[#allocation19] sm:$0xf]
        %v1999 = vld [vmem:[#allocation19 + $0x4] sm:$0xf]
        %v2000 = vld [vmem:[#allocation19 + $0x8] sm:$0xf]
        %v2001 = vld [vmem:[#allocation19 + $0xc] sm:$0xf]
        %v2002 = vld [vmem:[#allocation20] sm:$0x1]
        %v2003 = vpack.c.bf16 %v1997, %v1997
        %v2005 = vlaneseq
        %v2006 = vshrl.u32 %v2005, 7
        %v2007 = vsub.s32 0, %v2006
        %v2008 = vrot.slane %v2002, %v2007
        %v2014 = vunpack.c.l.b16 %v1998
        %v2015 = vunpack.c.l.b16 %v1999
        %v2016 = vunpack.c.l.b16 %v2000
        %v2017 = vunpack.c.l.b16 %v2001
        %v2018 = vpack.c.b16 %v2015, %v2014
        %v2019 = vpack.c.b16 %v2017, %v2016
        %v2023 = vsel %vm1317, %v2003, 0
        %2025 = vmatprep.subr.bf16.mxu0 0
        %2026 = vmatpush1.bf16.msra.mxu0 %v2018
        %2027 = vmatprep.subr.bf16.mxu0 0
        %2028 = vmatpush1.bf16.msra.mxu0 %v2019
        %2029 = vmatprep.subr.bf16.mxu0 0
        %2030 = vmatpush1.bf16.msra.mxu0 0
        %2031 = vmatprep.subr.bf16.mxu0 0
        %2032 = vmatpush1.bf16.msra.mxu0 0
        %2033 = vmatprep.subr.bf16.mxu0 0
        %2034 = vmatpush1.bf16.msra.mxu0 0
        %2035 = vmatprep.subr.bf16.mxu0 0
        %2036 = vmatpush1.bf16.msra.mxu0 0
        %2037 = vmatprep.subr.bf16.mxu0 0
        %2038 = vmatpush1.bf16.msra.mxu0 0
        %2039 = vmatprep.subr.bf16.mxu0 0
        %2040 = vmatpush1.bf16.msra.mxu0 0
        %2041 = vmatprep.subr.bf16.mxu0 0
        %2042 = vmatpush1.bf16.msra.mxu0 0
        %2043 = vmatprep.subr.bf16.mxu0 0
        %2044 = vmatpush1.bf16.msra.mxu0 0
        %2045 = vmatprep.subr.bf16.mxu0 0
        %2046 = vmatpush1.bf16.msra.mxu0 0
        %2047 = vmatprep.subr.bf16.mxu0 0
        %2048 = vmatpush1.bf16.msra.mxu0 0
        %2049 = vmatprep.subr.bf16.mxu0 0
        %2050 = vmatpush1.bf16.msra.mxu0 0
        %2051 = vmatprep.subr.bf16.mxu0 0
        %2052 = vmatpush1.bf16.msra.mxu0 0
        %2053 = vmatprep.subr.bf16.mxu0 0
        %2054 = vmatpush1.bf16.msra.mxu0 0
        %2055 = vmatprep.subr.bf16.mxu0 0
        %2056 = vmatpush1.bf16.msra.mxu0 0
        %2057 = vmatprep.mubr.bf16.mxu0 0
        %2058 = vmatmul.mubr.bf16.gmra.mrb[0].mxu0 %v2023
        %v2059 = vpop.f32.mrb[0].mxu0
        %v2060 = vadd.f32 %v2008, %v2059
        %v2061 = vpop.f32.mrb[0].mxu0
        %v2062 = vpop.f32.mrb[0].mxu0
        %v2063 = vpop.f32.mrb[0].mxu0
        %2064 = vdwg.mxu0
        %v2065 = vadd.f32 %v1289, %v1291
        %v2066 = vld [vmem:[#allocation22] sm:$0xf]
        %v2067 = vld [vmem:[#allocation22 + $0x4] sm:$0xf]
        %v2068 = vld [vmem:[#allocation22 + $0x8] sm:$0xf]
        %v2069 = vld [vmem:[#allocation22 + $0xc] sm:$0xf]
        %v2070 = vld [vmem:[#allocation23] sm:$0x1]
        %v2071 = vpack.c.bf16 %v2065, %v2065
        %v2073 = vlaneseq
        %v2074 = vshrl.u32 %v2073, 7
        %v2075 = vsub.s32 0, %v2074
        %v2076 = vrot.slane %v2070, %v2075
        %v2082 = vunpack.c.l.b16 %v2066
        %v2083 = vunpack.c.l.b16 %v2067
        %v2084 = vunpack.c.l.b16 %v2068
        %v2085 = vunpack.c.l.b16 %v2069
        %v2086 = vpack.c.b16 %v2083, %v2082
        %v2087 = vpack.c.b16 %v2085, %v2084
        %v2091 = vsel %vm1317, %v2071, 0
        %2093 = vmatprep.subr.bf16.mxu0 0
        %2094 = vmatpush1.bf16.msra.mxu0 %v2086
        %2095 = vmatprep.subr.bf16.mxu0 0
        %2096 = vmatpush1.bf16.msra.mxu0 %v2087
        %2097 = vmatprep.subr.bf16.mxu0 0
        %2098 = vmatpush1.bf16.msra.mxu0 0
        %2099 = vmatprep.subr.bf16.mxu0 0
        %2100 = vmatpush1.bf16.msra.mxu0 0
        %2101 = vmatprep.subr.bf16.mxu0 0
        %2102 = vmatpush1.bf16.msra.mxu0 0
        %2103 = vmatprep.subr.bf16.mxu0 0
        %2104 = vmatpush1.bf16.msra.mxu0 0
        %2105 = vmatprep.subr.bf16.mxu0 0
        %2106 = vmatpush1.bf16.msra.mxu0 0
        %2107 = vmatprep.subr.bf16.mxu0 0
        %2108 = vmatpush1.bf16.msra.mxu0 0
        %2109 = vmatprep.subr.bf16.mxu0 0
        %2110 = vmatpush1.bf16.msra.mxu0 0
        %2111 = vmatprep.subr.bf16.mxu0 0
        %2112 = vmatpush1.bf16.msra.mxu0 0
        %2113 = vmatprep.subr.bf16.mxu0 0
        %2114 = vmatpush1.bf16.msra.mxu0 0
        %2115 = vmatprep.subr.bf16.mxu0 0
        %2116 = vmatpush1.bf16.msra.mxu0 0
        %2117 = vmatprep.subr.bf16.mxu0 0
        %2118 = vmatpush1.bf16.msra.mxu0 0
        %2119 = vmatprep.subr.bf16.mxu0 0
        %2120 = vmatpush1.bf16.msra.mxu0 0
        %2121 = vmatprep.subr.bf16.mxu0 0
        %2122 = vmatpush1.bf16.msra.mxu0 0
        %2123 = vmatprep.subr.bf16.mxu0 0
        %2124 = vmatpush1.bf16.msra.mxu0 0
        %2125 = vmatprep.mubr.bf16.mxu0 0
        %2126 = vmatmul.mubr.bf16.gmra.mrb[0].mxu0 %v2091
        %v2127 = vpop.f32.mrb[0].mxu0
        %v2128 = vadd.f32 %v2076, %v2127
        %v2129 = vpop.f32.mrb[0].mxu0
        %v2130 = vpop.f32.mrb[0].mxu0
        %v2131 = vpop.f32.mrb[0].mxu0
        %2132 = vdwg.mxu0
        %v2133 = vld [vmem:[#allocation25] sm:$0xf]
        %v2134 = vld [vmem:[#allocation25 + $0x4] sm:$0xf]
        %v2135 = vld [vmem:[#allocation25 + $0x8] sm:$0xf]
        %v2136 = vld [vmem:[#allocation25 + $0xc] sm:$0xf]
        %v2137 = vld [vmem:[#allocation26] sm:$0x1]
        %v2138 = vpack.c.bf16 %v1289, %v1289
        %v2140 = vlaneseq
        %v2141 = vshrl.u32 %v2140, 7
        %v2142 = vsub.s32 0, %v2141
        %v2143 = vrot.slane %v2137, %v2142
        %v2149 = vunpack.c.l.b16 %v2133
        %v2150 = vunpack.c.l.b16 %v2134
        %v2151 = vunpack.c.l.b16 %v2135
        %v2152 = vunpack.c.l.b16 %v2136
        %v2153 = vpack.c.b16 %v2150, %v2149
        %v2154 = vpack.c.b16 %v2152, %v2151
        %v2158 = vsel %vm1317, %v2138, 0
        %2160 = vmatprep.subr.bf16.mxu0 0
        %2161 = vmatpush1.bf16.msra.mxu0 %v2153
        %2162 = vmatprep.subr.bf16.mxu0 0
        %2163 = vmatpush1.bf16.msra.mxu0 %v2154
        %2164 = vmatprep.subr.bf16.mxu0 0
        %2165 = vmatpush1.bf16.msra.mxu0 0
        %2166 = vmatprep.subr.bf16.mxu0 0
        %2167 = vmatpush1.bf16.msra.mxu0 0
        %2168 = vmatprep.subr.bf16.mxu0 0
        %2169 = vmatpush1.bf16.msra.mxu0 0
        %2170 = vmatprep.subr.bf16.mxu0 0
        %2171 = vmatpush1.bf16.msra.mxu0 0
        %2172 = vmatprep.subr.bf16.mxu0 0
        %2173 = vmatpush1.bf16.msra.mxu0 0
        %2174 = vmatprep.subr.bf16.mxu0 0
        %2175 = vmatpush1.bf16.msra.mxu0 0
        %2176 = vmatprep.subr.bf16.mxu0 0
        %2177 = vmatpush1.bf16.msra.mxu0 0
        %2178 = vmatprep.subr.bf16.mxu0 0
        %2179 = vmatpush1.bf16.msra.mxu0 0
        %2180 = vmatprep.subr.bf16.mxu0 0
        %2181 = vmatpush1.bf16.msra.mxu0 0
        %2182 = vmatprep.subr.bf16.mxu0 0
        %2183 = vmatpush1.bf16.msra.mxu0 0
        %2184 = vmatprep.subr.bf16.mxu0 0
        %2185 = vmatpush1.bf16.msra.mxu0 0
        %2186 = vmatprep.subr.bf16.mxu0 0
        %2187 = vmatpush1.bf16.msra.mxu0 0
        %2188 = vmatprep.subr.bf16.mxu0 0
        %2189 = vmatpush1.bf16.msra.mxu0 0
        %2190 = vmatprep.subr.bf16.mxu0 0
        %2191 = vmatpush1.bf16.msra.mxu0 0
        %2192 = vmatprep.mubr.bf16.mxu0 0
        %2193 = vmatmul.mubr.bf16.gmra.mrb[0].mxu0 %v2158
        %v2194 = vpop.f32.mrb[0].mxu0
        %v2195 = vadd.f32 %v2143, %v2194
        %v2196 = vpop.f32.mrb[0].mxu0
        %v2197 = vpop.f32.mrb[0].mxu0
        %v2198 = vpop.f32.mrb[0].mxu0
        %2199 = vdwg.mxu0
        %v2200 = vld [vmem:[#allocation28] sm:$0xf]
        %v2201 = vld [vmem:[#allocation28 + $0x4] sm:$0xf]
        %v2202 = vld [vmem:[#allocation28 + $0x8] sm:$0xf]
        %v2203 = vld [vmem:[#allocation28 + $0xc] sm:$0xf]
        %v2204 = vld [vmem:[#allocation29] sm:$0x1]
        %v2205 = vmul.f32 %v2060, 0.35355338
        %v2206 = vpack.c.bf16 %v2205, %v2205
        %2208 = vrot.lane.b32.xlu0 %v2206, 120
        %v2209 = vpop.permute.xlu0 %2208
        %2210 = vrot.lane.b32.xlu0 %v2206, 112
        %v2211 = vpop.permute.xlu0 %2210
        %2212 = vrot.lane.b32.xlu0 %v2206, 104
        %v2213 = vpop.permute.xlu0 %2212
        %v2214 = vpack.c.bf16 %v2128, %v2128
        %2216 = vrot.lane.b32.xlu0 %v2214, 120
        %v2217 = vpop.permute.xlu0 %2216
        %2218 = vrot.lane.b32.xlu0 %v2214, 112
        %v2219 = vpop.permute.xlu0 %2218
        %2220 = vrot.lane.b32.xlu0 %v2214, 104
        %v2221 = vpop.permute.xlu0 %2220
        %v2222 = vpack.c.bf16 %v2195, %v2195
        %2224 = vrot.lane.b32.xlu0 %v2222, 120
        %v2225 = vpop.permute.xlu0 %2224
        %2226 = vrot.lane.b32.xlu0 %v2222, 112
        %v2227 = vpop.permute.xlu0 %2226
        %2228 = vrot.lane.b32.xlu0 %v2222, 104
        %v2229 = vpop.permute.xlu0 %2228
        %v2231 = vsel %vm1460, %v2206, 0
        %v2234 = vsel %vm1460, %v2214, 0
        %2236 = vmatprep.subr.bf16.mxu0 0
        %2237 = vmatpush1.bf16.xpose.msra.mxu0 %v2234
        %2238 = vmatprep.subr.bf16.mxu0 0
        %2239 = vmatpush1.bf16.xpose.msra.mxu0 0
        %2240 = vmatprep.subr.bf16.mxu0 0
        %2241 = vmatpush1.bf16.xpose.msra.mxu0 0
        %2242 = vmatprep.subr.bf16.mxu0 0
        %2243 = vmatpush1.bf16.xpose.msra.mxu0 0
        %2244 = vmatprep.subr.bf16.mxu0 0
        %2245 = vmatpush1.bf16.xpose.msra.mxu0 0
        %2246 = vmatprep.subr.bf16.mxu0 0
        %2247 = vmatpush1.bf16.xpose.msra.mxu0 0
        %2248 = vmatprep.subr.bf16.mxu0 0
        %2249 = vmatpush1.bf16.xpose.msra.mxu0 0
        %2250 = vmatprep.subr.bf16.mxu0 0
        %2251 = vmatpush1.bf16.xpose.msra.mxu0 0
        %2252 = vmatprep.subr.bf16.mxu0 0
        %2253 = vmatpush1.bf16.xpose.msra.mxu0 0
        %2254 = vmatprep.subr.bf16.mxu0 0
        %2255 = vmatpush1.bf16.xpose.msra.mxu0 0
        %2256 = vmatprep.subr.bf16.mxu0 0
        %2257 = vmatpush1.bf16.xpose.msra.mxu0 0
        %2258 = vmatprep.subr.bf16.mxu0 0
        %2259 = vmatpush1.bf16.xpose.msra.mxu0 0
        %2260 = vmatprep.subr.bf16.mxu0 0
        %2261 = vmatpush1.bf16.xpose.msra.mxu0 0
        %2262 = vmatprep.subr.bf16.mxu0 0
        %2263 = vmatpush1.bf16.xpose.msra.mxu0 0
        %2264 = vmatprep.subr.bf16.mxu0 0
        %2265 = vmatpush1.bf16.xpose.msra.mxu0 0
        %2266 = vmatprep.subr.bf16.mxu0 0
        %2267 = vmatpush1.bf16.xpose.msra.mxu0 0
        %2268 = vmatprep.mubr.bf16.mxu0 0
        %2269 = vmatmul.mubr.bf16.gmra.mrb[0].mxu0 %v2231
        %v2270 = vpop.f32.mrb[0].mxu0
        %v2271 = vadd.f32 0.0, %v2270
        %v2272 = vpop.f32.mrb[0].mxu0
        %v2273 = vpop.f32.mrb[0].mxu0
        %v2274 = vpop.f32.mrb[0].mxu0
        %2275 = vdwg.mxu0
        %v2277 = vsel %vm1460, %v2209, 0
        %v2280 = vsel %vm1460, %v2217, 0
        %2282 = vmatprep.subr.bf16.mxu0 0
        %2283 = vmatpush1.bf16.xpose.msra.mxu0 %v2280
        %2284 = vmatprep.subr.bf16.mxu0 0
        %2285 = vmatpush1.bf16.xpose.msra.mxu0 0
        %2286 = vmatprep.subr.bf16.mxu0 0
        %2287 = vmatpush1.bf16.xpose.msra.mxu0 0
        %2288 = vmatprep.subr.bf16.mxu0 0
        %2289 = vmatpush1.bf16.xpose.msra.mxu0 0
        %2290 = vmatprep.subr.bf16.mxu0 0
        %2291 = vmatpush1.bf16.xpose.msra.mxu0 0
        %2292 = vmatprep.subr.bf16.mxu0 0
        %2293 = vmatpush1.bf16.xpose.msra.mxu0 0
        %2294 = vmatprep.subr.bf16.mxu0 0
        %2295 = vmatpush1.bf16.xpose.msra.mxu0 0
        %2296 = vmatprep.subr.bf16.mxu0 0
        %2297 = vmatpush1.bf16.xpose.msra.mxu0 0
        %2298 = vmatprep.subr.bf16.mxu0 0
        %2299 = vmatpush1.bf16.xpose.msra.mxu0 0
        %2300 = vmatprep.subr.bf16.mxu0 0
        %2301 = vmatpush1.bf16.xpose.msra.mxu0 0
        %2302 = vmatprep.subr.bf16.mxu0 0
        %2303 = vmatpush1.bf16.xpose.msra.mxu0 0
        %2304 = vmatprep.subr.bf16.mxu0 0
        %2305 = vmatpush1.bf16.xpose.msra.mxu0 0
        %2306 = vmatprep.subr.bf16.mxu0 0
        %2307 = vmatpush1.bf16.xpose.msra.mxu0 0
        %2308 = vmatprep.subr.bf16.mxu0 0
        %2309 = vmatpush1.bf16.xpose.msra.mxu0 0
        %2310 = vmatprep.subr.bf16.mxu0 0
        %2311 = vmatpush1.bf16.xpose.msra.mxu0 0
        %2312 = vmatprep.subr.bf16.mxu0 0
        %2313 = vmatpush1.bf16.xpose.msra.mxu0 0
        %2314 = vmatprep.mubr.bf16.mxu0 0
        %2315 = vmatmul.mubr.bf16.gmra.mrb[0].mxu0 %v2277
        %v2316 = vpop.f32.mrb[0].mxu0
        %v2317 = vadd.f32 0.0, %v2316
        %v2318 = vpop.f32.mrb[0].mxu0
        %v2319 = vpop.f32.mrb[0].mxu0
        %v2320 = vpop.f32.mrb[0].mxu0
        %2321 = vdwg.mxu0
        %v2323 = vsel %vm1460, %v2211, 0
        %v2326 = vsel %vm1460, %v2219, 0
        %2328 = vmatprep.subr.bf16.mxu0 0
        %2329 = vmatpush1.bf16.xpose.msra.mxu0 %v2326
        %2330 = vmatprep.subr.bf16.mxu0 0
        %2331 = vmatpush1.bf16.xpose.msra.mxu0 0
        %2332 = vmatprep.subr.bf16.mxu0 0
        %2333 = vmatpush1.bf16.xpose.msra.mxu0 0
        %2334 = vmatprep.subr.bf16.mxu0 0
        %2335 = vmatpush1.bf16.xpose.msra.mxu0 0
        %2336 = vmatprep.subr.bf16.mxu0 0
        %2337 = vmatpush1.bf16.xpose.msra.mxu0 0
        %2338 = vmatprep.subr.bf16.mxu0 0
        %2339 = vmatpush1.bf16.xpose.msra.mxu0 0
        %2340 = vmatprep.subr.bf16.mxu0 0
        %2341 = vmatpush1.bf16.xpose.msra.mxu0 0
        %2342 = vmatprep.subr.bf16.mxu0 0
        %2343 = vmatpush1.bf16.xpose.msra.mxu0 0
        %2344 = vmatprep.subr.bf16.mxu0 0
        %2345 = vmatpush1.bf16.xpose.msra.mxu0 0
        %2346 = vmatprep.subr.bf16.mxu0 0
        %2347 = vmatpush1.bf16.xpose.msra.mxu0 0
        %2348 = vmatprep.subr.bf16.mxu0 0
        %2349 = vmatpush1.bf16.xpose.msra.mxu0 0
        %2350 = vmatprep.subr.bf16.mxu0 0
        %2351 = vmatpush1.bf16.xpose.msra.mxu0 0
        %2352 = vmatprep.subr.bf16.mxu0 0
        %2353 = vmatpush1.bf16.xpose.msra.mxu0 0
        %2354 = vmatprep.subr.bf16.mxu0 0
        %2355 = vmatpush1.bf16.xpose.msra.mxu0 0
        %2356 = vmatprep.subr.bf16.mxu0 0
        %2357 = vmatpush1.bf16.xpose.msra.mxu0 0
        %2358 = vmatprep.subr.bf16.mxu0 0
        %2359 = vmatpush1.bf16.xpose.msra.mxu0 0
        %2360 = vmatprep.mubr.bf16.mxu0 0
        %2361 = vmatmul.mubr.bf16.gmra.mrb[0].mxu0 %v2323
        %v2362 = vpop.f32.mrb[0].mxu0
        %v2363 = vadd.f32 0.0, %v2362
        %v2364 = vpop.f32.mrb[0].mxu0
        %v2365 = vpop.f32.mrb[0].mxu0
        %v2366 = vpop.f32.mrb[0].mxu0
        %2367 = vdwg.mxu0
        %v2369 = vsel %vm1460, %v2213, 0
        %v2372 = vsel %vm1460, %v2221, 0
        %2374 = vmatprep.subr.bf16.mxu0 0
        %2375 = vmatpush1.bf16.xpose.msra.mxu0 %v2372
        %2376 = vmatprep.subr.bf16.mxu0 0
        %2377 = vmatpush1.bf16.xpose.msra.mxu0 0
        %2378 = vmatprep.subr.bf16.mxu0 0
        %2379 = vmatpush1.bf16.xpose.msra.mxu0 0
        %2380 = vmatprep.subr.bf16.mxu0 0
        %2381 = vmatpush1.bf16.xpose.msra.mxu0 0
        %2382 = vmatprep.subr.bf16.mxu0 0
        %2383 = vmatpush1.bf16.xpose.msra.mxu0 0
        %2384 = vmatprep.subr.bf16.mxu0 0
        %2385 = vmatpush1.bf16.xpose.msra.mxu0 0
        %2386 = vmatprep.subr.bf16.mxu0 0
        %2387 = vmatpush1.bf16.xpose.msra.mxu0 0
        %2388 = vmatprep.subr.bf16.mxu0 0
        %2389 = vmatpush1.bf16.xpose.msra.mxu0 0
        %2390 = vmatprep.subr.bf16.mxu0 0
        %2391 = vmatpush1.bf16.xpose.msra.mxu0 0
        %2392 = vmatprep.subr.bf16.mxu0 0
        %2393 = vmatpush1.bf16.xpose.msra.mxu0 0
        %2394 = vmatprep.subr.bf16.mxu0 0
        %2395 = vmatpush1.bf16.xpose.msra.mxu0 0
        %2396 = vmatprep.subr.bf16.mxu0 0
        %2397 = vmatpush1.bf16.xpose.msra.mxu0 0
        %2398 = vmatprep.subr.bf16.mxu0 0
        %2399 = vmatpush1.bf16.xpose.msra.mxu0 0
        %2400 = vmatprep.subr.bf16.mxu0 0
        %2401 = vmatpush1.bf16.xpose.msra.mxu0 0
        %2402 = vmatprep.subr.bf16.mxu0 0
        %2403 = vmatpush1.bf16.xpose.msra.mxu0 0
        %2404 = vmatprep.subr.bf16.mxu0 0
        %2405 = vmatpush1.bf16.xpose.msra.mxu0 0
        %2406 = vmatprep.mubr.bf16.mxu0 0
        %2407 = vmatmul.mubr.bf16.gmra.mrb[0].mxu0 %v2369
        %v2408 = vpop.f32.mrb[0].mxu0
        %v2409 = vadd.f32 0.0, %v2408
        %v2410 = vpop.f32.mrb[0].mxu0
        %v2411 = vpop.f32.mrb[0].mxu0
        %v2412 = vpop.f32.mrb[0].mxu0
        %2413 = vdwg.mxu0
        %v2414 = vsel %vm1460, %v2271, -inf
        %2415 = vmax.xlane.f32.xlu0 %v2414
        %v2416 = vpop.xlane.xlu0 %2415
        %v2417 = vsel %vm1460, %v2317, -inf
        %2418 = vmax.xlane.f32.xlu0 %v2417
        %v2419 = vpop.xlane.xlu0 %2418
        %v2420 = vsel %vm1460, %v2363, -inf
        %2421 = vmax.xlane.f32.xlu0 %v2420
        %v2422 = vpop.xlane.xlu0 %2421
        %v2423 = vsel %vm1460, %v2409, -inf
        %2424 = vmax.xlane.f32.xlu0 %v2423
        %v2425 = vpop.xlane.xlu0 %2424
        %v2426 = vsub.f32 %v2271, %v2416
        %v2427 = vsub.f32 %v2317, %v2419
        %v2428 = vsub.f32 %v2363, %v2422
        %v2429 = vsub.f32 %v2409, %v2425
        %v2430 = vmul.f32 %v2426, 1.442695
        %v2431 = vpow.pop %v2430
        %v2432 = vmul.f32 %v2427, 1.442695
        %v2433 = vpow.pop %v2432
        %v2434 = vmul.f32 %v2428, 1.442695
        %v2435 = vpow.pop %v2434
        %v2436 = vmul.f32 %v2429, 1.442695
        %v2437 = vpow.pop %v2436
        %v2438 = vsel %vm1460, %v2431, 0.0
        %2439 = vadd.xlane.f32.xlu0 %v2438
        %v2440 = vpop.xlane.xlu0 %2439
        %v2441 = vsel %vm1460, %v2433, 0.0
        %2442 = vadd.xlane.f32.xlu0 %v2441
        %v2443 = vpop.xlane.xlu0 %2442
        %v2444 = vsel %vm1460, %v2435, 0.0
        %2445 = vadd.xlane.f32.xlu0 %v2444
        %v2446 = vpop.xlane.xlu0 %2445
        %v2447 = vsel %vm1460, %v2437, 0.0
        %2448 = vadd.xlane.f32.xlu0 %v2447
        %v2449 = vpop.xlane.xlu0 %2448
        %v2450 = vrcp.pop %v2440
        %v2451 = vrcp.pop %v2443
        %v2452 = vrcp.pop %v2446
        %v2453 = vrcp.pop %v2449
        %v2454 = vmul.f32 %v2431, %v2450
        %v2455 = vmul.f32 %v2433, %v2451
        %v2456 = vmul.f32 %v2435, %v2452
        %v2457 = vmul.f32 %v2437, %v2453
        %v2458 = vpack.c.bf16 %v2454, %v2454
        %v2459 = vpack.c.bf16 %v2455, %v2455
        %v2460 = vpack.c.bf16 %v2456, %v2456
        %v2461 = vpack.c.bf16 %v2457, %v2457
        %v2463 = vsel %vm1460, %v2458, 0
        %v2466 = vsel %vm1702, %v2222, 0
        %2468 = vmatprep.subr.bf16.mxu0 0
        %2469 = vmatpush1.bf16.msra.mxu0 %v2466
        %2470 = vmatprep.subr.bf16.mxu0 0
        %2471 = vmatpush1.bf16.msra.mxu0 0
        %2472 = vmatprep.subr.bf16.mxu0 0
        %2473 = vmatpush1.bf16.msra.mxu0 0
        %2474 = vmatprep.subr.bf16.mxu0 0
        %2475 = vmatpush1.bf16.msra.mxu0 0
        %2476 = vmatprep.subr.bf16.mxu0 0
        %2477 = vmatpush1.bf16.msra.mxu0 0
        %2478 = vmatprep.subr.bf16.mxu0 0
        %2479 = vmatpush1.bf16.msra.mxu0 0
        %2480 = vmatprep.subr.bf16.mxu0 0
        %2481 = vmatpush1.bf16.msra.mxu0 0
        %2482 = vmatprep.subr.bf16.mxu0 0
        %2483 = vmatpush1.bf16.msra.mxu0 0
        %2484 = vmatprep.subr.bf16.mxu0 0
        %2485 = vmatpush1.bf16.msra.mxu0 0
        %2486 = vmatprep.subr.bf16.mxu0 0
        %2487 = vmatpush1.bf16.msra.mxu0 0
        %2488 = vmatprep.subr.bf16.mxu0 0
        %2489 = vmatpush1.bf16.msra.mxu0 0
        %2490 = vmatprep.subr.bf16.mxu0 0
        %2491 = vmatpush1.bf16.msra.mxu0 0
        %2492 = vmatprep.subr.bf16.mxu0 0
        %2493 = vmatpush1.bf16.msra.mxu0 0
        %2494 = vmatprep.subr.bf16.mxu0 0
        %2495 = vmatpush1.bf16.msra.mxu0 0
        %2496 = vmatprep.subr.bf16.mxu0 0
        %2497 = vmatpush1.bf16.msra.mxu0 0
        %2498 = vmatprep.subr.bf16.mxu0 0
        %2499 = vmatpush1.bf16.msra.mxu0 0
        %2500 = vmatprep.mubr.bf16.mxu0 0
        %2501 = vmatmul.mubr.bf16.gmra.mrb[0].mxu0 %v2463
        %v2502 = vpop.f32.mrb[0].mxu0
        %v2503 = vadd.f32 0.0, %v2502
        %v2504 = vpop.f32.mrb[0].mxu0
        %v2505 = vpop.f32.mrb[0].mxu0
        %v2506 = vpop.f32.mrb[0].mxu0
        %2507 = vdwg.mxu0
        %v2509 = vsel %vm1460, %v2459, 0
        %v2512 = vsel %vm1702, %v2225, 0
        %2514 = vmatprep.subr.bf16.mxu0 0
        %2515 = vmatpush1.bf16.msra.mxu0 %v2512
        %2516 = vmatprep.subr.bf16.mxu0 0
        %2517 = vmatpush1.bf16.msra.mxu0 0
        %2518 = vmatprep.subr.bf16.mxu0 0
        %2519 = vmatpush1.bf16.msra.mxu0 0
        %2520 = vmatprep.subr.bf16.mxu0 0
        %2521 = vmatpush1.bf16.msra.mxu0 0
        %2522 = vmatprep.subr.bf16.mxu0 0
        %2523 = vmatpush1.bf16.msra.mxu0 0
        %2524 = vmatprep.subr.bf16.mxu0 0
        %2525 = vmatpush1.bf16.msra.mxu0 0
        %2526 = vmatprep.subr.bf16.mxu0 0
        %2527 = vmatpush1.bf16.msra.mxu0 0
        %2528 = vmatprep.subr.bf16.mxu0 0
        %2529 = vmatpush1.bf16.msra.mxu0 0
        %2530 = vmatprep.subr.bf16.mxu0 0
        %2531 = vmatpush1.bf16.msra.mxu0 0
        %2532 = vmatprep.subr.bf16.mxu0 0
        %2533 = vmatpush1.bf16.msra.mxu0 0
        %2534 = vmatprep.subr.bf16.mxu0 0
        %2535 = vmatpush1.bf16.msra.mxu0 0
        %2536 = vmatprep.subr.bf16.mxu0 0
        %2537 = vmatpush1.bf16.msra.mxu0 0
        %2538 = vmatprep.subr.bf16.mxu0 0
        %2539 = vmatpush1.bf16.msra.mxu0 0
        %2540 = vmatprep.subr.bf16.mxu0 0
        %2541 = vmatpush1.bf16.msra.mxu0 0
        %2542 = vmatprep.subr.bf16.mxu0 0
        %2543 = vmatpush1.bf16.msra.mxu0 0
        %2544 = vmatprep.subr.bf16.mxu0 0
        %2545 = vmatpush1.bf16.msra.mxu0 0
        %2546 = vmatprep.mubr.bf16.mxu0 0
        %2547 = vmatmul.mubr.bf16.gmra.mrb[0].mxu0 %v2509
        %v2548 = vpop.f32.mrb[0].mxu0
        %v2549 = vadd.f32 0.0, %v2548
        %v2550 = vpop.f32.mrb[0].mxu0
        %v2551 = vpop.f32.mrb[0].mxu0
        %v2552 = vpop.f32.mrb[0].mxu0
        %2553 = vdwg.mxu0
        %v2555 = vsel %vm1460, %v2460, 0
        %v2558 = vsel %vm1702, %v2227, 0
        %2560 = vmatprep.subr.bf16.mxu0 0
        %2561 = vmatpush1.bf16.msra.mxu0 %v2558
        %2562 = vmatprep.subr.bf16.mxu0 0
        %2563 = vmatpush1.bf16.msra.mxu0 0
        %2564 = vmatprep.subr.bf16.mxu0 0
        %2565 = vmatpush1.bf16.msra.mxu0 0
        %2566 = vmatprep.subr.bf16.mxu0 0
        %2567 = vmatpush1.bf16.msra.mxu0 0
        %2568 = vmatprep.subr.bf16.mxu0 0
        %2569 = vmatpush1.bf16.msra.mxu0 0
        %2570 = vmatprep.subr.bf16.mxu0 0
        %2571 = vmatpush1.bf16.msra.mxu0 0
        %2572 = vmatprep.subr.bf16.mxu0 0
        %2573 = vmatpush1.bf16.msra.mxu0 0
        %2574 = vmatprep.subr.bf16.mxu0 0
        %2575 = vmatpush1.bf16.msra.mxu0 0
        %2576 = vmatprep.subr.bf16.mxu0 0
        %2577 = vmatpush1.bf16.msra.mxu0 0
        %2578 = vmatprep.subr.bf16.mxu0 0
        %2579 = vmatpush1.bf16.msra.mxu0 0
        %2580 = vmatprep.subr.bf16.mxu0 0
        %2581 = vmatpush1.bf16.msra.mxu0 0
        %2582 = vmatprep.subr.bf16.mxu0 0
        %2583 = vmatpush1.bf16.msra.mxu0 0
        %2584 = vmatprep.subr.bf16.mxu0 0
        %2585 = vmatpush1.bf16.msra.mxu0 0
        %2586 = vmatprep.subr.bf16.mxu0 0
        %2587 = vmatpush1.bf16.msra.mxu0 0
        %2588 = vmatprep.subr.bf16.mxu0 0
        %2589 = vmatpush1.bf16.msra.mxu0 0
        %2590 = vmatprep.subr.bf16.mxu0 0
        %2591 = vmatpush1.bf16.msra.mxu0 0
        %2592 = vmatprep.mubr.bf16.mxu0 0
        %2593 = vmatmul.mubr.bf16.gmra.mrb[0].mxu0 %v2555
        %v2594 = vpop.f32.mrb[0].mxu0
        %v2595 = vadd.f32 0.0, %v2594
        %v2596 = vpop.f32.mrb[0].mxu0
        %v2597 = vpop.f32.mrb[0].mxu0
        %v2598 = vpop.f32.mrb[0].mxu0
        %2599 = vdwg.mxu0
        %v2601 = vsel %vm1460, %v2461, 0
        %v2604 = vsel %vm1702, %v2229, 0
        %2606 = vmatprep.subr.bf16.mxu0 0
        %2607 = vmatpush1.bf16.msra.mxu0 %v2604
        %2608 = vmatprep.subr.bf16.mxu0 0
        %2609 = vmatpush1.bf16.msra.mxu0 0
        %2610 = vmatprep.subr.bf16.mxu0 0
        %2611 = vmatpush1.bf16.msra.mxu0 0
        %2612 = vmatprep.subr.bf16.mxu0 0
        %2613 = vmatpush1.bf16.msra.mxu0 0
        %2614 = vmatprep.subr.bf16.mxu0 0
        %2615 = vmatpush1.bf16.msra.mxu0 0
        %2616 = vmatprep.subr.bf16.mxu0 0
        %2617 = vmatpush1.bf16.msra.mxu0 0
        %2618 = vmatprep.subr.bf16.mxu0 0
        %2619 = vmatpush1.bf16.msra.mxu0 0
        %2620 = vmatprep.subr.bf16.mxu0 0
        %2621 = vmatpush1.bf16.msra.mxu0 0
        %2622 = vmatprep.subr.bf16.mxu0 0
        %2623 = vmatpush1.bf16.msra.mxu0 0
        %2624 = vmatprep.subr.bf16.mxu0 0
        %2625 = vmatpush1.bf16.msra.mxu0 0
        %2626 = vmatprep.subr.bf16.mxu0 0
        %2627 = vmatpush1.bf16.msra.mxu0 0
        %2628 = vmatprep.subr.bf16.mxu0 0
        %2629 = vmatpush1.bf16.msra.mxu0 0
        %2630 = vmatprep.subr.bf16.mxu0 0
        %2631 = vmatpush1.bf16.msra.mxu0 0
        %2632 = vmatprep.subr.bf16.mxu0 0
        %2633 = vmatpush1.bf16.msra.mxu0 0
        %2634 = vmatprep.subr.bf16.mxu0 0
        %2635 = vmatpush1.bf16.msra.mxu0 0
        %2636 = vmatprep.subr.bf16.mxu0 0
        %2637 = vmatpush1.bf16.msra.mxu0 0
        %2638 = vmatprep.mubr.bf16.mxu0 0
        %2639 = vmatmul.mubr.bf16.gmra.mrb[0].mxu0 %v2601
        %v2640 = vpop.f32.mrb[0].mxu0
        %v2641 = vadd.f32 0.0, %v2640
        %v2642 = vpop.f32.mrb[0].mxu0
        %v2643 = vpop.f32.mrb[0].mxu0
        %v2644 = vpop.f32.mrb[0].mxu0
        %2645 = vdwg.mxu0
        %v2646 = vpack.c.bf16 %v2503, %v2503
        %v2647 = vpack.c.bf16 %v2549, %v2549
        %v2648 = vpack.c.bf16 %v2595, %v2595
        %v2649 = vpack.c.bf16 %v2641, %v2641
        %2651 = vrot.lane.b32.xlu0 %v2647, 8
        %v2652 = vpop.permute.xlu0 %2651
        %2654 = vrot.lane.b32.xlu0 %v2648, 16
        %v2655 = vpop.permute.xlu0 %2654
        %2657 = vrot.lane.b32.xlu0 %v2649, 24
        %v2658 = vpop.permute.xlu0 %2657
        %v2661 = vsel %vm1460, %v2646, %v2652
        %v2663 = vsel %vm1900, %v2661, %v2655
        %v2665 = vsel %vm1903, %v2663, %v2658
        %v2667 = vlaneseq
        %v2668 = vshrl.u32 %v2667, 7
        %v2669 = vsub.s32 0, %v2668
        %v2670 = vrot.slane %v2204, %v2669
        %v2676 = vunpack.c.l.b16 %v2200
        %v2677 = vunpack.c.l.b16 %v2201
        %v2678 = vunpack.c.l.b16 %v2202
        %v2679 = vunpack.c.l.b16 %v2203
        %v2680 = vpack.c.b16 %v2677, %v2676
        %v2681 = vpack.c.b16 %v2679, %v2678
        %v2684 = vsel %vm1317, %v2665, 0
        %2686 = vmatprep.subr.bf16.mxu0 0
        %2687 = vmatpush1.bf16.msra.mxu0 %v2680
        %2688 = vmatprep.subr.bf16.mxu0 0
        %2689 = vmatpush1.bf16.msra.mxu0 %v2681
        %2690 = vmatprep.subr.bf16.mxu0 0
        %2691 = vmatpush1.bf16.msra.mxu0 0
        %2692 = vmatprep.subr.bf16.mxu0 0
        %2693 = vmatpush1.bf16.msra.mxu0 0
        %2694 = vmatprep.subr.bf16.mxu0 0
        %2695 = vmatpush1.bf16.msra.mxu0 0
        %2696 = vmatprep.subr.bf16.mxu0 0
        %2697 = vmatpush1.bf16.msra.mxu0 0
        %2698 = vmatprep.subr.bf16.mxu0 0
        %2699 = vmatpush1.bf16.msra.mxu0 0
        %2700 = vmatprep.subr.bf16.mxu0 0
        %2701 = vmatpush1.bf16.msra.mxu0 0
        %2702 = vmatprep.subr.bf16.mxu0 0
        %2703 = vmatpush1.bf16.msra.mxu0 0
        %2704 = vmatprep.subr.bf16.mxu0 0
        %2705 = vmatpush1.bf16.msra.mxu0 0
        %2706 = vmatprep.subr.bf16.mxu0 0
        %2707 = vmatpush1.bf16.msra.mxu0 0
        %2708 = vmatprep.subr.bf16.mxu0 0
        %2709 = vmatpush1.bf16.msra.mxu0 0
        %2710 = vmatprep.subr.bf16.mxu0 0
        %2711 = vmatpush1.bf16.msra.mxu0 0
        %2712 = vmatprep.subr.bf16.mxu0 0
        %2713 = vmatpush1.bf16.msra.mxu0 0
        %2714 = vmatprep.subr.bf16.mxu0 0
        %2715 = vmatpush1.bf16.msra.mxu0 0
        %2716 = vmatprep.subr.bf16.mxu0 0
        %2717 = vmatpush1.bf16.msra.mxu0 0
        %2718 = vmatprep.mubr.bf16.mxu0 0
        %2719 = vmatmul.mubr.bf16.gmra.mrb[0].mxu0 %v2684
        %v2720 = vpop.f32.mrb[0].mxu0
        %v2721 = vadd.f32 %v2670, %v2720
        %v2722 = vpop.f32.mrb[0].mxu0
        %v2723 = vpop.f32.mrb[0].mxu0
        %v2724 = vpop.f32.mrb[0].mxu0
        %2725 = vdwg.mxu0
        %v2726 = vadd.f32 %v1996, %v2721
        %v2727 = vld [vmem:[#allocation40] sm:$0x1]
        %v2728 = vld [vmem:[#allocation41] sm:$0x1]
        %v2729 = vsel %vm1317, %v2726, 0.0
        %2730 = vadd.xlane.f32.xlu0 %v2729
        %v2731 = vpop.xlane.xlu0 %2730
        %v2732 = vmul.f32 %v2731, %v1972
        %v2733 = vsub.f32 %v2726, %v2732
        %v2734 = vmul.f32 %v2733, %v2733
        %v2735 = vsel %vm1317, %v2734, 0.0
        %2736 = vadd.xlane.f32.xlu0 %v2735
        %v2737 = vpop.xlane.xlu0 %2736
        %v2738 = vmul.f32 %v2737, %v1972
        %v2739 = vadd.f32 %v2738, 1e-05
        %v2740 = vrsqrt.pop %v2739
        %v2741 = vmul.f32 %v2733, %v2740
        %v2743 = vlaneseq
        %v2744 = vshrl.u32 %v2743, 7
        %v2745 = vsub.s32 0, %v2744
        %v2746 = vrot.slane %v2727, %v2745
        %v2748 = vmul.f32 %v2741, %v2746
        %v2750 = vlaneseq
        %v2751 = vshrl.u32 %v2750, 7
        %v2752 = vsub.s32 0, %v2751
        %v2753 = vrot.slane %v2728, %v2752
        %v2755 = vadd.f32 %v2748, %v2753
        %v2756 = vld [vmem:[#allocation31] sm:$0xf]
        %v2757 = vld [vmem:[#allocation31 + $0x4] sm:$0xf]
        %v2758 = vld [vmem:[#allocation31 + $0x8] sm:$0xf]
        %v2759 = vld [vmem:[#allocation31 + $0xc] sm:$0xf]
        %v2760 = vld [vmem:[#allocation32] sm:$0x1]
        %v2761 = vpack.c.bf16 %v2755, %v2755
        %v2763 = vlaneseq
        %v2764 = vshrl.u32 %v2763, 7
        %v2765 = vsub.s32 0, %v2764
        %v2766 = vrot.slane %v2760, %v2765
        %v2772 = vunpack.c.l.b16 %v2756
        %v2773 = vunpack.c.l.b16 %v2757
        %v2774 = vunpack.c.l.b16 %v2758
        %v2775 = vunpack.c.l.b16 %v2759
        %v2776 = vpack.c.b16 %v2773, %v2772
        %v2777 = vpack.c.b16 %v2775, %v2774
        %v2781 = vsel %vm1317, %v2761, 0
        %2783 = vmatprep.subr.bf16.mxu0 0
        %2784 = vmatpush1.bf16.msra.mxu0 %v2776
        %2785 = vmatprep.subr.bf16.mxu0 0
        %2786 = vmatpush1.bf16.msra.mxu0 %v2777
        %2787 = vmatprep.subr.bf16.mxu0 0
        %2788 = vmatpush1.bf16.msra.mxu0 0
        %2789 = vmatprep.subr.bf16.mxu0 0
        %2790 = vmatpush1.bf16.msra.mxu0 0
        %2791 = vmatprep.subr.bf16.mxu0 0
        %2792 = vmatpush1.bf16.msra.mxu0 0
        %2793 = vmatprep.subr.bf16.mxu0 0
        %2794 = vmatpush1.bf16.msra.mxu0 0
        %2795 = vmatprep.subr.bf16.mxu0 0
        %2796 = vmatpush1.bf16.msra.mxu0 0
        %2797 = vmatprep.subr.bf16.mxu0 0
        %2798 = vmatpush1.bf16.msra.mxu0 0
        %2799 = vmatprep.subr.bf16.mxu0 0
        %2800 = vmatpush1.bf16.msra.mxu0 0
        %2801 = vmatprep.subr.bf16.mxu0 0
        %2802 = vmatpush1.bf16.msra.mxu0 0
        %2803 = vmatprep.subr.bf16.mxu0 0
        %2804 = vmatpush1.bf16.msra.mxu0 0
        %2805 = vmatprep.subr.bf16.mxu0 0
        %2806 = vmatpush1.bf16.msra.mxu0 0
        %2807 = vmatprep.subr.bf16.mxu0 0
        %2808 = vmatpush1.bf16.msra.mxu0 0
        %2809 = vmatprep.subr.bf16.mxu0 0
        %2810 = vmatpush1.bf16.msra.mxu0 0
        %2811 = vmatprep.subr.bf16.mxu0 0
        %2812 = vmatpush1.bf16.msra.mxu0 0
        %2813 = vmatprep.subr.bf16.mxu0 0
        %2814 = vmatpush1.bf16.msra.mxu0 0
        %2815 = vmatprep.mubr.bf16.mxu0 0
        %2816 = vmatmul.mubr.bf16.gmra.mrb[0].mxu0 %v2781
        %v2817 = vpop.f32.mrb[0].mxu0
        %v2818 = vadd.f32 %v2766, %v2817
        %v2819 = vpop.f32.mrb[0].mxu0
        %v2820 = vpop.f32.mrb[0].mxu0
        %v2821 = vpop.f32.mrb[0].mxu0
        %2822 = vdwg.mxu0
        %v2823 = vmax.f32 %v2818, 0.0
        %v2824 = vld [vmem:[#allocation34] sm:$0xf]
        %v2825 = vld [vmem:[#allocation34 + $0x4] sm:$0xf]
        %v2826 = vld [vmem:[#allocation34 + $0x8] sm:$0xf]
        %v2827 = vld [vmem:[#allocation34 + $0xc] sm:$0xf]
        %v2828 = vld [vmem:[#allocation34 + $0x10] sm:$0xf]
        %v2829 = vld [vmem:[#allocation34 + $0x14] sm:$0xf]
        %v2830 = vld [vmem:[#allocation34 + $0x18] sm:$0xf]
        %v2831 = vld [vmem:[#allocation34 + $0x1c] sm:$0xf]
        %v2832 = vld [vmem:[#allocation35] sm:$0x1]
        %v2833 = vpack.c.bf16 %v2823, %v2823
        %v2835 = vlaneseq
        %v2836 = vshrl.u32 %v2835, 7
        %v2837 = vsub.s32 0, %v2836
        %v2838 = vrot.slane %v2832, %v2837
        %v2848 = vunpack.c.l.b16 %v2824
        %v2849 = vunpack.c.l.b16 %v2825
        %v2850 = vunpack.c.l.b16 %v2826
        %v2851 = vunpack.c.l.b16 %v2827
        %v2852 = vunpack.c.l.b16 %v2828
        %v2853 = vunpack.c.l.b16 %v2829
        %v2854 = vunpack.c.l.b16 %v2830
        %v2855 = vunpack.c.l.b16 %v2831
        %v2856 = vpack.c.b16 %v2849, %v2848
        %v2857 = vpack.c.b16 %v2851, %v2850
        %v2858 = vpack.c.b16 %v2853, %v2852
        %v2859 = vpack.c.b16 %v2855, %v2854
        %vm2864 = vcmask 523264
        %v2866 = vsel %vm2864, %v2833, 0
        %2868 = vmatprep.subr.bf16.mxu0 0
        %2869 = vmatpush1.bf16.msra.mxu0 %v2856
        %2870 = vmatprep.subr.bf16.mxu0 0
        %2871 = vmatpush1.bf16.msra.mxu0 %v2857
        %2872 = vmatprep.subr.bf16.mxu0 0
        %2873 = vmatpush1.bf16.msra.mxu0 %v2858
        %2874 = vmatprep.subr.bf16.mxu0 0
        %2875 = vmatpush1.bf16.msra.mxu0 %v2859
        %2876 = vmatprep.subr.bf16.mxu0 0
        %2877 = vmatpush1.bf16.msra.mxu0 0
        %2878 = vmatprep.subr.bf16.mxu0 0
        %2879 = vmatpush1.bf16.msra.mxu0 0
        %2880 = vmatprep.subr.bf16.mxu0 0
        %2881 = vmatpush1.bf16.msra.mxu0 0
        %2882 = vmatprep.subr.bf16.mxu0 0
        %2883 = vmatpush1.bf16.msra.mxu0 0
        %2884 = vmatprep.subr.bf16.mxu0 0
        %2885 = vmatpush1.bf16.msra.mxu0 0
        %2886 = vmatprep.subr.bf16.mxu0 0
        %2887 = vmatpush1.bf16.msra.mxu0 0
        %2888 = vmatprep.subr.bf16.mxu0 0
        %2889 = vmatpush1.bf16.msra.mxu0 0
        %2890 = vmatprep.subr.bf16.mxu0 0
        %2891 = vmatpush1.bf16.msra.mxu0 0
        %2892 = vmatprep.subr.bf16.mxu0 0
        %2893 = vmatpush1.bf16.msra.mxu0 0
        %2894 = vmatprep.subr.bf16.mxu0 0
        %2895 = vmatpush1.bf16.msra.mxu0 0
        %2896 = vmatprep.subr.bf16.mxu0 0
        %2897 = vmatpush1.bf16.msra.mxu0 0
        %2898 = vmatprep.subr.bf16.mxu0 0
        %2899 = vmatpush1.bf16.msra.mxu0 0
        %2900 = vmatprep.mubr.bf16.mxu0 0
        %2901 = vmatmul.mubr.bf16.gmra.mrb[0].mxu0 %v2866
        %v2902 = vpop.f32.mrb[0].mxu0
        %v2903 = vadd.f32 %v2838, %v2902
        %v2904 = vpop.f32.mrb[0].mxu0
        %v2905 = vpop.f32.mrb[0].mxu0
        %v2906 = vpop.f32.mrb[0].mxu0
        %2907 = vdwg.mxu0
        %v2908 = vadd.f32 %v2755, %v2903
        %v2909 = vld [vmem:[#allocation43] sm:$0x1]
        %v2910 = vld [vmem:[#allocation44] sm:$0x1]
        %v2911 = vsel %vm1317, %v2908, 0.0
        %2912 = vadd.xlane.f32.xlu0 %v2911
        %v2913 = vpop.xlane.xlu0 %2912
        %v2914 = vmul.f32 %v2913, %v1972
        %v2915 = vsub.f32 %v2908, %v2914
        %v2916 = vmul.f32 %v2915, %v2915
        %v2917 = vsel %vm1317, %v2916, 0.0
        %2918 = vadd.xlane.f32.xlu0 %v2917
        %v2919 = vpop.xlane.xlu0 %2918
        %v2920 = vmul.f32 %v2919, %v1972
        %v2921 = vadd.f32 %v2920, 1e-05
        %v2922 = vrsqrt.pop %v2921
        %v2923 = vmul.f32 %v2915, %v2922
        %v2925 = vlaneseq
        %v2926 = vshrl.u32 %v2925, 7
        %v2927 = vsub.s32 0, %v2926
        %v2928 = vrot.slane %v2909, %v2927
        %v2930 = vmul.f32 %v2923, %v2928
        %v2932 = vlaneseq
        %v2933 = vshrl.u32 %v2932, 7
        %v2934 = vsub.s32 0, %v2933
        %v2935 = vrot.slane %v2910, %v2934
        %v2937 = vadd.f32 %v2930, %v2935
        %2938 = vst.msk [vmem:[%s1286] sm:$0xff] %vm1317, %v2937
        %s2939 = sand.u32 %s679, 1
        %s2940 = scalar_lea.sflag [#allocation4], %s2939
        %s2941 = sand.u32 %s679, 1
        %s2942 = smul.addr %s2941, 8
        %s2943 = scalar_lea.vmem [#allocation46], %s2942
        // Predicated region
        $region245: #{tpu_custom_call.1} parent=131 // pred_check
          %p2944 = pneg %p689
        $region246: #{tpu_custom_call.1} parent=131 // pred_check_branch
          %2946 = sbr.rel (%p2944) target = $region248
        $region247: #{tpu_custom_call.1} parent=131 // pred_region
          %s2948 = ssub.s32 128, 128
          %2949 = vsyncadd %s2940, %s2948
          %s2950 = smul.addr %s63, 128
          %s2951 = scalar_lea.hbm %s28, %s2950
          %s2953 = sshll.u32 %s2943, 4
          %s2954 = int_to_ptr.vmem [resolvable:$true] %s2953
          %2956 = dma.vmem_to_hbm [thread:$0]  %s2954, 128, %s2951, %s2940
        $region248: #{tpu_custom_call.1} parent=131 // pred_fallthru
          _
      $region132: #{tpu_custom_call.1} parent=5 // pred_fallthru
        _
      %p2957 = scmp.le.s32.totalorder 2, %s58
      // Predicated region
      $region249: #{tpu_custom_call.1} parent=5 // pred_check
        %p2958 = pneg %p2957
      $region250: #{tpu_custom_call.1} parent=5 // pred_check_branch
        %2960 = sbr.rel (%p2958) target = $region252
      $region251: #{tpu_custom_call.1} parent=5 // pred_region
        %s2961 = ssub.s32 %s58, 2
        // Predicated region
        $region253: #{tpu_custom_call.1} parent=251 // pred_check
          %p2962 = pneg %p695
        $region254: #{tpu_custom_call.1} parent=251 // pred_check_branch
          %2964 = sbr.rel (%p2962) target = $region256
        $region255: #{tpu_custom_call.1} parent=251 // pred_region
          %s2965 = sand.u32 %s680, 1
          %s2966 = scalar_lea.sflag [#allocation4], %s2965
          %s2967 = sand.u32 %s680, 1
          %s2968 = smul.addr %s2967, 8
          %s2969 = scalar_lea.vmem [#allocation46], %s2968
          %2970 = dma.done %s2966, 128
        $region256: #{tpu_custom_call.1} parent=251 // pred_fallthru
          _
      $region252: #{tpu_custom_call.1} parent=5 // pred_fallthru
        _
    $region6: #{tpu_custom_call.1} parent=1 // loop_footer
      %s62 = sadd.s32 1, %s58
    $region7: #{tpu_custom_call.1} parent=1 // loop_footer_branch
      %57 = sbr.rel target = $region3
    $region8: #{tpu_custom_call.1} parent=1 // loop_exit
      _
    %2971 = vsyncpa [#allocation3], 1
    %s2972 = scalar_lea.sflag [#allocation3], 1
    %2973 = vsyncpa %s2972, 1
    %2974 = vsyncpa [#allocation6], 1
    %s2975 = scalar_lea.sflag [#allocation6], 1
    %2976 = vsyncpa %s2975, 1
    %2977 = vsyncpa [#allocation9], 1
    %s2978 = scalar_lea.sflag [#allocation9], 1
    %2979 = vsyncpa %s2978, 1
    %2980 = vsyncpa [#allocation12], 1
    %2981 = vsyncpa [#allocation15], 1
    %2982 = vsyncpa [#allocation18], 1
    %2983 = vsyncpa [#allocation21], 1
    %2984 = vsyncpa [#allocation24], 1
    %2985 = vsyncpa [#allocation27], 1
    %2986 = vsyncpa [#allocation30], 1
    %2987 = vsyncpa [#allocation33], 1
    %2988 = vsyncpa [#allocation36], 1
    %2989 = vsyncpa [#allocation39], 1
    %2990 = vsyncpa [#allocation42], 1
    %2991 = vsyncpa [#allocation45], 1
    %2992 = vsyncpa [#allocation4], 1
    %s2993 = scalar_lea.sflag [#allocation4], 1
    %2994 = vsyncpa %s2993, 1

</llo_original>
